<compile_context>
chip_gen: v5e
topology: v5e:2x2
jax: 0.10.0
libtpu: 0.0.40
codegen_flags: <defaults>
</compile_context>

<pallas_src>
import jax
import jax.numpy as jnp
from jax.experimental import pallas as pl
from jax.experimental.pallas import tpu as pltpu

# ----- small, TPU-friendly stand-in sizes -------------------------------------
B = 8          # batch
H_IMG = 32     # image encoder hidden size (stand-in for 1024)
H_TXT = 32     # text encoder hidden size (stand-in for 768)
D = 128        # map_dim (stand-in for 1024)
NUM_MAPPING_LAYERS = 5   # matches the module: 1 input linear + 4 hidden linears
EPS = 1e-12    # F.normalize eps

K = D * D            # contraction dim of the pre_output matmul (16384)
TK = 4096            # K tile (~1 MiB bf16 wpre per grid step; re-derive at real D)
K_TILES = K // TK    # 4
R = TK // D          # image rows covered per K tile (32)


# ----------------------------- in-kernel helpers -------------------------------
def _mlp(x, w0_ref, b0_ref, wh_ref, bh_ref):
    """image_map / text_map: Linear -> [ReLU -> Linear] x (NUM_MAPPING_LAYERS-1).

    Weights are bf16; activations are cast to bf16 at each MXU input, accumulation
    and bias adds stay f32.  Dropout = identity (eval mode).
    """
    h = jnp.dot(x.astype(jnp.bfloat16), w0_ref[...],
                preferred_element_type=jnp.float32) + b0_ref[...]
    for l in range(NUM_MAPPING_LAYERS - 1):
        h = jnp.maximum(h, 0.0)
        h = jnp.dot(h.astype(jnp.bfloat16), wh_ref[l],
                    preferred_element_type=jnp.float32) + bh_ref[l]
    return h


def _l2_normalize(x):
    # F.normalize(p=2, dim=1): x / max(||x||, eps) == x * rsqrt(max(sum(x^2), eps^2))
    ss = jnp.sum(x * x, axis=1, keepdims=True)
    return x * jax.lax.rsqrt(jnp.maximum(ss, EPS * EPS))


# --------------------------- fused CLIP head kernel ----------------------------
def clip_head_kernel(img_pooled_ref, txt_pooled_ref,
                     wi0_ref, bi0_ref, wih_ref, bih_ref,
                     wt0_ref, bt0_ref, wth_ref, bth_ref,
                     wpre_ref, bpre_ref, wout_t_ref, bout_ref,
                     out_ref,
                     txt_bf_ref, img_blk_ref, acc_ref):
    k = pl.program_id(0)

    # Prologue (once): mapping MLPs + L2 normalize -> VMEM scratch.
    @pl.when(k == 0)
    def _prologue():
        img = _l2_normalize(_mlp(img_pooled_ref[...], wi0_ref, bi0_ref, wih_ref, bih_ref))
        txt = _l2_normalize(_mlp(txt_pooled_ref[...], wt0_ref, bt0_ref, wth_ref, bth_ref))
        txt_bf_ref[...] = txt.astype(jnp.bfloat16)   # MXU input for every K step
        # Pre-chunk the image features so each K step reads its (B, R) block with a
        # plain leading-axis index (no dynamic lane slicing, no transposes).
        for kk in range(K_TILES):
            img_blk_ref[kk] = img[:, kk * R:(kk + 1) * R]
        acc_ref[...] = jnp.zeros_like(acc_ref)

    # K-tiled 'cross' + pre_output matmul.  For image row i = k*R + r:
    #   acc[b, n] += img[b, i] * sum_j txt[b, j] * wpre[i*D + j, n]
    # i.e. R small MXU matmuls (txt @ wpre[k, r]) scaled per-row in f32 — no
    # (B, R, D) -> (B, TK) lane-merge relayout, no full [B, D, D] cross.
    txt_bf = txt_bf_ref[...]            # (B, D)  bf16, resident
    img_blk = img_blk_ref[k]            # (B, R)  f32 chunk for this K tile
    acc = acc_ref[...]
    for r in range(R):                  # static unroll: all slice indices static
        contrib = jnp.dot(txt_bf, wpre_ref[0, r],
                          preferred_element_type=jnp.float32)   # (B, D) f32
        acc = acc + img_blk[:, r:r + 1] * contrib
    acc_ref[...] = acc

    @pl.when(k == pl.num_programs(0) - 1)
    def _finalize():
        # pre_output: (Dropout=id) -> Linear(D*D, D) -> ReLU -> (Dropout=id)
        h = jnp.maximum(acc_ref[...] + bpre_ref[...], 0.0)
        # output: Linear(D, 1) as a VPU lane reduction (avoids an N=1 MXU matmul)
        logits = jnp.sum(h * wout_t_ref[...], axis=1, keepdims=True) + bout_ref[...]
        out_ref[...] = jax.nn.sigmoid(logits)


# ---------------------------------- wrapper ------------------------------------
@jax.jit
def clip_classifier_forward(img_pooled, txt_pooled, params):
    # Contiguous (free) reshape: wpre4[k, r, j, n] == wpre[(k*R + r)*D + j, n].
    wpre4 = params["wpre"].reshape(K_TILES, R, D, D)

    nh = NUM_MAPPING_LAYERS - 1
    head_flops = 2 * B * K * D
    mlp_flops = 2 * B * (H_IMG * D + H_TXT * D + 2 * nh * D * D)
    small_bytes = sum(int(p.size) * p.dtype.itemsize
                      for n, p in params.items() if n != "wpre")
    bytes_accessed = (int(wpre4.size) * wpre4.dtype.itemsize + small_bytes
                      + int(img_pooled.size) * 4 + int(txt_pooled.size) * 4 + B * 4)

    resident2 = lambda shape: pl.BlockSpec(shape, lambda k: (0, 0))
    resident3 = lambda shape: pl.BlockSpec(shape, lambda k: (0, 0, 0))

    preds = pl.pallas_call(
        clip_head_kernel,
        out_shape=jax.ShapeDtypeStruct((B, 1), jnp.float32),
        grid_spec=pltpu.PrefetchScalarGridSpec(
            num_scalar_prefetch=0,
            grid=(K_TILES,),                       # K axis of the pre_output matmul
            in_specs=[
                resident2((B, H_IMG)),             # image pooled features
                resident2((B, H_TXT)),             # text pooled features
                resident2((H_IMG, D)),             # image_map layer 0 weight
                resident2((1, D)),                 # image_map layer 0 bias
                resident3((nh, D, D)),             # image_map hidden weights
                resident3((nh, 1, D)),             # image_map hidden biases
                resident2((H_TXT, D)),             # text_map layer 0 weight
                resident2((1, D)),                 # text_map layer 0 bias
                resident3((nh, D, D)),             # text_map hidden weights
                resident3((nh, 1, D)),             # text_map hidden biases
                # Dominant HBM stream: one (R, D, D) bf16 wpre tile per K step,
                # double-buffered by the pipeline.  (pipeline_mode=pl.Buffered(3)
                # if profiling shows exposed DMA and VMEM allows.)
                pl.BlockSpec((1, R, D, D), lambda k: (k, 0, 0, 0)),
                resident2((1, D)),                 # pre_output bias
                resident2((1, D)),                 # output weight (transposed)
                resident2((1, 1)),                 # output bias
            ],
            out_specs=pl.BlockSpec((B, 1), lambda k: (0, 0)),
            scratch_shapes=[
                pltpu.VMEM((B, D), jnp.bfloat16),          # normalized text (MXU lhs)
                pltpu.VMEM((K_TILES, B, R), jnp.float32),  # pre-chunked normalized image
                pltpu.VMEM((B, D), jnp.float32),           # f32 accumulator
            ],
        ),
        compiler_params=pltpu.CompilerParams(
            # TODO(synk): at real D=1024 add a leading "parallel" output-N grid axis
            # (TN~512) so v7x's 2nd TensorCore shares the wpre stream; degenerate here.
            dimension_semantics=("arbitrary",),
            vmem_limit_bytes=48 * 1024 * 1024,     # fits v7x's 64 MiB physical VMEM
        ),
        cost_estimate=pl.CostEstimate(flops=head_flops + mlp_flops,
                                      transcendentals=3 * B,
                                      bytes_accessed=bytes_accessed),
    )(img_pooled, txt_pooled,
      params["wi0"], params["bi0"], params["wih"], params["bih"],
      params["wt0"], params["bt0"], params["wth"], params["bth"],
      wpre4, params["bpre"], params["wout_t"], params["bout"])
    return preds


# ------------------------------ reference & init -------------------------------
def _reference(img_pooled, txt_pooled, p):
    """Plain-JAX f32 reference using the same (bf16-rounded) weights."""
    def f32(a):
        return a.astype(jnp.float32)

    def mlp(x, w0, b0, wh, bh):
        h = x @ f32(w0) + b0
        for l in range(NUM_MAPPING_LAYERS - 1):
            h = jnp.maximum(h, 0.0) @ f32(wh[l]) + bh[l]
        return h

    img = mlp(img_pooled, p["wi0"], p["bi0"], p["wih"], p["bih"])
    txt = mlp(txt_pooled, p["wt0"], p["bt0"], p["wth"], p["bth"])
    img = img / jnp.maximum(jnp.linalg.norm(img, axis=1, keepdims=True), EPS)
    txt = txt / jnp.maximum(jnp.linalg.norm(txt, axis=1, keepdims=True), EPS)
    feats = (img[:, :, None] * txt[:, None, :]).reshape(B, D * D)
    h = jnp.maximum(feats @ f32(p["wpre"]) + p["bpre"], 0.0)
    logits = jnp.sum(h * p["wout_t"], axis=1, keepdims=True) + p["bout"]
    return jax.nn.sigmoid(logits)


def _init_params(key):
    """Linear weights pre-transposed to (in, out); matmul weights in bf16, biases f32."""
    ks = jax.random.split(key, 12)
    s = 0.05
    bf = jnp.bfloat16
    nh = NUM_MAPPING_LAYERS - 1
    return {
        # image_map: Linear(H_IMG, D) + 4x Linear(D, D)
        "wi0": (jax.random.normal(ks[0], (H_IMG, D), jnp.float32) * s).astype(bf),
        "bi0": jax.random.normal(ks[1], (1, D), jnp.float32) * s,
        "wih": (jax.random.normal(ks[2], (nh, D, D), jnp.float32) * s).astype(bf),
        "bih": jax.random.normal(ks[3], (nh, 1, D), jnp.float32) * s,
        # text_map: Linear(H_TXT, D) + 4x Linear(D, D)
        "wt0": (jax.random.normal(ks[4], (H_TXT, D), jnp.float32) * s).astype(bf),
        "bt0": jax.random.normal(ks[5], (1, D), jnp.float32) * s,
        "wth": (jax.random.normal(ks[6], (nh, D, D), jnp.float32) * s).astype(bf),
        "bth": jax.random.normal(ks[7], (nh, 1, D), jnp.float32) * s,
        # pre_output: Linear(D*D, D)  (dominant weight -> bf16 halves HBM traffic;
        # int8 on v5e/v6e or fp8 on v7x would halve it again if bandwidth-bound)
        "wpre": (jax.random.normal(ks[8], (D * D, D), jnp.float32) * s).astype(bf),
        "bpre": jax.random.normal(ks[9], (1, D), jnp.float32) * s,
        # output: Linear(D, 1), stored transposed as (1, D) for the lane reduction
        "wout_t": jax.random.normal(ks[10], (1, D), jnp.float32) * s,
        "bout": jax.random.normal(ks[11], (1, 1), jnp.float32) * s,
    }


if __name__ == "__main__":
    key = jax.random.PRNGKey(0)
    k_img, k_txt, k_par = jax.random.split(key, 3)

    # stand-ins for image_encoder(...).pooler_output / text_encoder(...).pooler_output
    img_pooled = jax.random.normal(k_img, (B, H_IMG), jnp.float32)
    txt_pooled = jax.random.normal(k_txt, (B, H_TXT), jnp.float32)
    params = _init_params(k_par)

    preds = clip_classifier_forward(img_pooled, txt_pooled, params)
    preds = jax.block_until_ready(preds)

    ref = _reference(img_pooled, txt_pooled, params)
    assert preds.shape == (B, 1)
    # bf16 activations at the MXU vs. f32 reference => loosened tolerance
    assert jnp.allclose(preds, ref, atol=2e-2, rtol=2e-2), (preds, ref)

    print("KERNEL_OK")
</pallas_src>

<mosaic_0001>
module attributes {stable_mosaic.version = 11 : i64} {
  func.func @clip_head_kernel(%arg0: i32, %arg1: memref<8x32xf32, #tpu.memory_space<vmem>>, %arg2: memref<8x32xf32, #tpu.memory_space<vmem>>, %arg3: memref<32x128xbf16, #tpu.memory_space<vmem>>, %arg4: memref<1x128xf32, #tpu.memory_space<vmem>>, %arg5: memref<4x128x128xbf16, #tpu.memory_space<vmem>>, %arg6: memref<4x1x128xf32, #tpu.memory_space<vmem>>, %arg7: memref<32x128xbf16, #tpu.memory_space<vmem>>, %arg8: memref<1x128xf32, #tpu.memory_space<vmem>>, %arg9: memref<4x128x128xbf16, #tpu.memory_space<vmem>>, %arg10: memref<4x1x128xf32, #tpu.memory_space<vmem>>, %arg11: memref<1x32x128x128xbf16, #tpu.memory_space<vmem>>, %arg12: memref<1x128xf32, #tpu.memory_space<vmem>>, %arg13: memref<1x128xf32, #tpu.memory_space<vmem>>, %arg14: memref<1x1xf32, #tpu.memory_space<vmem>>, %arg15: memref<8x1xf32, #tpu.memory_space<vmem>>, %arg16: memref<8x128xbf16, #tpu.memory_space<vmem>>, %arg17: memref<4x8x32xf32, #tpu.memory_space<vmem>>, %arg18: memref<8x128xf32, #tpu.memory_space<vmem>>) attributes {dimension_semantics = [#tpu.dimension_semantics<arbitrary>], iteration_bounds = array<i64: 4>, scalar_prefetch = 0 : i64, scratch_operands = 3 : i64, tpu.core_type = #tpu.core_type<tc>, window_params = [{pipeline_mode = #tpu.pipeline_mode<synchronous>, transform_indices = @transform_0, window_bounds = array<i64: 8, 32>}, {pipeline_mode = #tpu.pipeline_mode<synchronous>, transform_indices = @transform_1, window_bounds = array<i64: 8, 32>}, {pipeline_mode = #tpu.pipeline_mode<synchronous>, transform_indices = @transform_2, window_bounds = array<i64: 32, 128>}, {pipeline_mode = #tpu.pipeline_mode<synchronous>, transform_indices = @transform_3, window_bounds = array<i64: 1, 128>}, {pipeline_mode = #tpu.pipeline_mode<synchronous>, transform_indices = @transform_4, window_bounds = array<i64: 4, 128, 128>}, {pipeline_mode = #tpu.pipeline_mode<synchronous>, transform_indices = @transform_5, window_bounds = array<i64: 4, 1, 128>}, {pipeline_mode = #tpu.pipeline_mode<synchronous>, transform_indices = @transform_6, window_bounds = array<i64: 32, 128>}, {pipeline_mode = #tpu.pipeline_mode<synchronous>, transform_indices = @transform_7, window_bounds = array<i64: 1, 128>}, {pipeline_mode = #tpu.pipeline_mode<synchronous>, transform_indices = @transform_8, window_bounds = array<i64: 4, 128, 128>}, {pipeline_mode = #tpu.pipeline_mode<synchronous>, transform_indices = @transform_9, window_bounds = array<i64: 4, 1, 128>}, {transform_indices = @transform_10, window_bounds = array<i64: 1, 32, 128, 128>}, {pipeline_mode = #tpu.pipeline_mode<synchronous>, transform_indices = @transform_11, window_bounds = array<i64: 1, 128>}, {pipeline_mode = #tpu.pipeline_mode<synchronous>, transform_indices = @transform_12, window_bounds = array<i64: 1, 128>}, {pipeline_mode = #tpu.pipeline_mode<synchronous>, transform_indices = @transform_13, window_bounds = array<i64: 1, 1>}, {pipeline_mode = #tpu.pipeline_mode<synchronous>, transform_indices = @transform_14, window_bounds = array<i64: 8, 1>}]} {
    %c0_i32 = arith.constant 0 : i32
    %0 = arith.cmpi eq, %arg0, %c0_i32 : i32
    %1 = arith.extui %0 : i1 to i32
    %c0_i32_0 = arith.constant 0 : i32
    %2 = arith.cmpi ne, %1, %c0_i32_0 : i32
    scf.if %2 {
      %c0_137 = arith.constant 0 : index
      %c0_138 = arith.constant 0 : index
      %236 = vector.load %arg1[%c0_137, %c0_138] : memref<8x32xf32, #tpu.memory_space<vmem>>, vector<8x32xf32>
      %237 = arith.truncf %236 : vector<8x32xf32> to vector<8x32xbf16>
      %c0_139 = arith.constant 0 : index
      %c0_140 = arith.constant 0 : index
      %238 = vector.load %arg3[%c0_139, %c0_140] : memref<32x128xbf16, #tpu.memory_space<vmem>>, vector<32x128xbf16>
      %cst_141 = arith.constant dense<0.000000e+00> : vector<8x128xf32>
      %239 = tpu.matmul %237, %238, %cst_141 {dimension_numbers = #tpu.dot_dimension_numbers<[1], [0], [0], [1], [0, 0, 1, 1], [], []>} : vector<8x32xbf16>, vector<32x128xbf16>, vector<8x128xf32> -> vector<8x128xf32>
      %c0_142 = arith.constant 0 : index
      %c0_143 = arith.constant 0 : index
      %240 = vector.load %arg4[%c0_142, %c0_143] : memref<1x128xf32, #tpu.memory_space<vmem>>, vector<1x128xf32>
      %241 = vector.broadcast %240 : vector<1x128xf32> to vector<8x128xf32>
      %242 = arith.addf %239, %241 : vector<8x128xf32>
      %cst_144 = arith.constant 0.000000e+00 : f32
      %243 = vector.broadcast %cst_144 : f32 to vector<8x128xf32>
      %244 = arith.maximumf %242, %243 : vector<8x128xf32>
      %245 = arith.truncf %244 : vector<8x128xf32> to vector<8x128xbf16>
      %c0_145 = arith.constant 0 : index
      %c0_146 = arith.constant 0 : index
      %c0_147 = arith.constant 0 : index
      %246 = vector.load %arg5[%c0_145, %c0_146, %c0_147] : memref<4x128x128xbf16, #tpu.memory_space<vmem>>, vector<1x128x128xbf16>
      %247 = vector.shape_cast %246 : vector<1x128x128xbf16> to vector<128x128xbf16>
      %cst_148 = arith.constant dense<0.000000e+00> : vector<8x128xf32>
      %248 = tpu.matmul %245, %247, %cst_148 {dimension_numbers = #tpu.dot_dimension_numbers<[1], [0], [0], [1], [0, 0, 1, 1], [], []>} : vector<8x128xbf16>, vector<128x128xbf16>, vector<8x128xf32> -> vector<8x128xf32>
      %c0_149 = arith.constant 0 : index
      %c0_150 = arith.constant 0 : index
      %c0_151 = arith.constant 0 : index
      %249 = vector.load %arg6[%c0_149, %c0_150, %c0_151] : memref<4x1x128xf32, #tpu.memory_space<vmem>>, vector<1x1x128xf32>
      %250 = vector.shape_cast %249 : vector<1x1x128xf32> to vector<1x128xf32>
      %251 = vector.broadcast %250 : vector<1x128xf32> to vector<8x128xf32>
      %252 = arith.addf %248, %251 : vector<8x128xf32>
      %cst_152 = arith.constant 0.000000e+00 : f32
      %253 = vector.broadcast %cst_152 : f32 to vector<8x128xf32>
      %254 = arith.maximumf %252, %253 : vector<8x128xf32>
      %255 = arith.truncf %254 : vector<8x128xf32> to vector<8x128xbf16>
      %c1_153 = arith.constant 1 : index
      %c0_154 = arith.constant 0 : index
      %c0_155 = arith.constant 0 : index
      %256 = vector.load %arg5[%c1_153, %c0_154, %c0_155] : memref<4x128x128xbf16, #tpu.memory_space<vmem>>, vector<1x128x128xbf16>
      %257 = vector.shape_cast %256 : vector<1x128x128xbf16> to vector<128x128xbf16>
      %cst_156 = arith.constant dense<0.000000e+00> : vector<8x128xf32>
      %258 = tpu.matmul %255, %257, %cst_156 {dimension_numbers = #tpu.dot_dimension_numbers<[1], [0], [0], [1], [0, 0, 1, 1], [], []>} : vector<8x128xbf16>, vector<128x128xbf16>, vector<8x128xf32> -> vector<8x128xf32>
      %c1_157 = arith.constant 1 : index
      %c0_158 = arith.constant 0 : index
      %c0_159 = arith.constant 0 : index
      %259 = vector.load %arg6[%c1_157, %c0_158, %c0_159] : memref<4x1x128xf32, #tpu.memory_space<vmem>>, vector<1x1x128xf32>
      %260 = vector.shape_cast %259 : vector<1x1x128xf32> to vector<1x128xf32>
      %261 = vector.broadcast %260 : vector<1x128xf32> to vector<8x128xf32>
      %262 = arith.addf %258, %261 : vector<8x128xf32>
      %cst_160 = arith.constant 0.000000e+00 : f32
      %263 = vector.broadcast %cst_160 : f32 to vector<8x128xf32>
      %264 = arith.maximumf %262, %263 : vector<8x128xf32>
      %265 = arith.truncf %264 : vector<8x128xf32> to vector<8x128xbf16>
      %c2_161 = arith.constant 2 : index
      %c0_162 = arith.constant 0 : index
      %c0_163 = arith.constant 0 : index
      %266 = vector.load %arg5[%c2_161, %c0_162, %c0_163] : memref<4x128x128xbf16, #tpu.memory_space<vmem>>, vector<1x128x128xbf16>
      %267 = vector.shape_cast %266 : vector<1x128x128xbf16> to vector<128x128xbf16>
      %cst_164 = arith.constant dense<0.000000e+00> : vector<8x128xf32>
      %268 = tpu.matmul %265, %267, %cst_164 {dimension_numbers = #tpu.dot_dimension_numbers<[1], [0], [0], [1], [0, 0, 1, 1], [], []>} : vector<8x128xbf16>, vector<128x128xbf16>, vector<8x128xf32> -> vector<8x128xf32>
      %c2_165 = arith.constant 2 : index
      %c0_166 = arith.constant 0 : index
      %c0_167 = arith.constant 0 : index
      %269 = vector.load %arg6[%c2_165, %c0_166, %c0_167] : memref<4x1x128xf32, #tpu.memory_space<vmem>>, vector<1x1x128xf32>
      %270 = vector.shape_cast %269 : vector<1x1x128xf32> to vector<1x128xf32>
      %271 = vector.broadcast %270 : vector<1x128xf32> to vector<8x128xf32>
      %272 = arith.addf %268, %271 : vector<8x128xf32>
      %cst_168 = arith.constant 0.000000e+00 : f32
      %273 = vector.broadcast %cst_168 : f32 to vector<8x128xf32>
      %274 = arith.maximumf %272, %273 : vector<8x128xf32>
      %275 = arith.truncf %274 : vector<8x128xf32> to vector<8x128xbf16>
      %c3_169 = arith.constant 3 : index
      %c0_170 = arith.constant 0 : index
      %c0_171 = arith.constant 0 : index
      %276 = vector.load %arg5[%c3_169, %c0_170, %c0_171] : memref<4x128x128xbf16, #tpu.memory_space<vmem>>, vector<1x128x128xbf16>
      %277 = vector.shape_cast %276 : vector<1x128x128xbf16> to vector<128x128xbf16>
      %cst_172 = arith.constant dense<0.000000e+00> : vector<8x128xf32>
      %278 = tpu.matmul %275, %277, %cst_172 {dimension_numbers = #tpu.dot_dimension_numbers<[1], [0], [0], [1], [0, 0, 1, 1], [], []>} : vector<8x128xbf16>, vector<128x128xbf16>, vector<8x128xf32> -> vector<8x128xf32>
      %c3_173 = arith.constant 3 : index
      %c0_174 = arith.constant 0 : index
      %c0_175 = arith.constant 0 : index
      %279 = vector.load %arg6[%c3_173, %c0_174, %c0_175] : memref<4x1x128xf32, #tpu.memory_space<vmem>>, vector<1x1x128xf32>
      %280 = vector.shape_cast %279 : vector<1x1x128xf32> to vector<1x128xf32>
      %281 = vector.broadcast %280 : vector<1x128xf32> to vector<8x128xf32>
      %282 = arith.addf %278, %281 : vector<8x128xf32>
      %283 = arith.mulf %282, %282 : vector<8x128xf32>
      %cst_176 = arith.constant dense<0.000000e+00> : vector<8xf32>
      %284 = vector.multi_reduction <add>, %283, %cst_176 [1] : vector<8x128xf32> to vector<8xf32>
      %285 = vector.shape_cast %284 : vector<8xf32> to vector<8x1xf32>
      %cst_177 = arith.constant 1.000000e-24 : f32
      %286 = vector.broadcast %cst_177 : f32 to vector<8x1xf32>
      %287 = arith.maximumf %285, %286 : vector<8x1xf32>
      %288 = math.rsqrt %287 : vector<8x1xf32>
      %289 = vector.broadcast %288 : vector<8x1xf32> to vector<8x128xf32>
      %290 = arith.mulf %282, %289 : vector<8x128xf32>
      %c0_178 = arith.constant 0 : index
      %c0_179 = arith.constant 0 : index
      %291 = vector.load %arg2[%c0_178, %c0_179] : memref<8x32xf32, #tpu.memory_space<vmem>>, vector<8x32xf32>
      %292 = arith.truncf %291 : vector<8x32xf32> to vector<8x32xbf16>
      %c0_180 = arith.constant 0 : index
      %c0_181 = arith.constant 0 : index
      %293 = vector.load %arg7[%c0_180, %c0_181] : memref<32x128xbf16, #tpu.memory_space<vmem>>, vector<32x128xbf16>
      %cst_182 = arith.constant dense<0.000000e+00> : vector<8x128xf32>
      %294 = tpu.matmul %292, %293, %cst_182 {dimension_numbers = #tpu.dot_dimension_numbers<[1], [0], [0], [1], [0, 0, 1, 1], [], []>} : vector<8x32xbf16>, vector<32x128xbf16>, vector<8x128xf32> -> vector<8x128xf32>
      %c0_183 = arith.constant 0 : index
      %c0_184 = arith.constant 0 : index
      %295 = vector.load %arg8[%c0_183, %c0_184] : memref<1x128xf32, #tpu.memory_space<vmem>>, vector<1x128xf32>
      %296 = vector.broadcast %295 : vector<1x128xf32> to vector<8x128xf32>
      %297 = arith.addf %294, %296 : vector<8x128xf32>
      %cst_185 = arith.constant 0.000000e+00 : f32
      %298 = vector.broadcast %cst_185 : f32 to vector<8x128xf32>
      %299 = arith.maximumf %297, %298 : vector<8x128xf32>
      %300 = arith.truncf %299 : vector<8x128xf32> to vector<8x128xbf16>
      %c0_186 = arith.constant 0 : index
      %c0_187 = arith.constant 0 : index
      %c0_188 = arith.constant 0 : index
      %301 = vector.load %arg9[%c0_186, %c0_187, %c0_188] : memref<4x128x128xbf16, #tpu.memory_space<vmem>>, vector<1x128x128xbf16>
      %302 = vector.shape_cast %301 : vector<1x128x128xbf16> to vector<128x128xbf16>
      %cst_189 = arith.constant dense<0.000000e+00> : vector<8x128xf32>
      %303 = tpu.matmul %300, %302, %cst_189 {dimension_numbers = #tpu.dot_dimension_numbers<[1], [0], [0], [1], [0, 0, 1, 1], [], []>} : vector<8x128xbf16>, vector<128x128xbf16>, vector<8x128xf32> -> vector<8x128xf32>
      %c0_190 = arith.constant 0 : index
      %c0_191 = arith.constant 0 : index
      %c0_192 = arith.constant 0 : index
      %304 = vector.load %arg10[%c0_190, %c0_191, %c0_192] : memref<4x1x128xf32, #tpu.memory_space<vmem>>, vector<1x1x128xf32>
      %305 = vector.shape_cast %304 : vector<1x1x128xf32> to vector<1x128xf32>
      %306 = vector.broadcast %305 : vector<1x128xf32> to vector<8x128xf32>
      %307 = arith.addf %303, %306 : vector<8x128xf32>
      %cst_193 = arith.constant 0.000000e+00 : f32
      %308 = vector.broadcast %cst_193 : f32 to vector<8x128xf32>
      %309 = arith.maximumf %307, %308 : vector<8x128xf32>
      %310 = arith.truncf %309 : vector<8x128xf32> to vector<8x128xbf16>
      %c1_194 = arith.constant 1 : index
      %c0_195 = arith.constant 0 : index
      %c0_196 = arith.constant 0 : index
      %311 = vector.load %arg9[%c1_194, %c0_195, %c0_196] : memref<4x128x128xbf16, #tpu.memory_space<vmem>>, vector<1x128x128xbf16>
      %312 = vector.shape_cast %311 : vector<1x128x128xbf16> to vector<128x128xbf16>
      %cst_197 = arith.constant dense<0.000000e+00> : vector<8x128xf32>
      %313 = tpu.matmul %310, %312, %cst_197 {dimension_numbers = #tpu.dot_dimension_numbers<[1], [0], [0], [1], [0, 0, 1, 1], [], []>} : vector<8x128xbf16>, vector<128x128xbf16>, vector<8x128xf32> -> vector<8x128xf32>
      %c1_198 = arith.constant 1 : index
      %c0_199 = arith.constant 0 : index
      %c0_200 = arith.constant 0 : index
      %314 = vector.load %arg10[%c1_198, %c0_199, %c0_200] : memref<4x1x128xf32, #tpu.memory_space<vmem>>, vector<1x1x128xf32>
      %315 = vector.shape_cast %314 : vector<1x1x128xf32> to vector<1x128xf32>
      %316 = vector.broadcast %315 : vector<1x128xf32> to vector<8x128xf32>
      %317 = arith.addf %313, %316 : vector<8x128xf32>
      %cst_201 = arith.constant 0.000000e+00 : f32
      %318 = vector.broadcast %cst_201 : f32 to vector<8x128xf32>
      %319 = arith.maximumf %317, %318 : vector<8x128xf32>
      %320 = arith.truncf %319 : vector<8x128xf32> to vector<8x128xbf16>
      %c2_202 = arith.constant 2 : index
      %c0_203 = arith.constant 0 : index
      %c0_204 = arith.constant 0 : index
      %321 = vector.load %arg9[%c2_202, %c0_203, %c0_204] : memref<4x128x128xbf16, #tpu.memory_space<vmem>>, vector<1x128x128xbf16>
      %322 = vector.shape_cast %321 : vector<1x128x128xbf16> to vector<128x128xbf16>
      %cst_205 = arith.constant dense<0.000000e+00> : vector<8x128xf32>
      %323 = tpu.matmul %320, %322, %cst_205 {dimension_numbers = #tpu.dot_dimension_numbers<[1], [0], [0], [1], [0, 0, 1, 1], [], []>} : vector<8x128xbf16>, vector<128x128xbf16>, vector<8x128xf32> -> vector<8x128xf32>
      %c2_206 = arith.constant 2 : index
      %c0_207 = arith.constant 0 : index
      %c0_208 = arith.constant 0 : index
      %324 = vector.load %arg10[%c2_206, %c0_207, %c0_208] : memref<4x1x128xf32, #tpu.memory_space<vmem>>, vector<1x1x128xf32>
      %325 = vector.shape_cast %324 : vector<1x1x128xf32> to vector<1x128xf32>
      %326 = vector.broadcast %325 : vector<1x128xf32> to vector<8x128xf32>
      %327 = arith.addf %323, %326 : vector<8x128xf32>
      %cst_209 = arith.constant 0.000000e+00 : f32
      %328 = vector.broadcast %cst_209 : f32 to vector<8x128xf32>
      %329 = arith.maximumf %327, %328 : vector<8x128xf32>
      %330 = arith.truncf %329 : vector<8x128xf32> to vector<8x128xbf16>
      %c3_210 = arith.constant 3 : index
      %c0_211 = arith.constant 0 : index
      %c0_212 = arith.constant 0 : index
      %331 = vector.load %arg9[%c3_210, %c0_211, %c0_212] : memref<4x128x128xbf16, #tpu.memory_space<vmem>>, vector<1x128x128xbf16>
      %332 = vector.shape_cast %331 : vector<1x128x128xbf16> to vector<128x128xbf16>
      %cst_213 = arith.constant dense<0.000000e+00> : vector<8x128xf32>
      %333 = tpu.matmul %330, %332, %cst_213 {dimension_numbers = #tpu.dot_dimension_numbers<[1], [0], [0], [1], [0, 0, 1, 1], [], []>} : vector<8x128xbf16>, vector<128x128xbf16>, vector<8x128xf32> -> vector<8x128xf32>
      %c3_214 = arith.constant 3 : index
      %c0_215 = arith.constant 0 : index
      %c0_216 = arith.constant 0 : index
      %334 = vector.load %arg10[%c3_214, %c0_215, %c0_216] : memref<4x1x128xf32, #tpu.memory_space<vmem>>, vector<1x1x128xf32>
      %335 = vector.shape_cast %334 : vector<1x1x128xf32> to vector<1x128xf32>
      %336 = vector.broadcast %335 : vector<1x128xf32> to vector<8x128xf32>
      %337 = arith.addf %333, %336 : vector<8x128xf32>
      %338 = arith.mulf %337, %337 : vector<8x128xf32>
      %cst_217 = arith.constant dense<0.000000e+00> : vector<8xf32>
      %339 = vector.multi_reduction <add>, %338, %cst_217 [1] : vector<8x128xf32> to vector<8xf32>
      %340 = vector.shape_cast %339 : vector<8xf32> to vector<8x1xf32>
      %cst_218 = arith.constant 1.000000e-24 : f32
      %341 = vector.broadcast %cst_218 : f32 to vector<8x1xf32>
      %342 = arith.maximumf %340, %341 : vector<8x1xf32>
      %343 = math.rsqrt %342 : vector<8x1xf32>
      %344 = vector.broadcast %343 : vector<8x1xf32> to vector<8x128xf32>
      %345 = arith.mulf %337, %344 : vector<8x128xf32>
      %346 = arith.truncf %345 : vector<8x128xf32> to vector<8x128xbf16>
      %c0_219 = arith.constant 0 : index
      %c0_220 = arith.constant 0 : index
      %347 = vector.load %arg16[%c0_219, %c0_220] : memref<8x128xbf16, #tpu.memory_space<vmem>>, vector<8x128xbf16>
      tpu.vector_store %arg16[%c0_219, %c0_220], %346 {strides = array<i32>} : memref<8x128xbf16, #tpu.memory_space<vmem>>, vector<8x128xbf16>,
      %348 = vector.extract_strided_slice %290 {offsets = [0, 0], sizes = [8, 32], strides = [1, 1]} : vector<8x128xf32> to vector<8x32xf32>
      %c0_221 = arith.constant 0 : index
      %c0_222 = arith.constant 0 : index
      %c0_223 = arith.constant 0 : index
      %349 = vector.load %arg17[%c0_221, %c0_222, %c0_223] : memref<4x8x32xf32, #tpu.memory_space<vmem>>, vector<1x8x32xf32>
      %350 = vector.shape_cast %349 : vector<1x8x32xf32> to vector<8x32xf32>
      %351 = vector.shape_cast %348 : vector<8x32xf32> to vector<1x8x32xf32>
      tpu.vector_store %arg17[%c0_221, %c0_222, %c0_223], %351 {strides = array<i32>} : memref<4x8x32xf32, #tpu.memory_space<vmem>>, vector<1x8x32xf32>,
      %352 = vector.extract_strided_slice %290 {offsets = [0, 32], sizes = [8, 32], strides = [1, 1]} : vector<8x128xf32> to vector<8x32xf32>
      %c1_224 = arith.constant 1 : index
      %c0_225 = arith.constant 0 : index
      %c0_226 = arith.constant 0 : index
      %353 = vector.load %arg17[%c1_224, %c0_225, %c0_226] : memref<4x8x32xf32, #tpu.memory_space<vmem>>, vector<1x8x32xf32>
      %354 = vector.shape_cast %353 : vector<1x8x32xf32> to vector<8x32xf32>
      %355 = vector.shape_cast %352 : vector<8x32xf32> to vector<1x8x32xf32>
      tpu.vector_store %arg17[%c1_224, %c0_225, %c0_226], %355 {strides = array<i32>} : memref<4x8x32xf32, #tpu.memory_space<vmem>>, vector<1x8x32xf32>,
      %356 = vector.extract_strided_slice %290 {offsets = [0, 64], sizes = [8, 32], strides = [1, 1]} : vector<8x128xf32> to vector<8x32xf32>
      %c2_227 = arith.constant 2 : index
      %c0_228 = arith.constant 0 : index
      %c0_229 = arith.constant 0 : index
      %357 = vector.load %arg17[%c2_227, %c0_228, %c0_229] : memref<4x8x32xf32, #tpu.memory_space<vmem>>, vector<1x8x32xf32>
      %358 = vector.shape_cast %357 : vector<1x8x32xf32> to vector<8x32xf32>
      %359 = vector.shape_cast %356 : vector<8x32xf32> to vector<1x8x32xf32>
      tpu.vector_store %arg17[%c2_227, %c0_228, %c0_229], %359 {strides = array<i32>} : memref<4x8x32xf32, #tpu.memory_space<vmem>>, vector<1x8x32xf32>,
      %360 = vector.extract_strided_slice %290 {offsets = [0, 96], sizes = [8, 32], strides = [1, 1]} : vector<8x128xf32> to vector<8x32xf32>
      %c3_230 = arith.constant 3 : index
      %c0_231 = arith.constant 0 : index
      %c0_232 = arith.constant 0 : index
      %361 = vector.load %arg17[%c3_230, %c0_231, %c0_232] : memref<4x8x32xf32, #tpu.memory_space<vmem>>, vector<1x8x32xf32>
      %362 = vector.shape_cast %361 : vector<1x8x32xf32> to vector<8x32xf32>
      %363 = vector.shape_cast %360 : vector<8x32xf32> to vector<1x8x32xf32>
      tpu.vector_store %arg17[%c3_230, %c0_231, %c0_232], %363 {strides = array<i32>} : memref<4x8x32xf32, #tpu.memory_space<vmem>>, vector<1x8x32xf32>,
      %cst_233 = arith.constant 0.000000e+00 : f32
      %364 = vector.broadcast %cst_233 : f32 to vector<8x128xf32>
      %c0_234 = arith.constant 0 : index
      %c0_235 = arith.constant 0 : index
      %365 = vector.load %arg18[%c0_234, %c0_235] : memref<8x128xf32, #tpu.memory_space<vmem>>, vector<8x128xf32>
      tpu.vector_store %arg18[%c0_234, %c0_235], %364 {strides = array<i32>} : memref<8x128xf32, #tpu.memory_space<vmem>>, vector<8x128xf32>,
    } else {
    }
    %c0 = arith.constant 0 : index
    %c0_1 = arith.constant 0 : index
    %3 = vector.load %arg16[%c0, %c0_1] : memref<8x128xbf16, #tpu.memory_space<vmem>>, vector<8x128xbf16>
    %4 = arith.index_cast %arg0 : i32 to index
    %c0_2 = arith.constant 0 : index
    %c0_3 = arith.constant 0 : index
    %5 = vector.load %arg17[%4, %c0_2, %c0_3] : memref<4x8x32xf32, #tpu.memory_space<vmem>>, vector<1x8x32xf32>
    %6 = vector.shape_cast %5 : vector<1x8x32xf32> to vector<8x32xf32>
    %c0_4 = arith.constant 0 : index
    %c0_5 = arith.constant 0 : index
    %7 = vector.load %arg18[%c0_4, %c0_5] : memref<8x128xf32, #tpu.memory_space<vmem>>, vector<8x128xf32>
    %c0_6 = arith.constant 0 : index
    %c0_7 = arith.constant 0 : index
    %c0_8 = arith.constant 0 : index
    %c0_9 = arith.constant 0 : index
    %8 = vector.load %arg11[%c0_6, %c0_7, %c0_8, %c0_9] : memref<1x32x128x128xbf16, #tpu.memory_space<vmem>>, vector<1x1x128x128xbf16>
    %9 = vector.shape_cast %8 : vector<1x1x128x128xbf16> to vector<128x128xbf16>
    %cst = arith.constant dense<0.000000e+00> : vector<8x128xf32>
    %10 = tpu.matmul %3, %9, %cst {dimension_numbers = #tpu.dot_dimension_numbers<[1], [0], [0], [1], [0, 0, 1, 1], [], []>} : vector<8x128xbf16>, vector<128x128xbf16>, vector<8x128xf32> -> vector<8x128xf32>
    %11 = vector.extract_strided_slice %6 {offsets = [0, 0], sizes = [8, 1], strides = [1, 1]} : vector<8x32xf32> to vector<8x1xf32>
    %12 = vector.broadcast %11 : vector<8x1xf32> to vector<8x128xf32>
    %13 = arith.mulf %12, %10 : vector<8x128xf32>
    %14 = arith.addf %7, %13 : vector<8x128xf32>
    %c0_10 = arith.constant 0 : index
    %c1 = arith.constant 1 : index
    %c0_11 = arith.constant 0 : index
    %c0_12 = arith.constant 0 : index
    %15 = vector.load %arg11[%c0_10, %c1, %c0_11, %c0_12] : memref<1x32x128x128xbf16, #tpu.memory_space<vmem>>, vector<1x1x128x128xbf16>
    %16 = vector.shape_cast %15 : vector<1x1x128x128xbf16> to vector<128x128xbf16>
    %cst_13 = arith.constant dense<0.000000e+00> : vector<8x128xf32>
    %17 = tpu.matmul %3, %16, %cst_13 {dimension_numbers = #tpu.dot_dimension_numbers<[1], [0], [0], [1], [0, 0, 1, 1], [], []>} : vector<8x128xbf16>, vector<128x128xbf16>, vector<8x128xf32> -> vector<8x128xf32>
    %18 = vector.extract_strided_slice %6 {offsets = [0, 1], sizes = [8, 1], strides = [1, 1]} : vector<8x32xf32> to vector<8x1xf32>
    %19 = vector.broadcast %18 : vector<8x1xf32> to vector<8x128xf32>
    %20 = arith.mulf %19, %17 : vector<8x128xf32>
    %21 = arith.addf %14, %20 : vector<8x128xf32>
    %c0_14 = arith.constant 0 : index
    %c2 = arith.constant 2 : index
    %c0_15 = arith.constant 0 : index
    %c0_16 = arith.constant 0 : index
    %22 = vector.load %arg11[%c0_14, %c2, %c0_15, %c0_16] : memref<1x32x128x128xbf16, #tpu.memory_space<vmem>>, vector<1x1x128x128xbf16>
    %23 = vector.shape_cast %22 : vector<1x1x128x128xbf16> to vector<128x128xbf16>
    %cst_17 = arith.constant dense<0.000000e+00> : vector<8x128xf32>
    %24 = tpu.matmul %3, %23, %cst_17 {dimension_numbers = #tpu.dot_dimension_numbers<[1], [0], [0], [1], [0, 0, 1, 1], [], []>} : vector<8x128xbf16>, vector<128x128xbf16>, vector<8x128xf32> -> vector<8x128xf32>
    %25 = vector.extract_strided_slice %6 {offsets = [0, 2], sizes = [8, 1], strides = [1, 1]} : vector<8x32xf32> to vector<8x1xf32>
    %26 = vector.broadcast %25 : vector<8x1xf32> to vector<8x128xf32>
    %27 = arith.mulf %26, %24 : vector<8x128xf32>
    %28 = arith.addf %21, %27 : vector<8x128xf32>
    %c0_18 = arith.constant 0 : index
    %c3 = arith.constant 3 : index
    %c0_19 = arith.constant 0 : index
    %c0_20 = arith.constant 0 : index
    %29 = vector.load %arg11[%c0_18, %c3, %c0_19, %c0_20] : memref<1x32x128x128xbf16, #tpu.memory_space<vmem>>, vector<1x1x128x128xbf16>
    %30 = vector.shape_cast %29 : vector<1x1x128x128xbf16> to vector<128x128xbf16>
    %cst_21 = arith.constant dense<0.000000e+00> : vector<8x128xf32>
    %31 = tpu.matmul %3, %30, %cst_21 {dimension_numbers = #tpu.dot_dimension_numbers<[1], [0], [0], [1], [0, 0, 1, 1], [], []>} : vector<8x128xbf16>, vector<128x128xbf16>, vector<8x128xf32> -> vector<8x128xf32>
    %32 = vector.extract_strided_slice %6 {offsets = [0, 3], sizes = [8, 1], strides = [1, 1]} : vector<8x32xf32> to vector<8x1xf32>
    %33 = vector.broadcast %32 : vector<8x1xf32> to vector<8x128xf32>
    %34 = arith.mulf %33, %31 : vector<8x128xf32>
    %35 = arith.addf %28, %34 : vector<8x128xf32>
    %c0_22 = arith.constant 0 : index
    %c4 = arith.constant 4 : index
    %c0_23 = arith.constant 0 : index
    %c0_24 = arith.constant 0 : index
    %36 = vector.load %arg11[%c0_22, %c4, %c0_23, %c0_24] : memref<1x32x128x128xbf16, #tpu.memory_space<vmem>>, vector<1x1x128x128xbf16>
    %37 = vector.shape_cast %36 : vector<1x1x128x128xbf16> to vector<128x128xbf16>
    %cst_25 = arith.constant dense<0.000000e+00> : vector<8x128xf32>
    %38 = tpu.matmul %3, %37, %cst_25 {dimension_numbers = #tpu.dot_dimension_numbers<[1], [0], [0], [1], [0, 0, 1, 1], [], []>} : vector<8x128xbf16>, vector<128x128xbf16>, vector<8x128xf32> -> vector<8x128xf32>
    %39 = vector.extract_strided_slice %6 {offsets = [0, 4], sizes = [8, 1], strides = [1, 1]} : vector<8x32xf32> to vector<8x1xf32>
    %40 = vector.broadcast %39 : vector<8x1xf32> to vector<8x128xf32>
    %41 = arith.mulf %40, %38 : vector<8x128xf32>
    %42 = arith.addf %35, %41 : vector<8x128xf32>
    %c0_26 = arith.constant 0 : index
    %c5 = arith.constant 5 : index
    %c0_27 = arith.constant 0 : index
    %c0_28 = arith.constant 0 : index
    %43 = vector.load %arg11[%c0_26, %c5, %c0_27, %c0_28] : memref<1x32x128x128xbf16, #tpu.memory_space<vmem>>, vector<1x1x128x128xbf16>
    %44 = vector.shape_cast %43 : vector<1x1x128x128xbf16> to vector<128x128xbf16>
    %cst_29 = arith.constant dense<0.000000e+00> : vector<8x128xf32>
    %45 = tpu.matmul %3, %44, %cst_29 {dimension_numbers = #tpu.dot_dimension_numbers<[1], [0], [0], [1], [0, 0, 1, 1], [], []>} : vector<8x128xbf16>, vector<128x128xbf16>, vector<8x128xf32> -> vector<8x128xf32>
    %46 = vector.extract_strided_slice %6 {offsets = [0, 5], sizes = [8, 1], strides = [1, 1]} : vector<8x32xf32> to vector<8x1xf32>
    %47 = vector.broadcast %46 : vector<8x1xf32> to vector<8x128xf32>
    %48 = arith.mulf %47, %45 : vector<8x128xf32>
    %49 = arith.addf %42, %48 : vector<8x128xf32>
    %c0_30 = arith.constant 0 : index
    %c6 = arith.constant 6 : index
    %c0_31 = arith.constant 0 : index
    %c0_32 = arith.constant 0 : index
    %50 = vector.load %arg11[%c0_30, %c6, %c0_31, %c0_32] : memref<1x32x128x128xbf16, #tpu.memory_space<vmem>>, vector<1x1x128x128xbf16>
    %51 = vector.shape_cast %50 : vector<1x1x128x128xbf16> to vector<128x128xbf16>
    %cst_33 = arith.constant dense<0.000000e+00> : vector<8x128xf32>
    %52 = tpu.matmul %3, %51, %cst_33 {dimension_numbers = #tpu.dot_dimension_numbers<[1], [0], [0], [1], [0, 0, 1, 1], [], []>} : vector<8x128xbf16>, vector<128x128xbf16>, vector<8x128xf32> -> vector<8x128xf32>
    %53 = vector.extract_strided_slice %6 {offsets = [0, 6], sizes = [8, 1], strides = [1, 1]} : vector<8x32xf32> to vector<8x1xf32>
    %54 = vector.broadcast %53 : vector<8x1xf32> to vector<8x128xf32>
    %55 = arith.mulf %54, %52 : vector<8x128xf32>
    %56 = arith.addf %49, %55 : vector<8x128xf32>
    %c0_34 = arith.constant 0 : index
    %c7 = arith.constant 7 : index
    %c0_35 = arith.constant 0 : index
    %c0_36 = arith.constant 0 : index
    %57 = vector.load %arg11[%c0_34, %c7, %c0_35, %c0_36] : memref<1x32x128x128xbf16, #tpu.memory_space<vmem>>, vector<1x1x128x128xbf16>
    %58 = vector.shape_cast %57 : vector<1x1x128x128xbf16> to vector<128x128xbf16>
    %cst_37 = arith.constant dense<0.000000e+00> : vector<8x128xf32>
    %59 = tpu.matmul %3, %58, %cst_37 {dimension_numbers = #tpu.dot_dimension_numbers<[1], [0], [0], [1], [0, 0, 1, 1], [], []>} : vector<8x128xbf16>, vector<128x128xbf16>, vector<8x128xf32> -> vector<8x128xf32>
    %60 = vector.extract_strided_slice %6 {offsets = [0, 7], sizes = [8, 1], strides = [1, 1]} : vector<8x32xf32> to vector<8x1xf32>
    %61 = vector.broadcast %60 : vector<8x1xf32> to vector<8x128xf32>
    %62 = arith.mulf %61, %59 : vector<8x128xf32>
    %63 = arith.addf %56, %62 : vector<8x128xf32>
    %c0_38 = arith.constant 0 : index
    %c8 = arith.constant 8 : index
    %c0_39 = arith.constant 0 : index
    %c0_40 = arith.constant 0 : index
    %64 = vector.load %arg11[%c0_38, %c8, %c0_39, %c0_40] : memref<1x32x128x128xbf16, #tpu.memory_space<vmem>>, vector<1x1x128x128xbf16>
    %65 = vector.shape_cast %64 : vector<1x1x128x128xbf16> to vector<128x128xbf16>
    %cst_41 = arith.constant dense<0.000000e+00> : vector<8x128xf32>
    %66 = tpu.matmul %3, %65, %cst_41 {dimension_numbers = #tpu.dot_dimension_numbers<[1], [0], [0], [1], [0, 0, 1, 1], [], []>} : vector<8x128xbf16>, vector<128x128xbf16>, vector<8x128xf32> -> vector<8x128xf32>
    %67 = vector.extract_strided_slice %6 {offsets = [0, 8], sizes = [8, 1], strides = [1, 1]} : vector<8x32xf32> to vector<8x1xf32>
    %68 = vector.broadcast %67 : vector<8x1xf32> to vector<8x128xf32>
    %69 = arith.mulf %68, %66 : vector<8x128xf32>
    %70 = arith.addf %63, %69 : vector<8x128xf32>
    %c0_42 = arith.constant 0 : index
    %c9 = arith.constant 9 : index
    %c0_43 = arith.constant 0 : index
    %c0_44 = arith.constant 0 : index
    %71 = vector.load %arg11[%c0_42, %c9, %c0_43, %c0_44] : memref<1x32x128x128xbf16, #tpu.memory_space<vmem>>, vector<1x1x128x128xbf16>
    %72 = vector.shape_cast %71 : vector<1x1x128x128xbf16> to vector<128x128xbf16>
    %cst_45 = arith.constant dense<0.000000e+00> : vector<8x128xf32>
    %73 = tpu.matmul %3, %72, %cst_45 {dimension_numbers = #tpu.dot_dimension_numbers<[1], [0], [0], [1], [0, 0, 1, 1], [], []>} : vector<8x128xbf16>, vector<128x128xbf16>, vector<8x128xf32> -> vector<8x128xf32>
    %74 = vector.extract_strided_slice %6 {offsets = [0, 9], sizes = [8, 1], strides = [1, 1]} : vector<8x32xf32> to vector<8x1xf32>
    %75 = vector.broadcast %74 : vector<8x1xf32> to vector<8x128xf32>
    %76 = arith.mulf %75, %73 : vector<8x128xf32>
    %77 = arith.addf %70, %76 : vector<8x128xf32>
    %c0_46 = arith.constant 0 : index
    %c10 = arith.constant 10 : index
    %c0_47 = arith.constant 0 : index
    %c0_48 = arith.constant 0 : index
    %78 = vector.load %arg11[%c0_46, %c10, %c0_47, %c0_48] : memref<1x32x128x128xbf16, #tpu.memory_space<vmem>>, vector<1x1x128x128xbf16>
    %79 = vector.shape_cast %78 : vector<1x1x128x128xbf16> to vector<128x128xbf16>
    %cst_49 = arith.constant dense<0.000000e+00> : vector<8x128xf32>
    %80 = tpu.matmul %3, %79, %cst_49 {dimension_numbers = #tpu.dot_dimension_numbers<[1], [0], [0], [1], [0, 0, 1, 1], [], []>} : vector<8x128xbf16>, vector<128x128xbf16>, vector<8x128xf32> -> vector<8x128xf32>
    %81 = vector.extract_strided_slice %6 {offsets = [0, 10], sizes = [8, 1], strides = [1, 1]} : vector<8x32xf32> to vector<8x1xf32>
    %82 = vector.broadcast %81 : vector<8x1xf32> to vector<8x128xf32>
    %83 = arith.mulf %82, %80 : vector<8x128xf32>
    %84 = arith.addf %77, %83 : vector<8x128xf32>
    %c0_50 = arith.constant 0 : index
    %c11 = arith.constant 11 : index
    %c0_51 = arith.constant 0 : index
    %c0_52 = arith.constant 0 : index
    %85 = vector.load %arg11[%c0_50, %c11, %c0_51, %c0_52] : memref<1x32x128x128xbf16, #tpu.memory_space<vmem>>, vector<1x1x128x128xbf16>
    %86 = vector.shape_cast %85 : vector<1x1x128x128xbf16> to vector<128x128xbf16>
    %cst_53 = arith.constant dense<0.000000e+00> : vector<8x128xf32>
    %87 = tpu.matmul %3, %86, %cst_53 {dimension_numbers = #tpu.dot_dimension_numbers<[1], [0], [0], [1], [0, 0, 1, 1], [], []>} : vector<8x128xbf16>, vector<128x128xbf16>, vector<8x128xf32> -> vector<8x128xf32>
    %88 = vector.extract_strided_slice %6 {offsets = [0, 11], sizes = [8, 1], strides = [1, 1]} : vector<8x32xf32> to vector<8x1xf32>
    %89 = vector.broadcast %88 : vector<8x1xf32> to vector<8x128xf32>
    %90 = arith.mulf %89, %87 : vector<8x128xf32>
    %91 = arith.addf %84, %90 : vector<8x128xf32>
    %c0_54 = arith.constant 0 : index
    %c12 = arith.constant 12 : index
    %c0_55 = arith.constant 0 : index
    %c0_56 = arith.constant 0 : index
    %92 = vector.load %arg11[%c0_54, %c12, %c0_55, %c0_56] : memref<1x32x128x128xbf16, #tpu.memory_space<vmem>>, vector<1x1x128x128xbf16>
    %93 = vector.shape_cast %92 : vector<1x1x128x128xbf16> to vector<128x128xbf16>
    %cst_57 = arith.constant dense<0.000000e+00> : vector<8x128xf32>
    %94 = tpu.matmul %3, %93, %cst_57 {dimension_numbers = #tpu.dot_dimension_numbers<[1], [0], [0], [1], [0, 0, 1, 1], [], []>} : vector<8x128xbf16>, vector<128x128xbf16>, vector<8x128xf32> -> vector<8x128xf32>
    %95 = vector.extract_strided_slice %6 {offsets = [0, 12], sizes = [8, 1], strides = [1, 1]} : vector<8x32xf32> to vector<8x1xf32>
    %96 = vector.broadcast %95 : vector<8x1xf32> to vector<8x128xf32>
    %97 = arith.mulf %96, %94 : vector<8x128xf32>
    %98 = arith.addf %91, %97 : vector<8x128xf32>
    %c0_58 = arith.constant 0 : index
    %c13 = arith.constant 13 : index
    %c0_59 = arith.constant 0 : index
    %c0_60 = arith.constant 0 : index
    %99 = vector.load %arg11[%c0_58, %c13, %c0_59, %c0_60] : memref<1x32x128x128xbf16, #tpu.memory_space<vmem>>, vector<1x1x128x128xbf16>
    %100 = vector.shape_cast %99 : vector<1x1x128x128xbf16> to vector<128x128xbf16>
    %cst_61 = arith.constant dense<0.000000e+00> : vector<8x128xf32>
    %101 = tpu.matmul %3, %100, %cst_61 {dimension_numbers = #tpu.dot_dimension_numbers<[1], [0], [0], [1], [0, 0, 1, 1], [], []>} : vector<8x128xbf16>, vector<128x128xbf16>, vector<8x128xf32> -> vector<8x128xf32>
    %102 = vector.extract_strided_slice %6 {offsets = [0, 13], sizes = [8, 1], strides = [1, 1]} : vector<8x32xf32> to vector<8x1xf32>
    %103 = vector.broadcast %102 : vector<8x1xf32> to vector<8x128xf32>
    %104 = arith.mulf %103, %101 : vector<8x128xf32>
    %105 = arith.addf %98, %104 : vector<8x128xf32>
    %c0_62 = arith.constant 0 : index
    %c14 = arith.constant 14 : index
    %c0_63 = arith.constant 0 : index
    %c0_64 = arith.constant 0 : index
    %106 = vector.load %arg11[%c0_62, %c14, %c0_63, %c0_64] : memref<1x32x128x128xbf16, #tpu.memory_space<vmem>>, vector<1x1x128x128xbf16>
    %107 = vector.shape_cast %106 : vector<1x1x128x128xbf16> to vector<128x128xbf16>
    %cst_65 = arith.constant dense<0.000000e+00> : vector<8x128xf32>
    %108 = tpu.matmul %3, %107, %cst_65 {dimension_numbers = #tpu.dot_dimension_numbers<[1], [0], [0], [1], [0, 0, 1, 1], [], []>} : vector<8x128xbf16>, vector<128x128xbf16>, vector<8x128xf32> -> vector<8x128xf32>
    %109 = vector.extract_strided_slice %6 {offsets = [0, 14], sizes = [8, 1], strides = [1, 1]} : vector<8x32xf32> to vector<8x1xf32>
    %110 = vector.broadcast %109 : vector<8x1xf32> to vector<8x128xf32>
    %111 = arith.mulf %110, %108 : vector<8x128xf32>
    %112 = arith.addf %105, %111 : vector<8x128xf32>
    %c0_66 = arith.constant 0 : index
    %c15 = arith.constant 15 : index
    %c0_67 = arith.constant 0 : index
    %c0_68 = arith.constant 0 : index
    %113 = vector.load %arg11[%c0_66, %c15, %c0_67, %c0_68] : memref<1x32x128x128xbf16, #tpu.memory_space<vmem>>, vector<1x1x128x128xbf16>
    %114 = vector.shape_cast %113 : vector<1x1x128x128xbf16> to vector<128x128xbf16>
    %cst_69 = arith.constant dense<0.000000e+00> : vector<8x128xf32>
    %115 = tpu.matmul %3, %114, %cst_69 {dimension_numbers = #tpu.dot_dimension_numbers<[1], [0], [0], [1], [0, 0, 1, 1], [], []>} : vector<8x128xbf16>, vector<128x128xbf16>, vector<8x128xf32> -> vector<8x128xf32>
    %116 = vector.extract_strided_slice %6 {offsets = [0, 15], sizes = [8, 1], strides = [1, 1]} : vector<8x32xf32> to vector<8x1xf32>
    %117 = vector.broadcast %116 : vector<8x1xf32> to vector<8x128xf32>
    %118 = arith.mulf %117, %115 : vector<8x128xf32>
    %119 = arith.addf %112, %118 : vector<8x128xf32>
    %c0_70 = arith.constant 0 : index
    %c16 = arith.constant 16 : index
    %c0_71 = arith.constant 0 : index
    %c0_72 = arith.constant 0 : index
    %120 = vector.load %arg11[%c0_70, %c16, %c0_71, %c0_72] : memref<1x32x128x128xbf16, #tpu.memory_space<vmem>>, vector<1x1x128x128xbf16>
    %121 = vector.shape_cast %120 : vector<1x1x128x128xbf16> to vector<128x128xbf16>
    %cst_73 = arith.constant dense<0.000000e+00> : vector<8x128xf32>
    %122 = tpu.matmul %3, %121, %cst_73 {dimension_numbers = #tpu.dot_dimension_numbers<[1], [0], [0], [1], [0, 0, 1, 1], [], []>} : vector<8x128xbf16>, vector<128x128xbf16>, vector<8x128xf32> -> vector<8x128xf32>
    %123 = vector.extract_strided_slice %6 {offsets = [0, 16], sizes = [8, 1], strides = [1, 1]} : vector<8x32xf32> to vector<8x1xf32>
    %124 = vector.broadcast %123 : vector<8x1xf32> to vector<8x128xf32>
    %125 = arith.mulf %124, %122 : vector<8x128xf32>
    %126 = arith.addf %119, %125 : vector<8x128xf32>
    %c0_74 = arith.constant 0 : index
    %c17 = arith.constant 17 : index
    %c0_75 = arith.constant 0 : index
    %c0_76 = arith.constant 0 : index
    %127 = vector.load %arg11[%c0_74, %c17, %c0_75, %c0_76] : memref<1x32x128x128xbf16, #tpu.memory_space<vmem>>, vector<1x1x128x128xbf16>
    %128 = vector.shape_cast %127 : vector<1x1x128x128xbf16> to vector<128x128xbf16>
    %cst_77 = arith.constant dense<0.000000e+00> : vector<8x128xf32>
    %129 = tpu.matmul %3, %128, %cst_77 {dimension_numbers = #tpu.dot_dimension_numbers<[1], [0], [0], [1], [0, 0, 1, 1], [], []>} : vector<8x128xbf16>, vector<128x128xbf16>, vector<8x128xf32> -> vector<8x128xf32>
    %130 = vector.extract_strided_slice %6 {offsets = [0, 17], sizes = [8, 1], strides = [1, 1]} : vector<8x32xf32> to vector<8x1xf32>
    %131 = vector.broadcast %130 : vector<8x1xf32> to vector<8x128xf32>
    %132 = arith.mulf %131, %129 : vector<8x128xf32>
    %133 = arith.addf %126, %132 : vector<8x128xf32>
    %c0_78 = arith.constant 0 : index
    %c18 = arith.constant 18 : index
    %c0_79 = arith.constant 0 : index
    %c0_80 = arith.constant 0 : index
    %134 = vector.load %arg11[%c0_78, %c18, %c0_79, %c0_80] : memref<1x32x128x128xbf16, #tpu.memory_space<vmem>>, vector<1x1x128x128xbf16>
    %135 = vector.shape_cast %134 : vector<1x1x128x128xbf16> to vector<128x128xbf16>
    %cst_81 = arith.constant dense<0.000000e+00> : vector<8x128xf32>
    %136 = tpu.matmul %3, %135, %cst_81 {dimension_numbers = #tpu.dot_dimension_numbers<[1], [0], [0], [1], [0, 0, 1, 1], [], []>} : vector<8x128xbf16>, vector<128x128xbf16>, vector<8x128xf32> -> vector<8x128xf32>
    %137 = vector.extract_strided_slice %6 {offsets = [0, 18], sizes = [8, 1], strides = [1, 1]} : vector<8x32xf32> to vector<8x1xf32>
    %138 = vector.broadcast %137 : vector<8x1xf32> to vector<8x128xf32>
    %139 = arith.mulf %138, %136 : vector<8x128xf32>
    %140 = arith.addf %133, %139 : vector<8x128xf32>
    %c0_82 = arith.constant 0 : index
    %c19 = arith.constant 19 : index
    %c0_83 = arith.constant 0 : index
    %c0_84 = arith.constant 0 : index
    %141 = vector.load %arg11[%c0_82, %c19, %c0_83, %c0_84] : memref<1x32x128x128xbf16, #tpu.memory_space<vmem>>, vector<1x1x128x128xbf16>
    %142 = vector.shape_cast %141 : vector<1x1x128x128xbf16> to vector<128x128xbf16>
    %cst_85 = arith.constant dense<0.000000e+00> : vector<8x128xf32>
    %143 = tpu.matmul %3, %142, %cst_85 {dimension_numbers = #tpu.dot_dimension_numbers<[1], [0], [0], [1], [0, 0, 1, 1], [], []>} : vector<8x128xbf16>, vector<128x128xbf16>, vector<8x128xf32> -> vector<8x128xf32>
    %144 = vector.extract_strided_slice %6 {offsets = [0, 19], sizes = [8, 1], strides = [1, 1]} : vector<8x32xf32> to vector<8x1xf32>
    %145 = vector.broadcast %144 : vector<8x1xf32> to vector<8x128xf32>
    %146 = arith.mulf %145, %143 : vector<8x128xf32>
    %147 = arith.addf %140, %146 : vector<8x128xf32>
    %c0_86 = arith.constant 0 : index
    %c20 = arith.constant 20 : index
    %c0_87 = arith.constant 0 : index
    %c0_88 = arith.constant 0 : index
    %148 = vector.load %arg11[%c0_86, %c20, %c0_87, %c0_88] : memref<1x32x128x128xbf16, #tpu.memory_space<vmem>>, vector<1x1x128x128xbf16>
    %149 = vector.shape_cast %148 : vector<1x1x128x128xbf16> to vector<128x128xbf16>
    %cst_89 = arith.constant dense<0.000000e+00> : vector<8x128xf32>
    %150 = tpu.matmul %3, %149, %cst_89 {dimension_numbers = #tpu.dot_dimension_numbers<[1], [0], [0], [1], [0, 0, 1, 1], [], []>} : vector<8x128xbf16>, vector<128x128xbf16>, vector<8x128xf32> -> vector<8x128xf32>
    %151 = vector.extract_strided_slice %6 {offsets = [0, 20], sizes = [8, 1], strides = [1, 1]} : vector<8x32xf32> to vector<8x1xf32>
    %152 = vector.broadcast %151 : vector<8x1xf32> to vector<8x128xf32>
    %153 = arith.mulf %152, %150 : vector<8x128xf32>
    %154 = arith.addf %147, %153 : vector<8x128xf32>
    %c0_90 = arith.constant 0 : index
    %c21 = arith.constant 21 : index
    %c0_91 = arith.constant 0 : index
    %c0_92 = arith.constant 0 : index
    %155 = vector.load %arg11[%c0_90, %c21, %c0_91, %c0_92] : memref<1x32x128x128xbf16, #tpu.memory_space<vmem>>, vector<1x1x128x128xbf16>
    %156 = vector.shape_cast %155 : vector<1x1x128x128xbf16> to vector<128x128xbf16>
    %cst_93 = arith.constant dense<0.000000e+00> : vector<8x128xf32>
    %157 = tpu.matmul %3, %156, %cst_93 {dimension_numbers = #tpu.dot_dimension_numbers<[1], [0], [0], [1], [0, 0, 1, 1], [], []>} : vector<8x128xbf16>, vector<128x128xbf16>, vector<8x128xf32> -> vector<8x128xf32>
    %158 = vector.extract_strided_slice %6 {offsets = [0, 21], sizes = [8, 1], strides = [1, 1]} : vector<8x32xf32> to vector<8x1xf32>
    %159 = vector.broadcast %158 : vector<8x1xf32> to vector<8x128xf32>
    %160 = arith.mulf %159, %157 : vector<8x128xf32>
    %161 = arith.addf %154, %160 : vector<8x128xf32>
    %c0_94 = arith.constant 0 : index
    %c22 = arith.constant 22 : index
    %c0_95 = arith.constant 0 : index
    %c0_96 = arith.constant 0 : index
    %162 = vector.load %arg11[%c0_94, %c22, %c0_95, %c0_96] : memref<1x32x128x128xbf16, #tpu.memory_space<vmem>>, vector<1x1x128x128xbf16>
    %163 = vector.shape_cast %162 : vector<1x1x128x128xbf16> to vector<128x128xbf16>
    %cst_97 = arith.constant dense<0.000000e+00> : vector<8x128xf32>
    %164 = tpu.matmul %3, %163, %cst_97 {dimension_numbers = #tpu.dot_dimension_numbers<[1], [0], [0], [1], [0, 0, 1, 1], [], []>} : vector<8x128xbf16>, vector<128x128xbf16>, vector<8x128xf32> -> vector<8x128xf32>
    %165 = vector.extract_strided_slice %6 {offsets = [0, 22], sizes = [8, 1], strides = [1, 1]} : vector<8x32xf32> to vector<8x1xf32>
    %166 = vector.broadcast %165 : vector<8x1xf32> to vector<8x128xf32>
    %167 = arith.mulf %166, %164 : vector<8x128xf32>
    %168 = arith.addf %161, %167 : vector<8x128xf32>
    %c0_98 = arith.constant 0 : index
    %c23 = arith.constant 23 : index
    %c0_99 = arith.constant 0 : index
    %c0_100 = arith.constant 0 : index
    %169 = vector.load %arg11[%c0_98, %c23, %c0_99, %c0_100] : memref<1x32x128x128xbf16, #tpu.memory_space<vmem>>, vector<1x1x128x128xbf16>
    %170 = vector.shape_cast %169 : vector<1x1x128x128xbf16> to vector<128x128xbf16>
    %cst_101 = arith.constant dense<0.000000e+00> : vector<8x128xf32>
    %171 = tpu.matmul %3, %170, %cst_101 {dimension_numbers = #tpu.dot_dimension_numbers<[1], [0], [0], [1], [0, 0, 1, 1], [], []>} : vector<8x128xbf16>, vector<128x128xbf16>, vector<8x128xf32> -> vector<8x128xf32>
    %172 = vector.extract_strided_slice %6 {offsets = [0, 23], sizes = [8, 1], strides = [1, 1]} : vector<8x32xf32> to vector<8x1xf32>
    %173 = vector.broadcast %172 : vector<8x1xf32> to vector<8x128xf32>
    %174 = arith.mulf %173, %171 : vector<8x128xf32>
    %175 = arith.addf %168, %174 : vector<8x128xf32>
    %c0_102 = arith.constant 0 : index
    %c24 = arith.constant 24 : index
    %c0_103 = arith.constant 0 : index
    %c0_104 = arith.constant 0 : index
    %176 = vector.load %arg11[%c0_102, %c24, %c0_103, %c0_104] : memref<1x32x128x128xbf16, #tpu.memory_space<vmem>>, vector<1x1x128x128xbf16>
    %177 = vector.shape_cast %176 : vector<1x1x128x128xbf16> to vector<128x128xbf16>
    %cst_105 = arith.constant dense<0.000000e+00> : vector<8x128xf32>
    %178 = tpu.matmul %3, %177, %cst_105 {dimension_numbers = #tpu.dot_dimension_numbers<[1], [0], [0], [1], [0, 0, 1, 1], [], []>} : vector<8x128xbf16>, vector<128x128xbf16>, vector<8x128xf32> -> vector<8x128xf32>
    %179 = vector.extract_strided_slice %6 {offsets = [0, 24], sizes = [8, 1], strides = [1, 1]} : vector<8x32xf32> to vector<8x1xf32>
    %180 = vector.broadcast %179 : vector<8x1xf32> to vector<8x128xf32>
    %181 = arith.mulf %180, %178 : vector<8x128xf32>
    %182 = arith.addf %175, %181 : vector<8x128xf32>
    %c0_106 = arith.constant 0 : index
    %c25 = arith.constant 25 : index
    %c0_107 = arith.constant 0 : index
    %c0_108 = arith.constant 0 : index
    %183 = vector.load %arg11[%c0_106, %c25, %c0_107, %c0_108] : memref<1x32x128x128xbf16, #tpu.memory_space<vmem>>, vector<1x1x128x128xbf16>
    %184 = vector.shape_cast %183 : vector<1x1x128x128xbf16> to vector<128x128xbf16>
    %cst_109 = arith.constant dense<0.000000e+00> : vector<8x128xf32>
    %185 = tpu.matmul %3, %184, %cst_109 {dimension_numbers = #tpu.dot_dimension_numbers<[1], [0], [0], [1], [0, 0, 1, 1], [], []>} : vector<8x128xbf16>, vector<128x128xbf16>, vector<8x128xf32> -> vector<8x128xf32>
    %186 = vector.extract_strided_slice %6 {offsets = [0, 25], sizes = [8, 1], strides = [1, 1]} : vector<8x32xf32> to vector<8x1xf32>
    %187 = vector.broadcast %186 : vector<8x1xf32> to vector<8x128xf32>
    %188 = arith.mulf %187, %185 : vector<8x128xf32>
    %189 = arith.addf %182, %188 : vector<8x128xf32>
    %c0_110 = arith.constant 0 : index
    %c26 = arith.constant 26 : index
    %c0_111 = arith.constant 0 : index
    %c0_112 = arith.constant 0 : index
    %190 = vector.load %arg11[%c0_110, %c26, %c0_111, %c0_112] : memref<1x32x128x128xbf16, #tpu.memory_space<vmem>>, vector<1x1x128x128xbf16>
    %191 = vector.shape_cast %190 : vector<1x1x128x128xbf16> to vector<128x128xbf16>
    %cst_113 = arith.constant dense<0.000000e+00> : vector<8x128xf32>
    %192 = tpu.matmul %3, %191, %cst_113 {dimension_numbers = #tpu.dot_dimension_numbers<[1], [0], [0], [1], [0, 0, 1, 1], [], []>} : vector<8x128xbf16>, vector<128x128xbf16>, vector<8x128xf32> -> vector<8x128xf32>
    %193 = vector.extract_strided_slice %6 {offsets = [0, 26], sizes = [8, 1], strides = [1, 1]} : vector<8x32xf32> to vector<8x1xf32>
    %194 = vector.broadcast %193 : vector<8x1xf32> to vector<8x128xf32>
    %195 = arith.mulf %194, %192 : vector<8x128xf32>
    %196 = arith.addf %189, %195 : vector<8x128xf32>
    %c0_114 = arith.constant 0 : index
    %c27 = arith.constant 27 : index
    %c0_115 = arith.constant 0 : index
    %c0_116 = arith.constant 0 : index
    %197 = vector.load %arg11[%c0_114, %c27, %c0_115, %c0_116] : memref<1x32x128x128xbf16, #tpu.memory_space<vmem>>, vector<1x1x128x128xbf16>
    %198 = vector.shape_cast %197 : vector<1x1x128x128xbf16> to vector<128x128xbf16>
    %cst_117 = arith.constant dense<0.000000e+00> : vector<8x128xf32>
    %199 = tpu.matmul %3, %198, %cst_117 {dimension_numbers = #tpu.dot_dimension_numbers<[1], [0], [0], [1], [0, 0, 1, 1], [], []>} : vector<8x128xbf16>, vector<128x128xbf16>, vector<8x128xf32> -> vector<8x128xf32>
    %200 = vector.extract_strided_slice %6 {offsets = [0, 27], sizes = [8, 1], strides = [1, 1]} : vector<8x32xf32> to vector<8x1xf32>
    %201 = vector.broadcast %200 : vector<8x1xf32> to vector<8x128xf32>
    %202 = arith.mulf %201, %199 : vector<8x128xf32>
    %203 = arith.addf %196, %202 : vector<8x128xf32>
    %c0_118 = arith.constant 0 : index
    %c28 = arith.constant 28 : index
    %c0_119 = arith.constant 0 : index
    %c0_120 = arith.constant 0 : index
    %204 = vector.load %arg11[%c0_118, %c28, %c0_119, %c0_120] : memref<1x32x128x128xbf16, #tpu.memory_space<vmem>>, vector<1x1x128x128xbf16>
    %205 = vector.shape_cast %204 : vector<1x1x128x128xbf16> to vector<128x128xbf16>
    %cst_121 = arith.constant dense<0.000000e+00> : vector<8x128xf32>
    %206 = tpu.matmul %3, %205, %cst_121 {dimension_numbers = #tpu.dot_dimension_numbers<[1], [0], [0], [1], [0, 0, 1, 1], [], []>} : vector<8x128xbf16>, vector<128x128xbf16>, vector<8x128xf32> -> vector<8x128xf32>
    %207 = vector.extract_strided_slice %6 {offsets = [0, 28], sizes = [8, 1], strides = [1, 1]} : vector<8x32xf32> to vector<8x1xf32>
    %208 = vector.broadcast %207 : vector<8x1xf32> to vector<8x128xf32>
    %209 = arith.mulf %208, %206 : vector<8x128xf32>
    %210 = arith.addf %203, %209 : vector<8x128xf32>
    %c0_122 = arith.constant 0 : index
    %c29 = arith.constant 29 : index
    %c0_123 = arith.constant 0 : index
    %c0_124 = arith.constant 0 : index
    %211 = vector.load %arg11[%c0_122, %c29, %c0_123, %c0_124] : memref<1x32x128x128xbf16, #tpu.memory_space<vmem>>, vector<1x1x128x128xbf16>
    %212 = vector.shape_cast %211 : vector<1x1x128x128xbf16> to vector<128x128xbf16>
    %cst_125 = arith.constant dense<0.000000e+00> : vector<8x128xf32>
    %213 = tpu.matmul %3, %212, %cst_125 {dimension_numbers = #tpu.dot_dimension_numbers<[1], [0], [0], [1], [0, 0, 1, 1], [], []>} : vector<8x128xbf16>, vector<128x128xbf16>, vector<8x128xf32> -> vector<8x128xf32>
    %214 = vector.extract_strided_slice %6 {offsets = [0, 29], sizes = [8, 1], strides = [1, 1]} : vector<8x32xf32> to vector<8x1xf32>
    %215 = vector.broadcast %214 : vector<8x1xf32> to vector<8x128xf32>
    %216 = arith.mulf %215, %213 : vector<8x128xf32>
    %217 = arith.addf %210, %216 : vector<8x128xf32>
    %c0_126 = arith.constant 0 : index
    %c30 = arith.constant 30 : index
    %c0_127 = arith.constant 0 : index
    %c0_128 = arith.constant 0 : index
    %218 = vector.load %arg11[%c0_126, %c30, %c0_127, %c0_128] : memref<1x32x128x128xbf16, #tpu.memory_space<vmem>>, vector<1x1x128x128xbf16>
    %219 = vector.shape_cast %218 : vector<1x1x128x128xbf16> to vector<128x128xbf16>
    %cst_129 = arith.constant dense<0.000000e+00> : vector<8x128xf32>
    %220 = tpu.matmul %3, %219, %cst_129 {dimension_numbers = #tpu.dot_dimension_numbers<[1], [0], [0], [1], [0, 0, 1, 1], [], []>} : vector<8x128xbf16>, vector<128x128xbf16>, vector<8x128xf32> -> vector<8x128xf32>
    %221 = vector.extract_strided_slice %6 {offsets = [0, 30], sizes = [8, 1], strides = [1, 1]} : vector<8x32xf32> to vector<8x1xf32>
    %222 = vector.broadcast %221 : vector<8x1xf32> to vector<8x128xf32>
    %223 = arith.mulf %222, %220 : vector<8x128xf32>
    %224 = arith.addf %217, %223 : vector<8x128xf32>
    %c0_130 = arith.constant 0 : index
    %c31 = arith.constant 31 : index
    %c0_131 = arith.constant 0 : index
    %c0_132 = arith.constant 0 : index
    %225 = vector.load %arg11[%c0_130, %c31, %c0_131, %c0_132] : memref<1x32x128x128xbf16, #tpu.memory_space<vmem>>, vector<1x1x128x128xbf16>
    %226 = vector.shape_cast %225 : vector<1x1x128x128xbf16> to vector<128x128xbf16>
    %cst_133 = arith.constant dense<0.000000e+00> : vector<8x128xf32>
    %227 = tpu.matmul %3, %226, %cst_133 {dimension_numbers = #tpu.dot_dimension_numbers<[1], [0], [0], [1], [0, 0, 1, 1], [], []>} : vector<8x128xbf16>, vector<128x128xbf16>, vector<8x128xf32> -> vector<8x128xf32>
    %228 = vector.extract_strided_slice %6 {offsets = [0, 31], sizes = [8, 1], strides = [1, 1]} : vector<8x32xf32> to vector<8x1xf32>
    %229 = vector.broadcast %228 : vector<8x1xf32> to vector<8x128xf32>
    %230 = arith.mulf %229, %227 : vector<8x128xf32>
    %231 = arith.addf %224, %230 : vector<8x128xf32>
    %c0_134 = arith.constant 0 : index
    %c0_135 = arith.constant 0 : index
    %232 = vector.load %arg18[%c0_134, %c0_135] : memref<8x128xf32, #tpu.memory_space<vmem>>, vector<8x128xf32>
    tpu.vector_store %arg18[%c0_134, %c0_135], %231 {strides = array<i32>} : memref<8x128xf32, #tpu.memory_space<vmem>>, vector<8x128xf32>,
    %c3_i32 = arith.constant 3 : i32
    %233 = arith.cmpi eq, %arg0, %c3_i32 : i32
    %234 = arith.extui %233 : i1 to i32
    %c0_i32_136 = arith.constant 0 : i32
    %235 = arith.cmpi ne, %234, %c0_i32_136 : i32
    scf.if %235 {
      %c0_137 = arith.constant 0 : index
      %c0_138 = arith.constant 0 : index
      %236 = vector.load %arg18[%c0_137, %c0_138] : memref<8x128xf32, #tpu.memory_space<vmem>>, vector<8x128xf32>
      %c0_139 = arith.constant 0 : index
      %c0_140 = arith.constant 0 : index
      %237 = vector.load %arg12[%c0_139, %c0_140] : memref<1x128xf32, #tpu.memory_space<vmem>>, vector<1x128xf32>
      %238 = vector.broadcast %237 : vector<1x128xf32> to vector<8x128xf32>
      %239 = arith.addf %236, %238 : vector<8x128xf32>
      %cst_141 = arith.constant 0.000000e+00 : f32
      %240 = vector.broadcast %cst_141 : f32 to vector<8x128xf32>
      %241 = arith.maximumf %239, %240 : vector<8x128xf32>
      %c0_142 = arith.constant 0 : index
      %c0_143 = arith.constant 0 : index
      %242 = vector.load %arg13[%c0_142, %c0_143] : memref<1x128xf32, #tpu.memory_space<vmem>>, vector<1x128xf32>
      %243 = vector.broadcast %242 : vector<1x128xf32> to vector<8x128xf32>
      %244 = arith.mulf %241, %243 : vector<8x128xf32>
      %cst_144 = arith.constant dense<0.000000e+00> : vector<8xf32>
      %245 = vector.multi_reduction <add>, %244, %cst_144 [1] : vector<8x128xf32> to vector<8xf32>
      %246 = vector.shape_cast %245 : vector<8xf32> to vector<8x1xf32>
      %c0_145 = arith.constant 0 : index
      %c0_146 = arith.constant 0 : index
      %247 = vector.load %arg14[%c0_145, %c0_146] : memref<1x1xf32, #tpu.memory_space<vmem>>, vector<1x1xf32>
      %248 = vector.broadcast %247 : vector<1x1xf32> to vector<8x1xf32>
      %249 = arith.addf %246, %248 : vector<8x1xf32>
      %250 = arith.negf %249 : vector<8x1xf32>
      %251 = math.exp %250 : vector<8x1xf32>
      %cst_147 = arith.constant 1.000000e+00 : f32
      %252 = vector.broadcast %cst_147 : f32 to vector<8x1xf32>
      %253 = arith.addf %252, %251 : vector<8x1xf32>
      %254 = arith.divf %252, %253 : vector<8x1xf32>
      %c0_148 = arith.constant 0 : index
      %c0_149 = arith.constant 0 : index
      %255 = vector.load %arg15[%c0_148, %c0_149] : memref<8x1xf32, #tpu.memory_space<vmem>>, vector<8x1xf32>
      tpu.vector_store %arg15[%c0_148, %c0_149], %254 {strides = array<i32>} : memref<8x1xf32, #tpu.memory_space<vmem>>, vector<8x1xf32>,
    } else {
    }
    return
  }
  func.func @transform_0(%arg0: i32) -> (i32, i32) {
    %c0_i32 = arith.constant 0 : i32
    %c0_i32_0 = arith.constant 0 : i32
    %c0_i32_1 = arith.constant 0 : i32
    return %c0_i32, %c0_i32_0 : i32, i32
  }
  func.func @transform_1(%arg0: i32) -> (i32, i32) {
    %c0_i32 = arith.constant 0 : i32
    %c0_i32_0 = arith.constant 0 : i32
    %c0_i32_1 = arith.constant 0 : i32
    return %c0_i32, %c0_i32_0 : i32, i32
  }
  func.func @transform_2(%arg0: i32) -> (i32, i32) {
    %c0_i32 = arith.constant 0 : i32
    %c0_i32_0 = arith.constant 0 : i32
    %c0_i32_1 = arith.constant 0 : i32
    return %c0_i32, %c0_i32_0 : i32, i32
  }
  func.func @transform_3(%arg0: i32) -> (i32, i32) {
    %c0_i32 = arith.constant 0 : i32
    %c0_i32_0 = arith.constant 0 : i32
    %c0_i32_1 = arith.constant 0 : i32
    return %c0_i32, %c0_i32_0 : i32, i32
  }
  func.func @transform_4(%arg0: i32) -> (i32, i32, i32) {
    %c0_i32 = arith.constant 0 : i32
    %c0_i32_0 = arith.constant 0 : i32
    %c0_i32_1 = arith.constant 0 : i32
    %c0_i32_2 = arith.constant 0 : i32
    return %c0_i32, %c0_i32_0, %c0_i32_1 : i32, i32, i32
  }
  func.func @transform_5(%arg0: i32) -> (i32, i32, i32) {
    %c0_i32 = arith.constant 0 : i32
    %c0_i32_0 = arith.constant 0 : i32
    %c0_i32_1 = arith.constant 0 : i32
    %c0_i32_2 = arith.constant 0 : i32
    return %c0_i32, %c0_i32_0, %c0_i32_1 : i32, i32, i32
  }
  func.func @transform_6(%arg0: i32) -> (i32, i32) {
    %c0_i32 = arith.constant 0 : i32
    %c0_i32_0 = arith.constant 0 : i32
    %c0_i32_1 = arith.constant 0 : i32
    return %c0_i32, %c0_i32_0 : i32, i32
  }
  func.func @transform_7(%arg0: i32) -> (i32, i32) {
    %c0_i32 = arith.constant 0 : i32
    %c0_i32_0 = arith.constant 0 : i32
    %c0_i32_1 = arith.constant 0 : i32
    return %c0_i32, %c0_i32_0 : i32, i32
  }
  func.func @transform_8(%arg0: i32) -> (i32, i32, i32) {
    %c0_i32 = arith.constant 0 : i32
    %c0_i32_0 = arith.constant 0 : i32
    %c0_i32_1 = arith.constant 0 : i32
    %c0_i32_2 = arith.constant 0 : i32
    return %c0_i32, %c0_i32_0, %c0_i32_1 : i32, i32, i32
  }
  func.func @transform_9(%arg0: i32) -> (i32, i32, i32) {
    %c0_i32 = arith.constant 0 : i32
    %c0_i32_0 = arith.constant 0 : i32
    %c0_i32_1 = arith.constant 0 : i32
    %c0_i32_2 = arith.constant 0 : i32
    return %c0_i32, %c0_i32_0, %c0_i32_1 : i32, i32, i32
  }
  func.func @transform_10(%arg0: i32) -> (i32, i32, i32, i32) {
    %c0_i32 = arith.constant 0 : i32
    %c0_i32_0 = arith.constant 0 : i32
    %c0_i32_1 = arith.constant 0 : i32
    %c0_i32_2 = arith.constant 0 : i32
    return %arg0, %c0_i32, %c0_i32_0, %c0_i32_1 : i32, i32, i32, i32
  }
  func.func @transform_11(%arg0: i32) -> (i32, i32) {
    %c0_i32 = arith.constant 0 : i32
    %c0_i32_0 = arith.constant 0 : i32
    %c0_i32_1 = arith.constant 0 : i32
    return %c0_i32, %c0_i32_0 : i32, i32
  }
  func.func @transform_12(%arg0: i32) -> (i32, i32) {
    %c0_i32 = arith.constant 0 : i32
    %c0_i32_0 = arith.constant 0 : i32
    %c0_i32_1 = arith.constant 0 : i32
    return %c0_i32, %c0_i32_0 : i32, i32
  }
  func.func @transform_13(%arg0: i32) -> (i32, i32) {
    %c0_i32 = arith.constant 0 : i32
    %c0_i32_0 = arith.constant 0 : i32
    %c0_i32_1 = arith.constant 0 : i32
    return %c0_i32, %c0_i32_0 : i32, i32
  }
  func.func @transform_14(%arg0: i32) -> (i32, i32) {
    %c0_i32 = arith.constant 0 : i32
    %c0_i32_0 = arith.constant 0 : i32
    %c0_i32_1 = arith.constant 0 : i32
    return %c0_i32, %c0_i32_0 : i32, i32
  }
}

</mosaic_0001>

<llo_original>
// kernel: clip_classifier_forward.1
$region0: #{clip_classifier_forward.1}
  #allocation0 [shape = 'u32[]', space=smem, size = 0x4, offset = 0x4, fixed_abs, tag = 'smem constant byte address 0x4 - core index']
  #allocation1 [shape = 'u32[72,128]{1,0:T(1,128)}', space=vmem, size = 0x9000, scoped, tag = 'internal scratch']
  #allocation2 [shape = 'bf16[8,128]{1,0:T(8,128)(2,1)}', space=vmem, size = 0x800, scoped, tag = 'scratch operand']
  #allocation3 [shape = 'f32[4,8,32]{2,1,0:T(8,128)}', space=vmem, size = 0x4000, scoped, tag = 'scratch operand']
  #allocation4 [shape = 'f32[8,128]{1,0:T(8,128)}', space=vmem, size = 0x1000, scoped, tag = 'scratch operand']
  #allocation5 [shape = 'f32[1,1]{1,0:T(1,128)S(1)}', space=vmem, size = 0x200, scoped, tag = 'scoped memory for clip_classifier_forward.1']
  %s0 = inlined_call_operand.hbm [shape: f32[8,32], index: 0, kind: input, shape index: {}]
  %s1 = inlined_call_operand.hbm [shape: f32[8,32], index: 1, kind: input, shape index: {}]
  %s2 = inlined_call_operand.hbm [shape: bf16[32,128], index: 2, kind: input, shape index: {}]
  %s3 = inlined_call_operand.hbm [shape: f32[1,128], index: 3, kind: input, shape index: {}]
  %s4 = inlined_call_operand.hbm [shape: bf16[4,128,128], index: 4, kind: input, shape index: {}]
  %s5 = inlined_call_operand.hbm [shape: f32[4,1,128], index: 5, kind: input, shape index: {}]
  %s6 = inlined_call_operand.hbm [shape: bf16[32,128], index: 6, kind: input, shape index: {}]
  %s7 = inlined_call_operand.hbm [shape: f32[1,128], index: 7, kind: input, shape index: {}]
  %s8 = inlined_call_operand.hbm [shape: bf16[4,128,128], index: 8, kind: input, shape index: {}]
  %s9 = inlined_call_operand.hbm [shape: f32[4,1,128], index: 9, kind: input, shape index: {}]
  %s10 = inlined_call_operand.hbm [shape: bf16[4,32,128,128], index: 10, kind: input, shape index: {}]
  %s11 = inlined_call_operand.hbm [shape: f32[1,128], index: 11, kind: input, shape index: {}]
  %s12 = inlined_call_operand.hbm [shape: f32[1,128], index: 12, kind: input, shape index: {}]
  %s13 = inlined_call_operand.<no memory space> [shape: f32[1,1], index: 13, kind: input, shape index: {}]
  %s14 = inlined_call_operand.vmem [shape: f32[8,1], index: 14, kind: output, shape index: {}]
  %s15 = sld [smem:[#allocation0]]
  $region149: #{clip_classifier_forward.1} parent=0
    _
  %s17 = ssub.s32 1, %s15
  %s18 = scalar_select 0, %s17, %s15
  %v19 = vstv %s13
  %20 = vst [vmem:[#allocation5] sm:$0x1] %v19
  $region1: #{clip_classifier_forward.1} parent=0
    #allocation6 [shape = 'u8[4096]{0}', space=vmem, size = 0x1000, scoped, tag = 'input window, operand 0, single buffered']
    #allocation7 [shape = 's32[2]{0}', space=sflag, size = 0x8, scoped, tag = 'scoped memory for clip_classifier_forward.1']
    #allocation8 [shape = 'u8[4096]{0}', space=vmem, size = 0x1000, scoped, tag = 'input window, operand 1, single buffered']
    #allocation9 [shape = 's32[1]{0}', space=sflag, size = 0x4, scoped, tag = 'scoped memory for clip_classifier_forward.1']
    #allocation10 [shape = 'u8[8192]{0}', space=vmem, size = 0x2000, scoped, tag = 'input window, operand 2, single buffered']
    #allocation11 [shape = 'u8[512]{0}', space=vmem, size = 0x400, scoped, tag = 'input window, operand 3, single buffered']
    #allocation12 [shape = 's32[1]{0}', space=sflag, size = 0x4, scoped, tag = 'scoped memory for clip_classifier_forward.1']
    #allocation13 [shape = 'u8[131072]{0}', space=vmem, size = 0x20000, scoped, tag = 'input window, operand 4, single buffered']
    #allocation14 [shape = 'u8[2048]{0}', space=vmem, size = 0x800, scoped, tag = 'input window, operand 5, single buffered']
    #allocation15 [shape = 's32[1]{0}', space=sflag, size = 0x4, scoped, tag = 'scoped memory for clip_classifier_forward.1']
    #allocation16 [shape = 'u8[8192]{0}', space=vmem, size = 0x2000, scoped, tag = 'input window, operand 6, single buffered']
    #allocation17 [shape = 'u8[512]{0}', space=vmem, size = 0x400, scoped, tag = 'input window, operand 7, single buffered']
    #allocation18 [shape = 's32[1]{0}', space=sflag, size = 0x4, scoped, tag = 'scoped memory for clip_classifier_forward.1']
    #allocation19 [shape = 'u8[131072]{0}', space=vmem, size = 0x20000, scoped, tag = 'input window, operand 8, single buffered']
    #allocation20 [shape = 'u8[2048]{0}', space=vmem, size = 0x800, scoped, tag = 'input window, operand 9, single buffered']
    #allocation21 [shape = 's32[1]{0}', space=sflag, size = 0x4, scoped, tag = 'scoped memory for clip_classifier_forward.1']
    #allocation22 [shape = 'u8[2097152]{0}', space=vmem, size = 0x200000, scoped, tag = 'input window, operand 10']
    #allocation23 [shape = 'u8[512]{0}', space=vmem, size = 0x400, scoped, tag = 'input window, operand 11, single buffered']
    #allocation24 [shape = 'u8[512]{0}', space=vmem, size = 0x400, scoped, tag = 'input window, operand 12, single buffered']
    %21 = vsyncpa [#allocation7], 0
    %22 = vsyncpa [#allocation9], 0
    %23 = vsyncpa [#allocation12], 0
    %24 = vsyncpa [#allocation15], 0
    %25 = vsyncpa [#allocation18], 0
    %26 = vsyncpa [#allocation21], 0
    loop: start=0, step=1, limit=6
    $region2: #{clip_classifier_forward.1} parent=1 // loop_pre_header
      _
    $region3: #{clip_classifier_forward.1} parent=1 // loop_header
      %s28 = sphi 0, %s32
      %p29 = scmp.ge.s32.totalorder %s28, 6
      %s36 = sphi 0, %s36
      %s38 = sphi 0, %s36
      %s39 = sphi 0, %s38
      %s53 = sphi 0, %s39
      %s57 = sphi 0, %s57
      %s59 = sphi 0, %s57
      %s60 = sphi 0, %s59
      %s74 = sphi 0, %s60
      %s78 = sphi 0, %s78
      %s80 = sphi 0, %s78
      %s81 = sphi 0, %s80
      %s95 = sphi 0, %s81
      %s99 = sphi 0, %s99
      %s101 = sphi 0, %s99
      %s102 = sphi 0, %s101
      %s116 = sphi 0, %s102
      %s120 = sphi 0, %s120
      %s122 = sphi 0, %s120
      %s123 = sphi 0, %s122
      %s137 = sphi 0, %s123
      %s141 = sphi 0, %s141
      %s143 = sphi 0, %s141
      %s144 = sphi 0, %s143
      %s158 = sphi 0, %s144
      %s162 = sphi 0, %s162
      %s164 = sphi 0, %s162
      %s165 = sphi 0, %s164
      %s179 = sphi 0, %s165
      %s183 = sphi 0, %s183
      %s185 = sphi 0, %s183
      %s186 = sphi 0, %s185
      %s200 = sphi 0, %s186
      %s204 = sphi 0, %s204
      %s206 = sphi 0, %s204
      %s207 = sphi 0, %s206
      %s221 = sphi 0, %s207
      %s225 = sphi 0, %s225
      %s227 = sphi 0, %s225
      %s228 = sphi 0, %s227
      %s242 = sphi 0, %s228
      %s248 = sphi 0, %s250
      %s251 = sphi 0, %s248
      %s252 = sphi 0, %s251
      %s268 = sphi 0, %s252
      %s272 = sphi 0, %s272
      %s274 = sphi 0, %s272
      %s275 = sphi 0, %s274
      %s289 = sphi 0, %s275
      %s293 = sphi 0, %s293
      %s295 = sphi 0, %s293
      %s296 = sphi 0, %s295
      %s310 = sphi 0, %s296
      %s314 = sphi 0, %s314
      %s316 = sphi 0, %s314
      %s317 = sphi 0, %s316
      %s331 = sphi 0, %s317
      %s335 = sphi 0, %s335
      %s337 = sphi 0, %s335
      %s338 = sphi 0, %s337
      %s352 = sphi 0, %s338
    $region4: #{clip_classifier_forward.1} parent=1 // loop_header_branch
      %31 = sbr.rel (%p29) target = $region8
    $region5: #{clip_classifier_forward.1} parent=1 // loop_body
      %s33 = ssub.s32 %s28, 1
      %s34 = ssub.s32 %s28, 2
      %s35 = sadd.s32 %s28, 1
      %s37 = sadd.s32 %s36, 1
      %p40 = scmp.eq.s32.totalorder %s28, 3
      %p41 = scmp.ne.s32.totalorder %s36, %s38
      %p42 = scmp.eq.s32.totalorder %s28, 0
      %p43 = por %p41, %p42
      %p44 = scmp.ne.s32.totalorder %s36, %s38
      %p45 = scmp.eq.s32.totalorder %s33, 3
      %p46 = por %p44, %p45
      %p47 = scmp.ne.s32.totalorder %s38, %s39
      %p48 = scmp.eq.s32.totalorder %s33, 0
      %p49 = por %p47, %p48
      %p50 = scmp.ne.s32.totalorder %s38, %s39
      %p51 = scmp.eq.s32.totalorder %s34, 3
      %p52 = por %p50, %p51
      %p54 = scmp.ne.s32.totalorder %s39, %s53
      %p55 = scmp.eq.s32.totalorder %s34, 0
      %p56 = por %p54, %p55
      %s58 = sadd.s32 %s57, 1
      %p61 = scmp.eq.s32.totalorder %s28, 3
      %p62 = scmp.ne.s32.totalorder %s57, %s59
      %p63 = scmp.eq.s32.totalorder %s28, 0
      %p64 = por %p62, %p63
      %p65 = scmp.ne.s32.totalorder %s57, %s59
      %p66 = scmp.eq.s32.totalorder %s33, 3
      %p67 = por %p65, %p66
      %p68 = scmp.ne.s32.totalorder %s59, %s60
      %p69 = scmp.eq.s32.totalorder %s33, 0
      %p70 = por %p68, %p69
      %p71 = scmp.ne.s32.totalorder %s59, %s60
      %p72 = scmp.eq.s32.totalorder %s34, 3
      %p73 = por %p71, %p72
      %p75 = scmp.ne.s32.totalorder %s60, %s74
      %p76 = scmp.eq.s32.totalorder %s34, 0
      %p77 = por %p75, %p76
      %s79 = sadd.s32 %s78, 1
      %p82 = scmp.eq.s32.totalorder %s28, 3
      %p83 = scmp.ne.s32.totalorder %s78, %s80
      %p84 = scmp.eq.s32.totalorder %s28, 0
      %p85 = por %p83, %p84
      %p86 = scmp.ne.s32.totalorder %s78, %s80
      %p87 = scmp.eq.s32.totalorder %s33, 3
      %p88 = por %p86, %p87
      %p89 = scmp.ne.s32.totalorder %s80, %s81
      %p90 = scmp.eq.s32.totalorder %s33, 0
      %p91 = por %p89, %p90
      %p92 = scmp.ne.s32.totalorder %s80, %s81
      %p93 = scmp.eq.s32.totalorder %s34, 3
      %p94 = por %p92, %p93
      %p96 = scmp.ne.s32.totalorder %s81, %s95
      %p97 = scmp.eq.s32.totalorder %s34, 0
      %p98 = por %p96, %p97
      %s100 = sadd.s32 %s99, 1
      %p103 = scmp.eq.s32.totalorder %s28, 3
      %p104 = scmp.ne.s32.totalorder %s99, %s101
      %p105 = scmp.eq.s32.totalorder %s28, 0
      %p106 = por %p104, %p105
      %p107 = scmp.ne.s32.totalorder %s99, %s101
      %p108 = scmp.eq.s32.totalorder %s33, 3
      %p109 = por %p107, %p108
      %p110 = scmp.ne.s32.totalorder %s101, %s102
      %p111 = scmp.eq.s32.totalorder %s33, 0
      %p112 = por %p110, %p111
      %p113 = scmp.ne.s32.totalorder %s101, %s102
      %p114 = scmp.eq.s32.totalorder %s34, 3
      %p115 = por %p113, %p114
      %p117 = scmp.ne.s32.totalorder %s102, %s116
      %p118 = scmp.eq.s32.totalorder %s34, 0
      %p119 = por %p117, %p118
      %s121 = sadd.s32 %s120, 1
      %p124 = scmp.eq.s32.totalorder %s28, 3
      %p125 = scmp.ne.s32.totalorder %s120, %s122
      %p126 = scmp.eq.s32.totalorder %s28, 0
      %p127 = por %p125, %p126
      %p128 = scmp.ne.s32.totalorder %s120, %s122
      %p129 = scmp.eq.s32.totalorder %s33, 3
      %p130 = por %p128, %p129
      %p131 = scmp.ne.s32.totalorder %s122, %s123
      %p132 = scmp.eq.s32.totalorder %s33, 0
      %p133 = por %p131, %p132
      %p134 = scmp.ne.s32.totalorder %s122, %s123
      %p135 = scmp.eq.s32.totalorder %s34, 3
      %p136 = por %p134, %p135
      %p138 = scmp.ne.s32.totalorder %s123, %s137
      %p139 = scmp.eq.s32.totalorder %s34, 0
      %p140 = por %p138, %p139
      %s142 = sadd.s32 %s141, 1
      %p145 = scmp.eq.s32.totalorder %s28, 3
      %p146 = scmp.ne.s32.totalorder %s141, %s143
      %p147 = scmp.eq.s32.totalorder %s28, 0
      %p148 = por %p146, %p147
      %p149 = scmp.ne.s32.totalorder %s141, %s143
      %p150 = scmp.eq.s32.totalorder %s33, 3
      %p151 = por %p149, %p150
      %p152 = scmp.ne.s32.totalorder %s143, %s144
      %p153 = scmp.eq.s32.totalorder %s33, 0
      %p154 = por %p152, %p153
      %p155 = scmp.ne.s32.totalorder %s143, %s144
      %p156 = scmp.eq.s32.totalorder %s34, 3
      %p157 = por %p155, %p156
      %p159 = scmp.ne.s32.totalorder %s144, %s158
      %p160 = scmp.eq.s32.totalorder %s34, 0
      %p161 = por %p159, %p160
      %s163 = sadd.s32 %s162, 1
      %p166 = scmp.eq.s32.totalorder %s28, 3
      %p167 = scmp.ne.s32.totalorder %s162, %s164
      %p168 = scmp.eq.s32.totalorder %s28, 0
      %p169 = por %p167, %p168
      %p170 = scmp.ne.s32.totalorder %s162, %s164
      %p171 = scmp.eq.s32.totalorder %s33, 3
      %p172 = por %p170, %p171
      %p173 = scmp.ne.s32.totalorder %s164, %s165
      %p174 = scmp.eq.s32.totalorder %s33, 0
      %p175 = por %p173, %p174
      %p176 = scmp.ne.s32.totalorder %s164, %s165
      %p177 = scmp.eq.s32.totalorder %s34, 3
      %p178 = por %p176, %p177
      %p180 = scmp.ne.s32.totalorder %s165, %s179
      %p181 = scmp.eq.s32.totalorder %s34, 0
      %p182 = por %p180, %p181
      %s184 = sadd.s32 %s183, 1
      %p187 = scmp.eq.s32.totalorder %s28, 3
      %p188 = scmp.ne.s32.totalorder %s183, %s185
      %p189 = scmp.eq.s32.totalorder %s28, 0
      %p190 = por %p188, %p189
      %p191 = scmp.ne.s32.totalorder %s183, %s185
      %p192 = scmp.eq.s32.totalorder %s33, 3
      %p193 = por %p191, %p192
      %p194 = scmp.ne.s32.totalorder %s185, %s186
      %p195 = scmp.eq.s32.totalorder %s33, 0
      %p196 = por %p194, %p195
      %p197 = scmp.ne.s32.totalorder %s185, %s186
      %p198 = scmp.eq.s32.totalorder %s34, 3
      %p199 = por %p197, %p198
      %p201 = scmp.ne.s32.totalorder %s186, %s200
      %p202 = scmp.eq.s32.totalorder %s34, 0
      %p203 = por %p201, %p202
      %s205 = sadd.s32 %s204, 1
      %p208 = scmp.eq.s32.totalorder %s28, 3
      %p209 = scmp.ne.s32.totalorder %s204, %s206
      %p210 = scmp.eq.s32.totalorder %s28, 0
      %p211 = por %p209, %p210
      %p212 = scmp.ne.s32.totalorder %s204, %s206
      %p213 = scmp.eq.s32.totalorder %s33, 3
      %p214 = por %p212, %p213
      %p215 = scmp.ne.s32.totalorder %s206, %s207
      %p216 = scmp.eq.s32.totalorder %s33, 0
      %p217 = por %p215, %p216
      %p218 = scmp.ne.s32.totalorder %s206, %s207
      %p219 = scmp.eq.s32.totalorder %s34, 3
      %p220 = por %p218, %p219
      %p222 = scmp.ne.s32.totalorder %s207, %s221
      %p223 = scmp.eq.s32.totalorder %s34, 0
      %p224 = por %p222, %p223
      %s226 = sadd.s32 %s225, 1
      %p229 = scmp.eq.s32.totalorder %s28, 3
      %p230 = scmp.ne.s32.totalorder %s225, %s227
      %p231 = scmp.eq.s32.totalorder %s28, 0
      %p232 = por %p230, %p231
      %p233 = scmp.ne.s32.totalorder %s225, %s227
      %p234 = scmp.eq.s32.totalorder %s33, 3
      %p235 = por %p233, %p234
      %p236 = scmp.ne.s32.totalorder %s227, %s228
      %p237 = scmp.eq.s32.totalorder %s33, 0
      %p238 = por %p236, %p237
      %p239 = scmp.ne.s32.totalorder %s227, %s228
      %p240 = scmp.eq.s32.totalorder %s34, 3
      %p241 = por %p239, %p240
      %p243 = scmp.ne.s32.totalorder %s228, %s242
      %p244 = scmp.eq.s32.totalorder %s34, 0
      %p245 = por %p243, %p244
      %s246 = ssub.s32 %s28, %s35
      %p247 = scmp.eq.s32.totalorder %s246, 0
      %s249 = sadd.s32 %s248, 1
      %s250 = scalar_select %p247, %s248, %s249
      %p253 = pneg %p247
      %p254 = scmp.eq.s32.totalorder %s28, 3
      %p255 = por %p253, %p254
      %p256 = scmp.ne.s32.totalorder %s248, %s251
      %p257 = scmp.eq.s32.totalorder %s28, 0
      %p258 = por %p256, %p257
      %p259 = scmp.ne.s32.totalorder %s248, %s251
      %p260 = scmp.eq.s32.totalorder %s33, 3
      %p261 = por %p259, %p260
      %p262 = scmp.ne.s32.totalorder %s251, %s252
      %p263 = scmp.eq.s32.totalorder %s33, 0
      %p264 = por %p262, %p263
      %p265 = scmp.ne.s32.totalorder %s251, %s252
      %p266 = scmp.eq.s32.totalorder %s34, 3
      %p267 = por %p265, %p266
      %p269 = scmp.ne.s32.totalorder %s252, %s268
      %p270 = scmp.eq.s32.totalorder %s34, 0
      %p271 = por %p269, %p270
      %s273 = sadd.s32 %s272, 1
      %p276 = scmp.eq.s32.totalorder %s28, 3
      %p277 = scmp.ne.s32.totalorder %s272, %s274
      %p278 = scmp.eq.s32.totalorder %s28, 0
      %p279 = por %p277, %p278
      %p280 = scmp.ne.s32.totalorder %s272, %s274
      %p281 = scmp.eq.s32.totalorder %s33, 3
      %p282 = por %p280, %p281
      %p283 = scmp.ne.s32.totalorder %s274, %s275
      %p284 = scmp.eq.s32.totalorder %s33, 0
      %p285 = por %p283, %p284
      %p286 = scmp.ne.s32.totalorder %s274, %s275
      %p287 = scmp.eq.s32.totalorder %s34, 3
      %p288 = por %p286, %p287
      %p290 = scmp.ne.s32.totalorder %s275, %s289
      %p291 = scmp.eq.s32.totalorder %s34, 0
      %p292 = por %p290, %p291
      %s294 = sadd.s32 %s293, 1
      %p297 = scmp.eq.s32.totalorder %s28, 3
      %p298 = scmp.ne.s32.totalorder %s293, %s295
      %p299 = scmp.eq.s32.totalorder %s28, 0
      %p300 = por %p298, %p299
      %p301 = scmp.ne.s32.totalorder %s293, %s295
      %p302 = scmp.eq.s32.totalorder %s33, 3
      %p303 = por %p301, %p302
      %p304 = scmp.ne.s32.totalorder %s295, %s296
      %p305 = scmp.eq.s32.totalorder %s33, 0
      %p306 = por %p304, %p305
      %p307 = scmp.ne.s32.totalorder %s295, %s296
      %p308 = scmp.eq.s32.totalorder %s34, 3
      %p309 = por %p307, %p308
      %p311 = scmp.ne.s32.totalorder %s296, %s310
      %p312 = scmp.eq.s32.totalorder %s34, 0
      %p313 = por %p311, %p312
      %s315 = sadd.s32 %s314, 1
      %p318 = scmp.eq.s32.totalorder %s28, 3
      %p319 = scmp.ne.s32.totalorder %s314, %s316
      %p320 = scmp.eq.s32.totalorder %s28, 0
      %p321 = por %p319, %p320
      %p322 = scmp.ne.s32.totalorder %s314, %s316
      %p323 = scmp.eq.s32.totalorder %s33, 3
      %p324 = por %p322, %p323
      %p325 = scmp.ne.s32.totalorder %s316, %s317
      %p326 = scmp.eq.s32.totalorder %s33, 0
      %p327 = por %p325, %p326
      %p328 = scmp.ne.s32.totalorder %s316, %s317
      %p329 = scmp.eq.s32.totalorder %s34, 3
      %p330 = por %p328, %p329
      %p332 = scmp.ne.s32.totalorder %s317, %s331
      %p333 = scmp.eq.s32.totalorder %s34, 0
      %p334 = por %p332, %p333
      %s336 = sadd.s32 %s335, 1
      %p339 = scmp.eq.s32.totalorder %s28, 3
      %p340 = scmp.ne.s32.totalorder %s335, %s337
      %p341 = scmp.eq.s32.totalorder %s28, 0
      %p342 = por %p340, %p341
      %p343 = scmp.ne.s32.totalorder %s335, %s337
      %p344 = scmp.eq.s32.totalorder %s33, 3
      %p345 = por %p343, %p344
      %p346 = scmp.ne.s32.totalorder %s337, %s338
      %p347 = scmp.eq.s32.totalorder %s33, 0
      %p348 = por %p346, %p347
      %p349 = scmp.ne.s32.totalorder %s337, %s338
      %p350 = scmp.eq.s32.totalorder %s34, 3
      %p351 = por %p349, %p350
      %p353 = scmp.ne.s32.totalorder %s338, %s352
      %p354 = scmp.eq.s32.totalorder %s34, 0
      %p355 = por %p353, %p354
      %p356 = scmp.le.s32.totalorder 1, %s28
      %p357 = scmp.lt.s32.totalorder %s28, 5
      %p358 = pnand %p356, %p357
      %p359 = pneg %p358
      // Predicated region
      $region9: #{clip_classifier_forward.1} parent=5 // pred_check
        _
      $region10: #{clip_classifier_forward.1} parent=5 // pred_check_branch
        %361 = sbr.rel (%p358) target = $region12
      $region11: #{clip_classifier_forward.1} parent=5 // pred_region
        %s362 = ssub.s32 %s28, 1
        // Predicated region
        $region13: #{clip_classifier_forward.1} parent=11 // pred_check
          %p363 = pneg %p49
        $region14: #{clip_classifier_forward.1} parent=11 // pred_check_branch
          %365 = sbr.rel (%p363) target = $region16
        $region15: #{clip_classifier_forward.1} parent=11 // pred_region
          %367 = vsyncadd [#allocation7], 0
          %s369 = sshll.u32 %s0, 4
          %s370 = int_to_ptr.hbm [resolvable:$true] %s369
          %s371 = sshll.u32 [#allocation6], 4
          %s372 = int_to_ptr.vmem [resolvable:$true] %s371
          %374 = dma.hbm_to_vmem [thread:$0]  %s370, 128, %s372, [#allocation7]
        $region16: #{clip_classifier_forward.1} parent=11 // pred_fallthru
          _
        // Predicated region
        $region17: #{clip_classifier_forward.1} parent=11 // pred_check
          %p375 = pneg %p70
        $region18: #{clip_classifier_forward.1} parent=11 // pred_check_branch
          %377 = sbr.rel (%p375) target = $region20
        $region19: #{clip_classifier_forward.1} parent=11 // pred_region
          %379 = vsyncadd [#allocation9], 0
          %s381 = sshll.u32 %s1, 4
          %s382 = int_to_ptr.hbm [resolvable:$true] %s381
          %s383 = sshll.u32 [#allocation8], 4
          %s384 = int_to_ptr.vmem [resolvable:$true] %s383
          %386 = dma.hbm_to_vmem [thread:$0]  %s382, 128, %s384, [#allocation9]
        $region20: #{clip_classifier_forward.1} parent=11 // pred_fallthru
          _
        // Predicated region
        $region21: #{clip_classifier_forward.1} parent=11 // pred_check
          %p387 = pneg %p91
        $region22: #{clip_classifier_forward.1} parent=11 // pred_check_branch
          %389 = sbr.rel (%p387) target = $region24
        $region23: #{clip_classifier_forward.1} parent=11 // pred_region
          %391 = vsyncadd [#allocation9], 0
          %s392 = sshll.u32 %s2, 4
          %s393 = int_to_ptr.hbm [resolvable:$true] %s392
          %s394 = sshll.u32 [#allocation10], 4
          %s395 = int_to_ptr.vmem [resolvable:$true] %s394
          %400 = dma.hbm_to_vmem [thread:$0]  %s393, 256, %s395, [#allocation9], 64, 64, 4
        $region24: #{clip_classifier_forward.1} parent=11 // pred_fallthru
          _
        // Predicated region
        $region25: #{clip_classifier_forward.1} parent=11 // pred_check
          %p401 = pneg %p112
        $region26: #{clip_classifier_forward.1} parent=11 // pred_check_branch
          %403 = sbr.rel (%p401) target = $region28
        $region27: #{clip_classifier_forward.1} parent=11 // pred_region
          %405 = vsyncadd [#allocation12], 0
          %s407 = sshll.u32 %s3, 4
          %s408 = int_to_ptr.hbm [resolvable:$true] %s407
          %s409 = sshll.u32 [#allocation11], 4
          %s410 = int_to_ptr.vmem [resolvable:$true] %s409
          %412 = dma.hbm_to_vmem [thread:$0]  %s408, 16, %s410, [#allocation12]
        $region28: #{clip_classifier_forward.1} parent=11 // pred_fallthru
          _
        // Predicated region
        $region29: #{clip_classifier_forward.1} parent=11 // pred_check
          %p413 = pneg %p133
        $region30: #{clip_classifier_forward.1} parent=11 // pred_check_branch
          %415 = sbr.rel (%p413) target = $region32
        $region31: #{clip_classifier_forward.1} parent=11 // pred_region
          %417 = vsyncadd [#allocation12], 0
          %s418 = sshll.u32 %s4, 4
          %s419 = int_to_ptr.hbm [resolvable:$true] %s418
          %s420 = sshll.u32 [#allocation13], 4
          %s421 = int_to_ptr.vmem [resolvable:$true] %s420
          %426 = dma.hbm_to_vmem [thread:$0]  %s419, 4096, %s421, [#allocation12], 64, 64, 4
        $region32: #{clip_classifier_forward.1} parent=11 // pred_fallthru
          _
        // Predicated region
        $region33: #{clip_classifier_forward.1} parent=11 // pred_check
          %p427 = pneg %p154
        $region34: #{clip_classifier_forward.1} parent=11 // pred_check_branch
          %429 = sbr.rel (%p427) target = $region36
        $region35: #{clip_classifier_forward.1} parent=11 // pred_region
          %431 = vsyncadd [#allocation15], 0
          %s432 = sshll.u32 %s5, 4
          %s433 = int_to_ptr.hbm [resolvable:$true] %s432
          %s434 = sshll.u32 [#allocation14], 4
          %s435 = int_to_ptr.vmem [resolvable:$true] %s434
          %440 = dma.hbm_to_vmem [thread:$0]  %s433, 64, %s435, [#allocation15], 16, 16, 1
        $region36: #{clip_classifier_forward.1} parent=11 // pred_fallthru
          _
        // Predicated region
        $region37: #{clip_classifier_forward.1} parent=11 // pred_check
          %p441 = pneg %p175
        $region38: #{clip_classifier_forward.1} parent=11 // pred_check_branch
          %443 = sbr.rel (%p441) target = $region40
        $region39: #{clip_classifier_forward.1} parent=11 // pred_region
          %445 = vsyncadd [#allocation15], 0
          %s446 = sshll.u32 %s6, 4
          %s447 = int_to_ptr.hbm [resolvable:$true] %s446
          %s448 = sshll.u32 [#allocation16], 4
          %s449 = int_to_ptr.vmem [resolvable:$true] %s448
          %454 = dma.hbm_to_vmem [thread:$0]  %s447, 256, %s449, [#allocation15], 64, 64, 4
        $region40: #{clip_classifier_forward.1} parent=11 // pred_fallthru
          _
        // Predicated region
        $region41: #{clip_classifier_forward.1} parent=11 // pred_check
          %p455 = pneg %p196
        $region42: #{clip_classifier_forward.1} parent=11 // pred_check_branch
          %457 = sbr.rel (%p455) target = $region44
        $region43: #{clip_classifier_forward.1} parent=11 // pred_region
          %459 = vsyncadd [#allocation18], 0
          %s461 = sshll.u32 %s7, 4
          %s462 = int_to_ptr.hbm [resolvable:$true] %s461
          %s463 = sshll.u32 [#allocation17], 4
          %s464 = int_to_ptr.vmem [resolvable:$true] %s463
          %466 = dma.hbm_to_vmem [thread:$0]  %s462, 16, %s464, [#allocation18]
        $region44: #{clip_classifier_forward.1} parent=11 // pred_fallthru
          _
        // Predicated region
        $region45: #{clip_classifier_forward.1} parent=11 // pred_check
          %p467 = pneg %p217
        $region46: #{clip_classifier_forward.1} parent=11 // pred_check_branch
          %469 = sbr.rel (%p467) target = $region48
        $region47: #{clip_classifier_forward.1} parent=11 // pred_region
          %471 = vsyncadd [#allocation18], 0
          %s472 = sshll.u32 %s8, 4
          %s473 = int_to_ptr.hbm [resolvable:$true] %s472
          %s474 = sshll.u32 [#allocation19], 4
          %s475 = int_to_ptr.vmem [resolvable:$true] %s474
          %480 = dma.hbm_to_vmem [thread:$0]  %s473, 4096, %s475, [#allocation18], 64, 64, 4
        $region48: #{clip_classifier_forward.1} parent=11 // pred_fallthru
          _
        // Predicated region
        $region49: #{clip_classifier_forward.1} parent=11 // pred_check
          %p481 = pneg %p238
        $region50: #{clip_classifier_forward.1} parent=11 // pred_check_branch
          %483 = sbr.rel (%p481) target = $region52
        $region51: #{clip_classifier_forward.1} parent=11 // pred_region
          %485 = vsyncadd [#allocation21], 0
          %s486 = sshll.u32 %s9, 4
          %s487 = int_to_ptr.hbm [resolvable:$true] %s486
          %s488 = sshll.u32 [#allocation20], 4
          %s489 = int_to_ptr.vmem [resolvable:$true] %s488
          %494 = dma.hbm_to_vmem [thread:$0]  %s487, 64, %s489, [#allocation21], 16, 16, 1
        $region52: #{clip_classifier_forward.1} parent=11 // pred_fallthru
          _
        // Predicated region
        $region53: #{clip_classifier_forward.1} parent=11 // pred_check
          %p495 = pneg %p285
        $region54: #{clip_classifier_forward.1} parent=11 // pred_check_branch
          %497 = sbr.rel (%p495) target = $region56
        $region55: #{clip_classifier_forward.1} parent=11 // pred_region
          %499 = vsyncadd [#allocation9], 0
          %s501 = sshll.u32 %s11, 4
          %s502 = int_to_ptr.hbm [resolvable:$true] %s501
          %s503 = sshll.u32 [#allocation23], 4
          %s504 = int_to_ptr.vmem [resolvable:$true] %s503
          %506 = dma.hbm_to_vmem [thread:$0]  %s502, 16, %s504, [#allocation9]
        $region56: #{clip_classifier_forward.1} parent=11 // pred_fallthru
          _
        // Predicated region
        $region57: #{clip_classifier_forward.1} parent=11 // pred_check
          %p507 = pneg %p306
        $region58: #{clip_classifier_forward.1} parent=11 // pred_check_branch
          %509 = sbr.rel (%p507) target = $region60
        $region59: #{clip_classifier_forward.1} parent=11 // pred_region
          %511 = vsyncadd [#allocation12], 0
          %s513 = sshll.u32 %s12, 4
          %s514 = int_to_ptr.hbm [resolvable:$true] %s513
          %s515 = sshll.u32 [#allocation24], 4
          %s516 = int_to_ptr.vmem [resolvable:$true] %s515
          %518 = dma.hbm_to_vmem [thread:$0]  %s514, 16, %s516, [#allocation12]
        $region60: #{clip_classifier_forward.1} parent=11 // pred_fallthru
          _
        // Predicated region
        $region61: #{clip_classifier_forward.1} parent=11 // pred_check
          %p519 = pneg %p327
        $region62: #{clip_classifier_forward.1} parent=11 // pred_check_branch
          %521 = sbr.rel (%p519) target = $region64
        $region63: #{clip_classifier_forward.1} parent=11 // pred_region
          _
        $region64: #{clip_classifier_forward.1} parent=11 // pred_fallthru
          _
      $region12: #{clip_classifier_forward.1} parent=5 // pred_fallthru
        _
      %p522 = scmp.lt.s32.totalorder %s28, 4
      // Predicated region
      $region65: #{clip_classifier_forward.1} parent=5 // pred_check
        %p523 = pneg %p522
      $region66: #{clip_classifier_forward.1} parent=5 // pred_check_branch
        %525 = sbr.rel (%p523) target = $region68
      $region67: #{clip_classifier_forward.1} parent=5 // pred_region
        // Predicated region
        $region69: #{clip_classifier_forward.1} parent=67 // pred_check
          %p526 = pneg %p258
        $region70: #{clip_classifier_forward.1} parent=67 // pred_check_branch
          %528 = sbr.rel (%p526) target = $region72
        $region71: #{clip_classifier_forward.1} parent=67 // pred_region
          %s529 = sand.u32 %s28, 1
          %s530 = scalar_lea.sflag [#allocation7], %s529
          %s531 = sand.u32 %s248, 1
          %s532 = smul.addr %s531, 2048
          %s533 = scalar_lea.vmem [#allocation22], %s532
          %535 = vsyncadd %s530, 0
          %s536 = smul.addr %s28, 512
          %s537 = smul.addr %s536, 4
          %s538 = scalar_lea.hbm %s10, %s537
          %s539 = sshll.u32 %s538, 4
          %s540 = int_to_ptr.hbm [resolvable:$true] %s539
          %s541 = sshll.u32 %s533, 4
          %s542 = int_to_ptr.vmem [resolvable:$true] %s541
          %547 = dma.hbm_to_vmem [thread:$0]  %s540, 32768, %s542, %s530, 64, 64, 4
        $region72: #{clip_classifier_forward.1} parent=67 // pred_fallthru
          _
      $region68: #{clip_classifier_forward.1} parent=5 // pred_fallthru
        _
      %p548 = scmp.le.s32.totalorder 1, %s28
      %p549 = scmp.lt.s32.totalorder %s28, 5
      %p550 = pnand %p548, %p549
      %p551 = pneg %p550
      // Predicated region
      $region73: #{clip_classifier_forward.1} parent=5 // pred_check
        _
      $region74: #{clip_classifier_forward.1} parent=5 // pred_check_branch
        %553 = sbr.rel (%p550) target = $region76
      $region75: #{clip_classifier_forward.1} parent=5 // pred_region
        %s554 = ssub.s32 %s28, 1
        // Predicated region
        $region77: #{clip_classifier_forward.1} parent=75 // pred_check
          %p555 = pneg %p49
        $region78: #{clip_classifier_forward.1} parent=75 // pred_check_branch
          %557 = sbr.rel (%p555) target = $region80
        $region79: #{clip_classifier_forward.1} parent=75 // pred_region
          %559 = dma.done [#allocation7], 128
        $region80: #{clip_classifier_forward.1} parent=75 // pred_fallthru
          _
        // Predicated region
        $region81: #{clip_classifier_forward.1} parent=75 // pred_check
          %p560 = pneg %p70
        $region82: #{clip_classifier_forward.1} parent=75 // pred_check_branch
          %562 = sbr.rel (%p560) target = $region84
        $region83: #{clip_classifier_forward.1} parent=75 // pred_region
          %564 = dma.done [#allocation9], 128
        $region84: #{clip_classifier_forward.1} parent=75 // pred_fallthru
          _
        // Predicated region
        $region85: #{clip_classifier_forward.1} parent=75 // pred_check
          %p565 = pneg %p91
        $region86: #{clip_classifier_forward.1} parent=75 // pred_check_branch
          %567 = sbr.rel (%p565) target = $region88
        $region87: #{clip_classifier_forward.1} parent=75 // pred_region
          %569 = dma.done [#allocation9], 256
        $region88: #{clip_classifier_forward.1} parent=75 // pred_fallthru
          _
        // Predicated region
        $region89: #{clip_classifier_forward.1} parent=75 // pred_check
          %p570 = pneg %p112
        $region90: #{clip_classifier_forward.1} parent=75 // pred_check_branch
          %572 = sbr.rel (%p570) target = $region92
        $region91: #{clip_classifier_forward.1} parent=75 // pred_region
          %574 = dma.done [#allocation12], 16
        $region92: #{clip_classifier_forward.1} parent=75 // pred_fallthru
          _
        // Predicated region
        $region93: #{clip_classifier_forward.1} parent=75 // pred_check
          %p575 = pneg %p133
        $region94: #{clip_classifier_forward.1} parent=75 // pred_check_branch
          %577 = sbr.rel (%p575) target = $region96
        $region95: #{clip_classifier_forward.1} parent=75 // pred_region
          %579 = dma.done [#allocation12], 4096
        $region96: #{clip_classifier_forward.1} parent=75 // pred_fallthru
          _
        // Predicated region
        $region97: #{clip_classifier_forward.1} parent=75 // pred_check
          %p580 = pneg %p154
        $region98: #{clip_classifier_forward.1} parent=75 // pred_check_branch
          %582 = sbr.rel (%p580) target = $region100
        $region99: #{clip_classifier_forward.1} parent=75 // pred_region
          %584 = dma.done [#allocation15], 64
        $region100: #{clip_classifier_forward.1} parent=75 // pred_fallthru
          _
        // Predicated region
        $region101: #{clip_classifier_forward.1} parent=75 // pred_check
          %p585 = pneg %p175
        $region102: #{clip_classifier_forward.1} parent=75 // pred_check_branch
          %587 = sbr.rel (%p585) target = $region104
        $region103: #{clip_classifier_forward.1} parent=75 // pred_region
          %589 = dma.done [#allocation15], 256
        $region104: #{clip_classifier_forward.1} parent=75 // pred_fallthru
          _
        // Predicated region
        $region105: #{clip_classifier_forward.1} parent=75 // pred_check
          %p590 = pneg %p196
        $region106: #{clip_classifier_forward.1} parent=75 // pred_check_branch
          %592 = sbr.rel (%p590) target = $region108
        $region107: #{clip_classifier_forward.1} parent=75 // pred_region
          %594 = dma.done [#allocation18], 16
        $region108: #{clip_classifier_forward.1} parent=75 // pred_fallthru
          _
        // Predicated region
        $region109: #{clip_classifier_forward.1} parent=75 // pred_check
          %p595 = pneg %p217
        $region110: #{clip_classifier_forward.1} parent=75 // pred_check_branch
          %597 = sbr.rel (%p595) target = $region112
        $region111: #{clip_classifier_forward.1} parent=75 // pred_region
          %599 = dma.done [#allocation18], 4096
        $region112: #{clip_classifier_forward.1} parent=75 // pred_fallthru
          _
        // Predicated region
        $region113: #{clip_classifier_forward.1} parent=75 // pred_check
          %p600 = pneg %p238
        $region114: #{clip_classifier_forward.1} parent=75 // pred_check_branch
          %602 = sbr.rel (%p600) target = $region116
        $region115: #{clip_classifier_forward.1} parent=75 // pred_region
          %604 = dma.done [#allocation21], 64
        $region116: #{clip_classifier_forward.1} parent=75 // pred_fallthru
          _
        %s605 = sand.u32 %s33, 1
        %s606 = scalar_lea.sflag [#allocation7], %s605
        %s607 = sand.u32 %s251, 1
        %s608 = smul.addr %s607, 2048
        %s609 = scalar_lea.vmem [#allocation22], %s608
        // Predicated region
        $region117: #{clip_classifier_forward.1} parent=75 // pred_check
          %p610 = pneg %p264
        $region118: #{clip_classifier_forward.1} parent=75 // pred_check_branch
          %612 = sbr.rel (%p610) target = $region120
        $region119: #{clip_classifier_forward.1} parent=75 // pred_region
          %614 = dma.done %s606, 32768
        $region120: #{clip_classifier_forward.1} parent=75 // pred_fallthru
          _
        // Predicated region
        $region121: #{clip_classifier_forward.1} parent=75 // pred_check
          %p615 = pneg %p285
        $region122: #{clip_classifier_forward.1} parent=75 // pred_check_branch
          %617 = sbr.rel (%p615) target = $region124
        $region123: #{clip_classifier_forward.1} parent=75 // pred_region
          %619 = dma.done [#allocation9], 16
        $region124: #{clip_classifier_forward.1} parent=75 // pred_fallthru
          _
        // Predicated region
        $region125: #{clip_classifier_forward.1} parent=75 // pred_check
          %p620 = pneg %p306
        $region126: #{clip_classifier_forward.1} parent=75 // pred_check_branch
          %622 = sbr.rel (%p620) target = $region128
        $region127: #{clip_classifier_forward.1} parent=75 // pred_region
          %624 = dma.done [#allocation12], 16
        $region128: #{clip_classifier_forward.1} parent=75 // pred_fallthru
          _
        %p625 = pneg %p49
        %p626 = pneg %p46
        %p627 = pneg %p70
        %p628 = pneg %p67
        %p629 = pneg %p91
        %p630 = pneg %p88
        %p631 = pneg %p112
        %p632 = pneg %p109
        %p633 = pneg %p133
        %p634 = pneg %p130
        %p635 = pneg %p154
        %p636 = pneg %p151
        %p637 = pneg %p175
        %p638 = pneg %p172
        %p639 = pneg %p196
        %p640 = pneg %p193
        %p641 = pneg %p217
        %p642 = pneg %p214
        %p643 = pneg %p238
        %p644 = pneg %p235
        %s645 = sand.u32 %s33, 1
        %s646 = scalar_lea.sflag [#allocation7], %s645
        %s647 = sand.u32 %s251, 1
        %s648 = smul.addr %s647, 2048
        %s649 = scalar_lea.vmem [#allocation22], %s648
        %p650 = pneg %p264
        %p651 = pneg %p261
        %p652 = pneg %p285
        %p653 = pneg %p282
        %p654 = pneg %p306
        %p655 = pneg %p303
        %p656 = pneg %p327
        %p657 = pneg %p324
        %p658 = pneg %p348
        %p659 = pneg %p345
        %p661 = scmp.eq.s32.totalorder %s33, 0
        // Predicated region
        $region129: #{clip_classifier_forward.1} parent=75 // pred_check
          %p662 = pneg %p661
        $region130: #{clip_classifier_forward.1} parent=75 // pred_check_branch
          %664 = sbr.rel (%p662) target = $region132
        $region131: #{clip_classifier_forward.1} parent=75 // pred_region
          %v665 = vld [vmem:[#allocation6] sm:$0xff]
          %v666 = vpack.c.bf16 %v665, %v665
          %v667 = vld [vmem:[#allocation10] sm:$0xf]
          %v668 = vld [vmem:[#allocation10 + $0x4] sm:$0xf]
          %v669 = vld [vmem:[#allocation10 + $0x8] sm:$0xf]
          %v670 = vld [vmem:[#allocation10 + $0xc] sm:$0xf]
          %v671 = vld [vmem:[#allocation11] sm:$0x1]
          %v673 = vperm.slane %v671, 0
          %v679 = vunpack.c.l.b16 %v667
          %v680 = vunpack.c.l.b16 %v668
          %v681 = vunpack.c.l.b16 %v669
          %v682 = vunpack.c.l.b16 %v670
          %v683 = vpack.c.b16 %v680, %v679
          %v684 = vpack.c.b16 %v682, %v681
          %vm687 = vcmask 261120
          %v689 = vsel %vm687, %v666, 0
          %691 = vmatpush.bf16.msra.mxu0 0
          %692 = vmatpush.bf16.msra.mxu0 0
          %693 = vmatpush.bf16.msra.mxu0 0
          %694 = vmatpush.bf16.msra.mxu0 0
          %695 = vmatpush.bf16.msra.mxu0 0
          %696 = vmatpush.bf16.msra.mxu0 0
          %697 = vmatpush.bf16.msra.mxu0 %v684
          %698 = vmatpush.bf16.msra.mxu0 %v683
          %699 = vmatmul.bf16.gmra.mxu0 %v689
          %v700 = vpop.f32.mrf.mxu0
          %v701 = vadd.f32 %v673, %v700
          %v702 = vpop.f32.mrf.mxu0
          %703 = vdwg.mxu0
          %v704 = vmax.f32 %v701, 0.0
          %v705 = vpack.c.bf16 %v704, %v704
          %v706 = vld [vmem:[#allocation13] sm:$0xf]
          %v707 = vld [vmem:[#allocation13 + $0x4] sm:$0xf]
          %v708 = vld [vmem:[#allocation13 + $0x8] sm:$0xf]
          %v709 = vld [vmem:[#allocation13 + $0xc] sm:$0xf]
          %v710 = vld [vmem:[#allocation13 + $0x10] sm:$0xf]
          %v711 = vld [vmem:[#allocation13 + $0x14] sm:$0xf]
          %v712 = vld [vmem:[#allocation13 + $0x18] sm:$0xf]
          %v713 = vld [vmem:[#allocation13 + $0x1c] sm:$0xf]
          %v714 = vld [vmem:[#allocation13 + $0x20] sm:$0xf]
          %v715 = vld [vmem:[#allocation13 + $0x24] sm:$0xf]
          %v716 = vld [vmem:[#allocation13 + $0x28] sm:$0xf]
          %v717 = vld [vmem:[#allocation13 + $0x2c] sm:$0xf]
          %v718 = vld [vmem:[#allocation13 + $0x30] sm:$0xf]
          %v719 = vld [vmem:[#allocation13 + $0x34] sm:$0xf]
          %v720 = vld [vmem:[#allocation13 + $0x38] sm:$0xf]
          %v721 = vld [vmem:[#allocation13 + $0x3c] sm:$0xf]
          %v722 = vld [vmem:[#allocation14] sm:$0x1]
          %v724 = vperm.slane %v722, 0
          %v742 = vunpack.c.l.b16 %v706
          %v743 = vunpack.c.l.b16 %v707
          %v744 = vunpack.c.l.b16 %v708
          %v745 = vunpack.c.l.b16 %v709
          %v746 = vunpack.c.l.b16 %v710
          %v747 = vunpack.c.l.b16 %v711
          %v748 = vunpack.c.l.b16 %v712
          %v749 = vunpack.c.l.b16 %v713
          %v750 = vunpack.c.l.b16 %v714
          %v751 = vunpack.c.l.b16 %v715
          %v752 = vunpack.c.l.b16 %v716
          %v753 = vunpack.c.l.b16 %v717
          %v754 = vunpack.c.l.b16 %v718
          %v755 = vunpack.c.l.b16 %v719
          %v756 = vunpack.c.l.b16 %v720
          %v757 = vunpack.c.l.b16 %v721
          %v758 = vpack.c.b16 %v743, %v742
          %v759 = vpack.c.b16 %v745, %v744
          %v760 = vpack.c.b16 %v747, %v746
          %v761 = vpack.c.b16 %v749, %v748
          %v762 = vpack.c.b16 %v751, %v750
          %v763 = vpack.c.b16 %v753, %v752
          %v764 = vpack.c.b16 %v755, %v754
          %v765 = vpack.c.b16 %v757, %v756
          %774 = vmatpush.bf16.msra.mxu0 %v765
          %775 = vmatpush.bf16.msra.mxu0 %v764
          %776 = vmatpush.bf16.msra.mxu0 %v763
          %777 = vmatpush.bf16.msra.mxu0 %v762
          %778 = vmatpush.bf16.msra.mxu0 %v761
          %779 = vmatpush.bf16.msra.mxu0 %v760
          %780 = vmatpush.bf16.msra.mxu0 %v759
          %781 = vmatpush.bf16.msra.mxu0 %v758
          %782 = vmatmul.bf16.gmra.mxu0 %v705
          %v783 = vpop.f32.mrf.mxu0
          %v784 = vadd.f32 %v724, %v783
          %v785 = vpop.f32.mrf.mxu0
          %786 = vdwg.mxu0
          %v787 = vmax.f32 %v784, 0.0
          %v788 = vpack.c.bf16 %v787, %v787
          %s789 = scalar_lea.vmem [#allocation13], 64
          %v790 = vld [vmem:[%s789] sm:$0xf]
          %v791 = vld [vmem:[%s789 + $0x4] sm:$0xf]
          %v792 = vld [vmem:[%s789 + $0x8] sm:$0xf]
          %v793 = vld [vmem:[%s789 + $0xc] sm:$0xf]
          %v794 = vld [vmem:[%s789 + $0x10] sm:$0xf]
          %v795 = vld [vmem:[%s789 + $0x14] sm:$0xf]
          %v796 = vld [vmem:[%s789 + $0x18] sm:$0xf]
          %v797 = vld [vmem:[%s789 + $0x1c] sm:$0xf]
          %v798 = vld [vmem:[%s789 + $0x20] sm:$0xf]
          %v799 = vld [vmem:[%s789 + $0x24] sm:$0xf]
          %v800 = vld [vmem:[%s789 + $0x28] sm:$0xf]
          %v801 = vld [vmem:[%s789 + $0x2c] sm:$0xf]
          %v802 = vld [vmem:[%s789 + $0x30] sm:$0xf]
          %v803 = vld [vmem:[%s789 + $0x34] sm:$0xf]
          %v804 = vld [vmem:[%s789 + $0x38] sm:$0xf]
          %v805 = vld [vmem:[%s789 + $0x3c] sm:$0xf]
          %s806 = scalar_lea.vmem [#allocation14], 1
          %v807 = vld [vmem:[%s806] sm:$0x1]
          %v809 = vperm.slane %v807, 0
          %v827 = vunpack.c.l.b16 %v790
          %v828 = vunpack.c.l.b16 %v791
          %v829 = vunpack.c.l.b16 %v792
          %v830 = vunpack.c.l.b16 %v793
          %v831 = vunpack.c.l.b16 %v794
          %v832 = vunpack.c.l.b16 %v795
          %v833 = vunpack.c.l.b16 %v796
          %v834 = vunpack.c.l.b16 %v797
          %v835 = vunpack.c.l.b16 %v798
          %v836 = vunpack.c.l.b16 %v799
          %v837 = vunpack.c.l.b16 %v800
          %v838 = vunpack.c.l.b16 %v801
          %v839 = vunpack.c.l.b16 %v802
          %v840 = vunpack.c.l.b16 %v803
          %v841 = vunpack.c.l.b16 %v804
          %v842 = vunpack.c.l.b16 %v805
          %v843 = vpack.c.b16 %v828, %v827
          %v844 = vpack.c.b16 %v830, %v829
          %v845 = vpack.c.b16 %v832, %v831
          %v846 = vpack.c.b16 %v834, %v833
          %v847 = vpack.c.b16 %v836, %v835
          %v848 = vpack.c.b16 %v838, %v837
          %v849 = vpack.c.b16 %v840, %v839
          %v850 = vpack.c.b16 %v842, %v841
          %859 = vmatpush.bf16.msra.mxu0 %v850
          %860 = vmatpush.bf16.msra.mxu0 %v849
          %861 = vmatpush.bf16.msra.mxu0 %v848
          %862 = vmatpush.bf16.msra.mxu0 %v847
          %863 = vmatpush.bf16.msra.mxu0 %v846
          %864 = vmatpush.bf16.msra.mxu0 %v845
          %865 = vmatpush.bf16.msra.mxu0 %v844
          %866 = vmatpush.bf16.msra.mxu0 %v843
          %867 = vmatmul.bf16.gmra.mxu0 %v788
          %v868 = vpop.f32.mrf.mxu0
          %v869 = vadd.f32 %v809, %v868
          %v870 = vpop.f32.mrf.mxu0
          %871 = vdwg.mxu0
          %v872 = vmax.f32 %v869, 0.0
          %v873 = vpack.c.bf16 %v872, %v872
          %s874 = scalar_lea.vmem [#allocation13], 128
          %v875 = vld [vmem:[%s874] sm:$0xf]
          %v876 = vld [vmem:[%s874 + $0x4] sm:$0xf]
          %v877 = vld [vmem:[%s874 + $0x8] sm:$0xf]
          %v878 = vld [vmem:[%s874 + $0xc] sm:$0xf]
          %v879 = vld [vmem:[%s874 + $0x10] sm:$0xf]
          %v880 = vld [vmem:[%s874 + $0x14] sm:$0xf]
          %v881 = vld [vmem:[%s874 + $0x18] sm:$0xf]
          %v882 = vld [vmem:[%s874 + $0x1c] sm:$0xf]
          %v883 = vld [vmem:[%s874 + $0x20] sm:$0xf]
          %v884 = vld [vmem:[%s874 + $0x24] sm:$0xf]
          %v885 = vld [vmem:[%s874 + $0x28] sm:$0xf]
          %v886 = vld [vmem:[%s874 + $0x2c] sm:$0xf]
          %v887 = vld [vmem:[%s874 + $0x30] sm:$0xf]
          %v888 = vld [vmem:[%s874 + $0x34] sm:$0xf]
          %v889 = vld [vmem:[%s874 + $0x38] sm:$0xf]
          %v890 = vld [vmem:[%s874 + $0x3c] sm:$0xf]
          %s891 = scalar_lea.vmem [#allocation14], 2
          %v892 = vld [vmem:[%s891] sm:$0x1]
          %v894 = vperm.slane %v892, 0
          %v912 = vunpack.c.l.b16 %v875
          %v913 = vunpack.c.l.b16 %v876
          %v914 = vunpack.c.l.b16 %v877
          %v915 = vunpack.c.l.b16 %v878
          %v916 = vunpack.c.l.b16 %v879
          %v917 = vunpack.c.l.b16 %v880
          %v918 = vunpack.c.l.b16 %v881
          %v919 = vunpack.c.l.b16 %v882
          %v920 = vunpack.c.l.b16 %v883
          %v921 = vunpack.c.l.b16 %v884
          %v922 = vunpack.c.l.b16 %v885
          %v923 = vunpack.c.l.b16 %v886
          %v924 = vunpack.c.l.b16 %v887
          %v925 = vunpack.c.l.b16 %v888
          %v926 = vunpack.c.l.b16 %v889
          %v927 = vunpack.c.l.b16 %v890
          %v928 = vpack.c.b16 %v913, %v912
          %v929 = vpack.c.b16 %v915, %v914
          %v930 = vpack.c.b16 %v917, %v916
          %v931 = vpack.c.b16 %v919, %v918
          %v932 = vpack.c.b16 %v921, %v920
          %v933 = vpack.c.b16 %v923, %v922
          %v934 = vpack.c.b16 %v925, %v924
          %v935 = vpack.c.b16 %v927, %v926
          %944 = vmatpush.bf16.msra.mxu0 %v935
          %945 = vmatpush.bf16.msra.mxu0 %v934
          %946 = vmatpush.bf16.msra.mxu0 %v933
          %947 = vmatpush.bf16.msra.mxu0 %v932
          %948 = vmatpush.bf16.msra.mxu0 %v931
          %949 = vmatpush.bf16.msra.mxu0 %v930
          %950 = vmatpush.bf16.msra.mxu0 %v929
          %951 = vmatpush.bf16.msra.mxu0 %v928
          %952 = vmatmul.bf16.gmra.mxu0 %v873
          %v953 = vpop.f32.mrf.mxu0
          %v954 = vadd.f32 %v894, %v953
          %v955 = vpop.f32.mrf.mxu0
          %956 = vdwg.mxu0
          %v957 = vmax.f32 %v954, 0.0
          %v958 = vpack.c.bf16 %v957, %v957
          %s959 = scalar_lea.vmem [#allocation13], 192
          %v960 = vld [vmem:[%s959] sm:$0xf]
          %v961 = vld [vmem:[%s959 + $0x4] sm:$0xf]
          %v962 = vld [vmem:[%s959 + $0x8] sm:$0xf]
          %v963 = vld [vmem:[%s959 + $0xc] sm:$0xf]
          %v964 = vld [vmem:[%s959 + $0x10] sm:$0xf]
          %v965 = vld [vmem:[%s959 + $0x14] sm:$0xf]
          %v966 = vld [vmem:[%s959 + $0x18] sm:$0xf]
          %v967 = vld [vmem:[%s959 + $0x1c] sm:$0xf]
          %v968 = vld [vmem:[%s959 + $0x20] sm:$0xf]
          %v969 = vld [vmem:[%s959 + $0x24] sm:$0xf]
          %v970 = vld [vmem:[%s959 + $0x28] sm:$0xf]
          %v971 = vld [vmem:[%s959 + $0x2c] sm:$0xf]
          %v972 = vld [vmem:[%s959 + $0x30] sm:$0xf]
          %v973 = vld [vmem:[%s959 + $0x34] sm:$0xf]
          %v974 = vld [vmem:[%s959 + $0x38] sm:$0xf]
          %v975 = vld [vmem:[%s959 + $0x3c] sm:$0xf]
          %s976 = scalar_lea.vmem [#allocation14], 3
          %v977 = vld [vmem:[%s976] sm:$0x1]
          %v979 = vperm.slane %v977, 0
          %v997 = vunpack.c.l.b16 %v960
          %v998 = vunpack.c.l.b16 %v961
          %v999 = vunpack.c.l.b16 %v962
          %v1000 = vunpack.c.l.b16 %v963
          %v1001 = vunpack.c.l.b16 %v964
          %v1002 = vunpack.c.l.b16 %v965
          %v1003 = vunpack.c.l.b16 %v966
          %v1004 = vunpack.c.l.b16 %v967
          %v1005 = vunpack.c.l.b16 %v968
          %v1006 = vunpack.c.l.b16 %v969
          %v1007 = vunpack.c.l.b16 %v970
          %v1008 = vunpack.c.l.b16 %v971
          %v1009 = vunpack.c.l.b16 %v972
          %v1010 = vunpack.c.l.b16 %v973
          %v1011 = vunpack.c.l.b16 %v974
          %v1012 = vunpack.c.l.b16 %v975
          %v1013 = vpack.c.b16 %v998, %v997
          %v1014 = vpack.c.b16 %v1000, %v999
          %v1015 = vpack.c.b16 %v1002, %v1001
          %v1016 = vpack.c.b16 %v1004, %v1003
          %v1017 = vpack.c.b16 %v1006, %v1005
          %v1018 = vpack.c.b16 %v1008, %v1007
          %v1019 = vpack.c.b16 %v1010, %v1009
          %v1020 = vpack.c.b16 %v1012, %v1011
          %1029 = vmatpush.bf16.msra.mxu0 %v1020
          %1030 = vmatpush.bf16.msra.mxu0 %v1019
          %1031 = vmatpush.bf16.msra.mxu0 %v1018
          %1032 = vmatpush.bf16.msra.mxu0 %v1017
          %1033 = vmatpush.bf16.msra.mxu0 %v1016
          %1034 = vmatpush.bf16.msra.mxu0 %v1015
          %1035 = vmatpush.bf16.msra.mxu0 %v1014
          %1036 = vmatpush.bf16.msra.mxu0 %v1013
          %1037 = vmatmul.bf16.gmra.mxu0 %v958
          %v1038 = vpop.f32.mrf.mxu0
          %v1039 = vadd.f32 %v979, %v1038
          %v1040 = vpop.f32.mrf.mxu0
          %1041 = vdwg.mxu0
          %v1042 = vmul.f32 %v1039, %v1039
          %1043 = vadd.xlane.f32.xlu0 %v1042
          %v1044 = vpop.xlane.xlu0 %1043
          %v1045 = vmax.f32 %v1044, 1e-24
          %v1046 = vrsqrt.pop %v1045
          %v1047 = vmul.f32 %v1046, %v1045
          %v1048 = vmul.f32 %v1047, %v1046
          %v1049 = vmul.f32 0.5, %v1048
          %v1050 = vsub.f32 1.5, %v1049
          %v1051 = vmul.f32 %v1046, %v1050
          %vm1052 = vweird.f32 %v1045
          %vm1053 = vweird.f32 %v1046
          %vm1054 = vmor %vm1052, %vm1053
          %v1055 = vsel %vm1054, %v1046, %v1051
          %v1056 = vmul.f32 %v1039, %v1055
          %v1057 = vld [vmem:[#allocation8] sm:$0xff]
          %v1058 = vpack.c.bf16 %v1057, %v1057
          %v1059 = vld [vmem:[#allocation16] sm:$0xf]
          %v1060 = vld [vmem:[#allocation16 + $0x4] sm:$0xf]
          %v1061 = vld [vmem:[#allocation16 + $0x8] sm:$0xf]
          %v1062 = vld [vmem:[#allocation16 + $0xc] sm:$0xf]
          %v1063 = vld [vmem:[#allocation17] sm:$0x1]
          %v1065 = vperm.slane %v1063, 0
          %v1071 = vunpack.c.l.b16 %v1059
          %v1072 = vunpack.c.l.b16 %v1060
          %v1073 = vunpack.c.l.b16 %v1061
          %v1074 = vunpack.c.l.b16 %v1062
          %v1075 = vpack.c.b16 %v1072, %v1071
          %v1076 = vpack.c.b16 %v1074, %v1073
          %v1080 = vsel %vm687, %v1058, 0
          %1082 = vmatpush.bf16.msra.mxu0 0
          %1083 = vmatpush.bf16.msra.mxu0 0
          %1084 = vmatpush.bf16.msra.mxu0 0
          %1085 = vmatpush.bf16.msra.mxu0 0
          %1086 = vmatpush.bf16.msra.mxu0 0
          %1087 = vmatpush.bf16.msra.mxu0 0
          %1088 = vmatpush.bf16.msra.mxu0 %v1076
          %1089 = vmatpush.bf16.msra.mxu0 %v1075
          %1090 = vmatmul.bf16.gmra.mxu0 %v1080
          %v1091 = vpop.f32.mrf.mxu0
          %v1092 = vadd.f32 %v1065, %v1091
          %v1093 = vpop.f32.mrf.mxu0
          %1094 = vdwg.mxu0
          %v1095 = vmax.f32 %v1092, 0.0
          %v1096 = vpack.c.bf16 %v1095, %v1095
          %v1097 = vld [vmem:[#allocation19] sm:$0xf]
          %v1098 = vld [vmem:[#allocation19 + $0x4] sm:$0xf]
          %v1099 = vld [vmem:[#allocation19 + $0x8] sm:$0xf]
          %v1100 = vld [vmem:[#allocation19 + $0xc] sm:$0xf]
          %v1101 = vld [vmem:[#allocation19 + $0x10] sm:$0xf]
          %v1102 = vld [vmem:[#allocation19 + $0x14] sm:$0xf]
          %v1103 = vld [vmem:[#allocation19 + $0x18] sm:$0xf]
          %v1104 = vld [vmem:[#allocation19 + $0x1c] sm:$0xf]
          %v1105 = vld [vmem:[#allocation19 + $0x20] sm:$0xf]
          %v1106 = vld [vmem:[#allocation19 + $0x24] sm:$0xf]
          %v1107 = vld [vmem:[#allocation19 + $0x28] sm:$0xf]
          %v1108 = vld [vmem:[#allocation19 + $0x2c] sm:$0xf]
          %v1109 = vld [vmem:[#allocation19 + $0x30] sm:$0xf]
          %v1110 = vld [vmem:[#allocation19 + $0x34] sm:$0xf]
          %v1111 = vld [vmem:[#allocation19 + $0x38] sm:$0xf]
          %v1112 = vld [vmem:[#allocation19 + $0x3c] sm:$0xf]
          %v1113 = vld [vmem:[#allocation20] sm:$0x1]
          %v1115 = vperm.slane %v1113, 0
          %v1133 = vunpack.c.l.b16 %v1097
          %v1134 = vunpack.c.l.b16 %v1098
          %v1135 = vunpack.c.l.b16 %v1099
          %v1136 = vunpack.c.l.b16 %v1100
          %v1137 = vunpack.c.l.b16 %v1101
          %v1138 = vunpack.c.l.b16 %v1102
          %v1139 = vunpack.c.l.b16 %v1103
          %v1140 = vunpack.c.l.b16 %v1104
          %v1141 = vunpack.c.l.b16 %v1105
          %v1142 = vunpack.c.l.b16 %v1106
          %v1143 = vunpack.c.l.b16 %v1107
          %v1144 = vunpack.c.l.b16 %v1108
          %v1145 = vunpack.c.l.b16 %v1109
          %v1146 = vunpack.c.l.b16 %v1110
          %v1147 = vunpack.c.l.b16 %v1111
          %v1148 = vunpack.c.l.b16 %v1112
          %v1149 = vpack.c.b16 %v1134, %v1133
          %v1150 = vpack.c.b16 %v1136, %v1135
          %v1151 = vpack.c.b16 %v1138, %v1137
          %v1152 = vpack.c.b16 %v1140, %v1139
          %v1153 = vpack.c.b16 %v1142, %v1141
          %v1154 = vpack.c.b16 %v1144, %v1143
          %v1155 = vpack.c.b16 %v1146, %v1145
          %v1156 = vpack.c.b16 %v1148, %v1147
          %1165 = vmatpush.bf16.msra.mxu0 %v1156
          %1166 = vmatpush.bf16.msra.mxu0 %v1155
          %1167 = vmatpush.bf16.msra.mxu0 %v1154
          %1168 = vmatpush.bf16.msra.mxu0 %v1153
          %1169 = vmatpush.bf16.msra.mxu0 %v1152
          %1170 = vmatpush.bf16.msra.mxu0 %v1151
          %1171 = vmatpush.bf16.msra.mxu0 %v1150
          %1172 = vmatpush.bf16.msra.mxu0 %v1149
          %1173 = vmatmul.bf16.gmra.mxu0 %v1096
          %v1174 = vpop.f32.mrf.mxu0
          %v1175 = vadd.f32 %v1115, %v1174
          %v1176 = vpop.f32.mrf.mxu0
          %1177 = vdwg.mxu0
          %v1178 = vmax.f32 %v1175, 0.0
          %v1179 = vpack.c.bf16 %v1178, %v1178
          %s1180 = scalar_lea.vmem [#allocation19], 64
          %v1181 = vld [vmem:[%s1180] sm:$0xf]
          %v1182 = vld [vmem:[%s1180 + $0x4] sm:$0xf]
          %v1183 = vld [vmem:[%s1180 + $0x8] sm:$0xf]
          %v1184 = vld [vmem:[%s1180 + $0xc] sm:$0xf]
          %v1185 = vld [vmem:[%s1180 + $0x10] sm:$0xf]
          %v1186 = vld [vmem:[%s1180 + $0x14] sm:$0xf]
          %v1187 = vld [vmem:[%s1180 + $0x18] sm:$0xf]
          %v1188 = vld [vmem:[%s1180 + $0x1c] sm:$0xf]
          %v1189 = vld [vmem:[%s1180 + $0x20] sm:$0xf]
          %v1190 = vld [vmem:[%s1180 + $0x24] sm:$0xf]
          %v1191 = vld [vmem:[%s1180 + $0x28] sm:$0xf]
          %v1192 = vld [vmem:[%s1180 + $0x2c] sm:$0xf]
          %v1193 = vld [vmem:[%s1180 + $0x30] sm:$0xf]
          %v1194 = vld [vmem:[%s1180 + $0x34] sm:$0xf]
          %v1195 = vld [vmem:[%s1180 + $0x38] sm:$0xf]
          %v1196 = vld [vmem:[%s1180 + $0x3c] sm:$0xf]
          %s1197 = scalar_lea.vmem [#allocation20], 1
          %v1198 = vld [vmem:[%s1197] sm:$0x1]
          %v1200 = vperm.slane %v1198, 0
          %v1218 = vunpack.c.l.b16 %v1181
          %v1219 = vunpack.c.l.b16 %v1182
          %v1220 = vunpack.c.l.b16 %v1183
          %v1221 = vunpack.c.l.b16 %v1184
          %v1222 = vunpack.c.l.b16 %v1185
          %v1223 = vunpack.c.l.b16 %v1186
          %v1224 = vunpack.c.l.b16 %v1187
          %v1225 = vunpack.c.l.b16 %v1188
          %v1226 = vunpack.c.l.b16 %v1189
          %v1227 = vunpack.c.l.b16 %v1190
          %v1228 = vunpack.c.l.b16 %v1191
          %v1229 = vunpack.c.l.b16 %v1192
          %v1230 = vunpack.c.l.b16 %v1193
          %v1231 = vunpack.c.l.b16 %v1194
          %v1232 = vunpack.c.l.b16 %v1195
          %v1233 = vunpack.c.l.b16 %v1196
          %v1234 = vpack.c.b16 %v1219, %v1218
          %v1235 = vpack.c.b16 %v1221, %v1220
          %v1236 = vpack.c.b16 %v1223, %v1222
          %v1237 = vpack.c.b16 %v1225, %v1224
          %v1238 = vpack.c.b16 %v1227, %v1226
          %v1239 = vpack.c.b16 %v1229, %v1228
          %v1240 = vpack.c.b16 %v1231, %v1230
          %v1241 = vpack.c.b16 %v1233, %v1232
          %1250 = vmatpush.bf16.msra.mxu0 %v1241
          %1251 = vmatpush.bf16.msra.mxu0 %v1240
          %1252 = vmatpush.bf16.msra.mxu0 %v1239
          %1253 = vmatpush.bf16.msra.mxu0 %v1238
          %1254 = vmatpush.bf16.msra.mxu0 %v1237
          %1255 = vmatpush.bf16.msra.mxu0 %v1236
          %1256 = vmatpush.bf16.msra.mxu0 %v1235
          %1257 = vmatpush.bf16.msra.mxu0 %v1234
          %1258 = vmatmul.bf16.gmra.mxu0 %v1179
          %v1259 = vpop.f32.mrf.mxu0
          %v1260 = vadd.f32 %v1200, %v1259
          %v1261 = vpop.f32.mrf.mxu0
          %1262 = vdwg.mxu0
          %v1263 = vmax.f32 %v1260, 0.0
          %v1264 = vpack.c.bf16 %v1263, %v1263
          %s1265 = scalar_lea.vmem [#allocation19], 128
          %v1266 = vld [vmem:[%s1265] sm:$0xf]
          %v1267 = vld [vmem:[%s1265 + $0x4] sm:$0xf]
          %v1268 = vld [vmem:[%s1265 + $0x8] sm:$0xf]
          %v1269 = vld [vmem:[%s1265 + $0xc] sm:$0xf]
          %v1270 = vld [vmem:[%s1265 + $0x10] sm:$0xf]
          %v1271 = vld [vmem:[%s1265 + $0x14] sm:$0xf]
          %v1272 = vld [vmem:[%s1265 + $0x18] sm:$0xf]
          %v1273 = vld [vmem:[%s1265 + $0x1c] sm:$0xf]
          %v1274 = vld [vmem:[%s1265 + $0x20] sm:$0xf]
          %v1275 = vld [vmem:[%s1265 + $0x24] sm:$0xf]
          %v1276 = vld [vmem:[%s1265 + $0x28] sm:$0xf]
          %v1277 = vld [vmem:[%s1265 + $0x2c] sm:$0xf]
          %v1278 = vld [vmem:[%s1265 + $0x30] sm:$0xf]
          %v1279 = vld [vmem:[%s1265 + $0x34] sm:$0xf]
          %v1280 = vld [vmem:[%s1265 + $0x38] sm:$0xf]
          %v1281 = vld [vmem:[%s1265 + $0x3c] sm:$0xf]
          %s1282 = scalar_lea.vmem [#allocation20], 2
          %v1283 = vld [vmem:[%s1282] sm:$0x1]
          %v1285 = vperm.slane %v1283, 0
          %v1303 = vunpack.c.l.b16 %v1266
          %v1304 = vunpack.c.l.b16 %v1267
          %v1305 = vunpack.c.l.b16 %v1268
          %v1306 = vunpack.c.l.b16 %v1269
          %v1307 = vunpack.c.l.b16 %v1270
          %v1308 = vunpack.c.l.b16 %v1271
          %v1309 = vunpack.c.l.b16 %v1272
          %v1310 = vunpack.c.l.b16 %v1273
          %v1311 = vunpack.c.l.b16 %v1274
          %v1312 = vunpack.c.l.b16 %v1275
          %v1313 = vunpack.c.l.b16 %v1276
          %v1314 = vunpack.c.l.b16 %v1277
          %v1315 = vunpack.c.l.b16 %v1278
          %v1316 = vunpack.c.l.b16 %v1279
          %v1317 = vunpack.c.l.b16 %v1280
          %v1318 = vunpack.c.l.b16 %v1281
          %v1319 = vpack.c.b16 %v1304, %v1303
          %v1320 = vpack.c.b16 %v1306, %v1305
          %v1321 = vpack.c.b16 %v1308, %v1307
          %v1322 = vpack.c.b16 %v1310, %v1309
          %v1323 = vpack.c.b16 %v1312, %v1311
          %v1324 = vpack.c.b16 %v1314, %v1313
          %v1325 = vpack.c.b16 %v1316, %v1315
          %v1326 = vpack.c.b16 %v1318, %v1317
          %1335 = vmatpush.bf16.msra.mxu0 %v1326
          %1336 = vmatpush.bf16.msra.mxu0 %v1325
          %1337 = vmatpush.bf16.msra.mxu0 %v1324
          %1338 = vmatpush.bf16.msra.mxu0 %v1323
          %1339 = vmatpush.bf16.msra.mxu0 %v1322
          %1340 = vmatpush.bf16.msra.mxu0 %v1321
          %1341 = vmatpush.bf16.msra.mxu0 %v1320
          %1342 = vmatpush.bf16.msra.mxu0 %v1319
          %1343 = vmatmul.bf16.gmra.mxu0 %v1264
          %v1344 = vpop.f32.mrf.mxu0
          %v1345 = vadd.f32 %v1285, %v1344
          %v1346 = vpop.f32.mrf.mxu0
          %1347 = vdwg.mxu0
          %v1348 = vmax.f32 %v1345, 0.0
          %v1349 = vpack.c.bf16 %v1348, %v1348
          %s1350 = scalar_lea.vmem [#allocation19], 192
          %v1351 = vld [vmem:[%s1350] sm:$0xf]
          %v1352 = vld [vmem:[%s1350 + $0x4] sm:$0xf]
          %v1353 = vld [vmem:[%s1350 + $0x8] sm:$0xf]
          %v1354 = vld [vmem:[%s1350 + $0xc] sm:$0xf]
          %v1355 = vld [vmem:[%s1350 + $0x10] sm:$0xf]
          %v1356 = vld [vmem:[%s1350 + $0x14] sm:$0xf]
          %v1357 = vld [vmem:[%s1350 + $0x18] sm:$0xf]
          %v1358 = vld [vmem:[%s1350 + $0x1c] sm:$0xf]
          %v1359 = vld [vmem:[%s1350 + $0x20] sm:$0xf]
          %v1360 = vld [vmem:[%s1350 + $0x24] sm:$0xf]
          %v1361 = vld [vmem:[%s1350 + $0x28] sm:$0xf]
          %v1362 = vld [vmem:[%s1350 + $0x2c] sm:$0xf]
          %v1363 = vld [vmem:[%s1350 + $0x30] sm:$0xf]
          %v1364 = vld [vmem:[%s1350 + $0x34] sm:$0xf]
          %v1365 = vld [vmem:[%s1350 + $0x38] sm:$0xf]
          %v1366 = vld [vmem:[%s1350 + $0x3c] sm:$0xf]
          %s1367 = scalar_lea.vmem [#allocation20], 3
          %v1368 = vld [vmem:[%s1367] sm:$0x1]
          %v1370 = vperm.slane %v1368, 0
          %v1388 = vunpack.c.l.b16 %v1351
          %v1389 = vunpack.c.l.b16 %v1352
          %v1390 = vunpack.c.l.b16 %v1353
          %v1391 = vunpack.c.l.b16 %v1354
          %v1392 = vunpack.c.l.b16 %v1355
          %v1393 = vunpack.c.l.b16 %v1356
          %v1394 = vunpack.c.l.b16 %v1357
          %v1395 = vunpack.c.l.b16 %v1358
          %v1396 = vunpack.c.l.b16 %v1359
          %v1397 = vunpack.c.l.b16 %v1360
          %v1398 = vunpack.c.l.b16 %v1361
          %v1399 = vunpack.c.l.b16 %v1362
          %v1400 = vunpack.c.l.b16 %v1363
          %v1401 = vunpack.c.l.b16 %v1364
          %v1402 = vunpack.c.l.b16 %v1365
          %v1403 = vunpack.c.l.b16 %v1366
          %v1404 = vpack.c.b16 %v1389, %v1388
          %v1405 = vpack.c.b16 %v1391, %v1390
          %v1406 = vpack.c.b16 %v1393, %v1392
          %v1407 = vpack.c.b16 %v1395, %v1394
          %v1408 = vpack.c.b16 %v1397, %v1396
          %v1409 = vpack.c.b16 %v1399, %v1398
          %v1410 = vpack.c.b16 %v1401, %v1400
          %v1411 = vpack.c.b16 %v1403, %v1402
          %1420 = vmatpush.bf16.msra.mxu0 %v1411
          %1421 = vmatpush.bf16.msra.mxu0 %v1410
          %1422 = vmatpush.bf16.msra.mxu0 %v1409
          %1423 = vmatpush.bf16.msra.mxu0 %v1408
          %1424 = vmatpush.bf16.msra.mxu0 %v1407
          %1425 = vmatpush.bf16.msra.mxu0 %v1406
          %1426 = vmatpush.bf16.msra.mxu0 %v1405
          %1427 = vmatpush.bf16.msra.mxu0 %v1404
          %1428 = vmatmul.bf16.gmra.mxu0 %v1349
          %v1429 = vpop.f32.mrf.mxu0
          %v1430 = vadd.f32 %v1370, %v1429
          %v1431 = vpop.f32.mrf.mxu0
          %1432 = vdwg.mxu0
          %v1433 = vmul.f32 %v1430, %v1430
          %1434 = vadd.xlane.f32.xlu0 %v1433
          %v1435 = vpop.xlane.xlu0 %1434
          %v1436 = vmax.f32 %v1435, 1e-24
          %v1437 = vrsqrt.pop %v1436
          %v1438 = vmul.f32 %v1437, %v1436
          %v1439 = vmul.f32 %v1438, %v1437
          %v1440 = vmul.f32 0.5, %v1439
          %v1441 = vsub.f32 1.5, %v1440
          %v1442 = vmul.f32 %v1437, %v1441
          %vm1443 = vweird.f32 %v1436
          %vm1444 = vweird.f32 %v1437
          %vm1445 = vmor %vm1443, %vm1444
          %v1446 = vsel %vm1445, %v1437, %v1442
          %v1447 = vmul.f32 %v1430, %v1446
          %v1448 = vpack.c.bf16 %v1447, %v1447
          %1449 = vst [vmem:[#allocation2] sm:$0xf] %v1448
          %1450 = vst.msk [vmem:[#allocation3] sm:$0xff] %vm687, %v1056
          %1452 = vrot.lane.b32.xlu0 %v1056, 96
          %v1453 = vpop.permute.xlu0 %1452
          %s1455 = scalar_lea.vmem [#allocation3], 8
          %1456 = vst.msk [vmem:[%s1455] sm:$0xff] %vm687, %v1453
          %1457 = vrot.lane.b32.xlu0 %v1056, 64
          %v1458 = vpop.permute.xlu0 %1457
          %s1460 = scalar_lea.vmem [#allocation3], 16
          %1461 = vst.msk [vmem:[%s1460] sm:$0xff] %vm687, %v1458
          %1462 = vrot.lane.b32.xlu0 %v1056, 32
          %v1463 = vpop.permute.xlu0 %1462
          %s1465 = scalar_lea.vmem [#allocation3], 24
          %1466 = vst.msk [vmem:[%s1465] sm:$0xff] %vm687, %v1463
          %1467 = vst [vmem:[#allocation4] sm:$0xff] 0.0
        $region132: #{clip_classifier_forward.1} parent=75 // pred_fallthru
          _
        %v1468 = vld [vmem:[#allocation2] sm:$0xf]
        %s1469 = smul.u32 %s33, 8
        %s1470 = scalar_lea.vmem [#allocation3], %s1469
        %v1471 = vld [vmem:[%s1470] sm:$0xff]
        %v1472 = vld [vmem:[#allocation4] sm:$0xff]
        %v1473 = vld [vmem:[%s609] sm:$0xf]
        %v1474 = vld [vmem:[%s609 + $0x4] sm:$0xf]
        %v1475 = vld [vmem:[%s609 + $0x8] sm:$0xf]
        %v1476 = vld [vmem:[%s609 + $0xc] sm:$0xf]
        %v1477 = vld [vmem:[%s609 + $0x10] sm:$0xf]
        %v1478 = vld [vmem:[%s609 + $0x14] sm:$0xf]
        %v1479 = vld [vmem:[%s609 + $0x18] sm:$0xf]
        %v1480 = vld [vmem:[%s609 + $0x1c] sm:$0xf]
        %v1481 = vld [vmem:[%s609 + $0x20] sm:$0xf]
        %v1482 = vld [vmem:[%s609 + $0x24] sm:$0xf]
        %v1483 = vld [vmem:[%s609 + $0x28] sm:$0xf]
        %v1484 = vld [vmem:[%s609 + $0x2c] sm:$0xf]
        %v1485 = vld [vmem:[%s609 + $0x30] sm:$0xf]
        %v1486 = vld [vmem:[%s609 + $0x34] sm:$0xf]
        %v1487 = vld [vmem:[%s609 + $0x38] sm:$0xf]
        %v1488 = vld [vmem:[%s609 + $0x3c] sm:$0xf]
        %v1505 = vunpack.c.l.b16 %v1473
        %v1506 = vunpack.c.l.b16 %v1474
        %v1507 = vunpack.c.l.b16 %v1475
        %v1508 = vunpack.c.l.b16 %v1476
        %v1509 = vunpack.c.l.b16 %v1477
        %v1510 = vunpack.c.l.b16 %v1478
        %v1511 = vunpack.c.l.b16 %v1479
        %v1512 = vunpack.c.l.b16 %v1480
        %v1513 = vunpack.c.l.b16 %v1481
        %v1514 = vunpack.c.l.b16 %v1482
        %v1515 = vunpack.c.l.b16 %v1483
        %v1516 = vunpack.c.l.b16 %v1484
        %v1517 = vunpack.c.l.b16 %v1485
        %v1518 = vunpack.c.l.b16 %v1486
        %v1519 = vunpack.c.l.b16 %v1487
        %v1520 = vunpack.c.l.b16 %v1488
        %v1521 = vpack.c.b16 %v1506, %v1505
        %v1522 = vpack.c.b16 %v1508, %v1507
        %v1523 = vpack.c.b16 %v1510, %v1509
        %v1524 = vpack.c.b16 %v1512, %v1511
        %v1525 = vpack.c.b16 %v1514, %v1513
        %v1526 = vpack.c.b16 %v1516, %v1515
        %v1527 = vpack.c.b16 %v1518, %v1517
        %v1528 = vpack.c.b16 %v1520, %v1519
        %1537 = vmatpush.bf16.msra.mxu0 %v1528
        %1538 = vmatpush.bf16.msra.mxu0 %v1527
        %1539 = vmatpush.bf16.msra.mxu0 %v1526
        %1540 = vmatpush.bf16.msra.mxu0 %v1525
        %1541 = vmatpush.bf16.msra.mxu0 %v1524
        %1542 = vmatpush.bf16.msra.mxu0 %v1523
        %1543 = vmatpush.bf16.msra.mxu0 %v1522
        %1544 = vmatpush.bf16.msra.mxu0 %v1521
        %1545 = vmatmul.bf16.gmra.mxu0 %v1468
        %v1546 = vpop.f32.mrf.mxu0
        %v1547 = vadd.f32 0.0, %v1546
        %v1548 = vpop.f32.mrf.mxu0
        %1549 = vdwg.mxu0
        %1551 = vset.pattern.permute.xlu0 0
        %1552 = vperm.xlu0 %1551, %v1471
        %v1553 = vpop.permute.xlu0 %1552
        %v1555 = vmul.f32 %v1553, %v1547
        %v1556 = vadd.f32 %v1472, %v1555
        %s1557 = scalar_lea.vmem %s609, 64 [#allocation22]
        %v1558 = vld [vmem:[%s1557] sm:$0xf]
        %v1559 = vld [vmem:[%s1557 + $0x4] sm:$0xf]
        %v1560 = vld [vmem:[%s1557 + $0x8] sm:$0xf]
        %v1561 = vld [vmem:[%s1557 + $0xc] sm:$0xf]
        %v1562 = vld [vmem:[%s1557 + $0x10] sm:$0xf]
        %v1563 = vld [vmem:[%s1557 + $0x14] sm:$0xf]
        %v1564 = vld [vmem:[%s1557 + $0x18] sm:$0xf]
        %v1565 = vld [vmem:[%s1557 + $0x1c] sm:$0xf]
        %v1566 = vld [vmem:[%s1557 + $0x20] sm:$0xf]
        %v1567 = vld [vmem:[%s1557 + $0x24] sm:$0xf]
        %v1568 = vld [vmem:[%s1557 + $0x28] sm:$0xf]
        %v1569 = vld [vmem:[%s1557 + $0x2c] sm:$0xf]
        %v1570 = vld [vmem:[%s1557 + $0x30] sm:$0xf]
        %v1571 = vld [vmem:[%s1557 + $0x34] sm:$0xf]
        %v1572 = vld [vmem:[%s1557 + $0x38] sm:$0xf]
        %v1573 = vld [vmem:[%s1557 + $0x3c] sm:$0xf]
        %v1590 = vunpack.c.l.b16 %v1558
        %v1591 = vunpack.c.l.b16 %v1559
        %v1592 = vunpack.c.l.b16 %v1560
        %v1593 = vunpack.c.l.b16 %v1561
        %v1594 = vunpack.c.l.b16 %v1562
        %v1595 = vunpack.c.l.b16 %v1563
        %v1596 = vunpack.c.l.b16 %v1564
        %v1597 = vunpack.c.l.b16 %v1565
        %v1598 = vunpack.c.l.b16 %v1566
        %v1599 = vunpack.c.l.b16 %v1567
        %v1600 = vunpack.c.l.b16 %v1568
        %v1601 = vunpack.c.l.b16 %v1569
        %v1602 = vunpack.c.l.b16 %v1570
        %v1603 = vunpack.c.l.b16 %v1571
        %v1604 = vunpack.c.l.b16 %v1572
        %v1605 = vunpack.c.l.b16 %v1573
        %v1606 = vpack.c.b16 %v1591, %v1590
        %v1607 = vpack.c.b16 %v1593, %v1592
        %v1608 = vpack.c.b16 %v1595, %v1594
        %v1609 = vpack.c.b16 %v1597, %v1596
        %v1610 = vpack.c.b16 %v1599, %v1598
        %v1611 = vpack.c.b16 %v1601, %v1600
        %v1612 = vpack.c.b16 %v1603, %v1602
        %v1613 = vpack.c.b16 %v1605, %v1604
        %1622 = vmatpush.bf16.msra.mxu0 %v1613
        %1623 = vmatpush.bf16.msra.mxu0 %v1612
        %1624 = vmatpush.bf16.msra.mxu0 %v1611
        %1625 = vmatpush.bf16.msra.mxu0 %v1610
        %1626 = vmatpush.bf16.msra.mxu0 %v1609
        %1627 = vmatpush.bf16.msra.mxu0 %v1608
        %1628 = vmatpush.bf16.msra.mxu0 %v1607
        %1629 = vmatpush.bf16.msra.mxu0 %v1606
        %1630 = vmatmul.bf16.gmra.mxu0 %v1468
        %v1631 = vpop.f32.mrf.mxu0
        %v1632 = vadd.f32 0.0, %v1631
        %v1633 = vpop.f32.mrf.mxu0
        %1634 = vdwg.mxu0
        %1635 = vset.pattern.permute.xlu0 1
        %1636 = vperm.xlu0 %1635, %v1471
        %v1637 = vpop.permute.xlu0 %1636
        %v1639 = vmul.f32 %v1637, %v1632
        %v1640 = vadd.f32 %v1556, %v1639
        %s1641 = scalar_lea.vmem %s609, 128 [#allocation22]
        %v1642 = vld [vmem:[%s1641] sm:$0xf]
        %v1643 = vld [vmem:[%s1641 + $0x4] sm:$0xf]
        %v1644 = vld [vmem:[%s1641 + $0x8] sm:$0xf]
        %v1645 = vld [vmem:[%s1641 + $0xc] sm:$0xf]
        %v1646 = vld [vmem:[%s1641 + $0x10] sm:$0xf]
        %v1647 = vld [vmem:[%s1641 + $0x14] sm:$0xf]
        %v1648 = vld [vmem:[%s1641 + $0x18] sm:$0xf]
        %v1649 = vld [vmem:[%s1641 + $0x1c] sm:$0xf]
        %v1650 = vld [vmem:[%s1641 + $0x20] sm:$0xf]
        %v1651 = vld [vmem:[%s1641 + $0x24] sm:$0xf]
        %v1652 = vld [vmem:[%s1641 + $0x28] sm:$0xf]
        %v1653 = vld [vmem:[%s1641 + $0x2c] sm:$0xf]
        %v1654 = vld [vmem:[%s1641 + $0x30] sm:$0xf]
        %v1655 = vld [vmem:[%s1641 + $0x34] sm:$0xf]
        %v1656 = vld [vmem:[%s1641 + $0x38] sm:$0xf]
        %v1657 = vld [vmem:[%s1641 + $0x3c] sm:$0xf]
        %v1674 = vunpack.c.l.b16 %v1642
        %v1675 = vunpack.c.l.b16 %v1643
        %v1676 = vunpack.c.l.b16 %v1644
        %v1677 = vunpack.c.l.b16 %v1645
        %v1678 = vunpack.c.l.b16 %v1646
        %v1679 = vunpack.c.l.b16 %v1647
        %v1680 = vunpack.c.l.b16 %v1648
        %v1681 = vunpack.c.l.b16 %v1649
        %v1682 = vunpack.c.l.b16 %v1650
        %v1683 = vunpack.c.l.b16 %v1651
        %v1684 = vunpack.c.l.b16 %v1652
        %v1685 = vunpack.c.l.b16 %v1653
        %v1686 = vunpack.c.l.b16 %v1654
        %v1687 = vunpack.c.l.b16 %v1655
        %v1688 = vunpack.c.l.b16 %v1656
        %v1689 = vunpack.c.l.b16 %v1657
        %v1690 = vpack.c.b16 %v1675, %v1674
        %v1691 = vpack.c.b16 %v1677, %v1676
        %v1692 = vpack.c.b16 %v1679, %v1678
        %v1693 = vpack.c.b16 %v1681, %v1680
        %v1694 = vpack.c.b16 %v1683, %v1682
        %v1695 = vpack.c.b16 %v1685, %v1684
        %v1696 = vpack.c.b16 %v1687, %v1686
        %v1697 = vpack.c.b16 %v1689, %v1688
        %1706 = vmatpush.bf16.msra.mxu0 %v1697
        %1707 = vmatpush.bf16.msra.mxu0 %v1696
        %1708 = vmatpush.bf16.msra.mxu0 %v1695
        %1709 = vmatpush.bf16.msra.mxu0 %v1694
        %1710 = vmatpush.bf16.msra.mxu0 %v1693
        %1711 = vmatpush.bf16.msra.mxu0 %v1692
        %1712 = vmatpush.bf16.msra.mxu0 %v1691
        %1713 = vmatpush.bf16.msra.mxu0 %v1690
        %1714 = vmatmul.bf16.gmra.mxu0 %v1468
        %v1715 = vpop.f32.mrf.mxu0
        %v1716 = vadd.f32 0.0, %v1715
        %v1717 = vpop.f32.mrf.mxu0
        %1718 = vdwg.mxu0
        %1719 = vset.pattern.permute.xlu0 2
        %1720 = vperm.xlu0 %1719, %v1471
        %v1721 = vpop.permute.xlu0 %1720
        %v1723 = vmul.f32 %v1721, %v1716
        %v1724 = vadd.f32 %v1640, %v1723
        %s1725 = scalar_lea.vmem %s609, 192 [#allocation22]
        %v1726 = vld [vmem:[%s1725] sm:$0xf]
        %v1727 = vld [vmem:[%s1725 + $0x4] sm:$0xf]
        %v1728 = vld [vmem:[%s1725 + $0x8] sm:$0xf]
        %v1729 = vld [vmem:[%s1725 + $0xc] sm:$0xf]
        %v1730 = vld [vmem:[%s1725 + $0x10] sm:$0xf]
        %v1731 = vld [vmem:[%s1725 + $0x14] sm:$0xf]
        %v1732 = vld [vmem:[%s1725 + $0x18] sm:$0xf]
        %v1733 = vld [vmem:[%s1725 + $0x1c] sm:$0xf]
        %v1734 = vld [vmem:[%s1725 + $0x20] sm:$0xf]
        %v1735 = vld [vmem:[%s1725 + $0x24] sm:$0xf]
        %v1736 = vld [vmem:[%s1725 + $0x28] sm:$0xf]
        %v1737 = vld [vmem:[%s1725 + $0x2c] sm:$0xf]
        %v1738 = vld [vmem:[%s1725 + $0x30] sm:$0xf]
        %v1739 = vld [vmem:[%s1725 + $0x34] sm:$0xf]
        %v1740 = vld [vmem:[%s1725 + $0x38] sm:$0xf]
        %v1741 = vld [vmem:[%s1725 + $0x3c] sm:$0xf]
        %v1758 = vunpack.c.l.b16 %v1726
        %v1759 = vunpack.c.l.b16 %v1727
        %v1760 = vunpack.c.l.b16 %v1728
        %v1761 = vunpack.c.l.b16 %v1729
        %v1762 = vunpack.c.l.b16 %v1730
        %v1763 = vunpack.c.l.b16 %v1731
        %v1764 = vunpack.c.l.b16 %v1732
        %v1765 = vunpack.c.l.b16 %v1733
        %v1766 = vunpack.c.l.b16 %v1734
        %v1767 = vunpack.c.l.b16 %v1735
        %v1768 = vunpack.c.l.b16 %v1736
        %v1769 = vunpack.c.l.b16 %v1737
        %v1770 = vunpack.c.l.b16 %v1738
        %v1771 = vunpack.c.l.b16 %v1739
        %v1772 = vunpack.c.l.b16 %v1740
        %v1773 = vunpack.c.l.b16 %v1741
        %v1774 = vpack.c.b16 %v1759, %v1758
        %v1775 = vpack.c.b16 %v1761, %v1760
        %v1776 = vpack.c.b16 %v1763, %v1762
        %v1777 = vpack.c.b16 %v1765, %v1764
        %v1778 = vpack.c.b16 %v1767, %v1766
        %v1779 = vpack.c.b16 %v1769, %v1768
        %v1780 = vpack.c.b16 %v1771, %v1770
        %v1781 = vpack.c.b16 %v1773, %v1772
        %1790 = vmatpush.bf16.msra.mxu0 %v1781
        %1791 = vmatpush.bf16.msra.mxu0 %v1780
        %1792 = vmatpush.bf16.msra.mxu0 %v1779
        %1793 = vmatpush.bf16.msra.mxu0 %v1778
        %1794 = vmatpush.bf16.msra.mxu0 %v1777
        %1795 = vmatpush.bf16.msra.mxu0 %v1776
        %1796 = vmatpush.bf16.msra.mxu0 %v1775
        %1797 = vmatpush.bf16.msra.mxu0 %v1774
        %1798 = vmatmul.bf16.gmra.mxu0 %v1468
        %v1799 = vpop.f32.mrf.mxu0
        %v1800 = vadd.f32 0.0, %v1799
        %v1801 = vpop.f32.mrf.mxu0
        %1802 = vdwg.mxu0
        %1803 = vset.pattern.permute.xlu0 3
        %1804 = vperm.xlu0 %1803, %v1471
        %v1805 = vpop.permute.xlu0 %1804
        %v1807 = vmul.f32 %v1805, %v1800
        %v1808 = vadd.f32 %v1724, %v1807
        %s1809 = scalar_lea.vmem %s609, 256 [#allocation22]
        %v1810 = vld [vmem:[%s1809] sm:$0xf]
        %v1811 = vld [vmem:[%s1809 + $0x4] sm:$0xf]
        %v1812 = vld [vmem:[%s1809 + $0x8] sm:$0xf]
        %v1813 = vld [vmem:[%s1809 + $0xc] sm:$0xf]
        %v1814 = vld [vmem:[%s1809 + $0x10] sm:$0xf]
        %v1815 = vld [vmem:[%s1809 + $0x14] sm:$0xf]
        %v1816 = vld [vmem:[%s1809 + $0x18] sm:$0xf]
        %v1817 = vld [vmem:[%s1809 + $0x1c] sm:$0xf]
        %v1818 = vld [vmem:[%s1809 + $0x20] sm:$0xf]
        %v1819 = vld [vmem:[%s1809 + $0x24] sm:$0xf]
        %v1820 = vld [vmem:[%s1809 + $0x28] sm:$0xf]
        %v1821 = vld [vmem:[%s1809 + $0x2c] sm:$0xf]
        %v1822 = vld [vmem:[%s1809 + $0x30] sm:$0xf]
        %v1823 = vld [vmem:[%s1809 + $0x34] sm:$0xf]
        %v1824 = vld [vmem:[%s1809 + $0x38] sm:$0xf]
        %v1825 = vld [vmem:[%s1809 + $0x3c] sm:$0xf]
        %v1842 = vunpack.c.l.b16 %v1810
        %v1843 = vunpack.c.l.b16 %v1811
        %v1844 = vunpack.c.l.b16 %v1812
        %v1845 = vunpack.c.l.b16 %v1813
        %v1846 = vunpack.c.l.b16 %v1814
        %v1847 = vunpack.c.l.b16 %v1815
        %v1848 = vunpack.c.l.b16 %v1816
        %v1849 = vunpack.c.l.b16 %v1817
        %v1850 = vunpack.c.l.b16 %v1818
        %v1851 = vunpack.c.l.b16 %v1819
        %v1852 = vunpack.c.l.b16 %v1820
        %v1853 = vunpack.c.l.b16 %v1821
        %v1854 = vunpack.c.l.b16 %v1822
        %v1855 = vunpack.c.l.b16 %v1823
        %v1856 = vunpack.c.l.b16 %v1824
        %v1857 = vunpack.c.l.b16 %v1825
        %v1858 = vpack.c.b16 %v1843, %v1842
        %v1859 = vpack.c.b16 %v1845, %v1844
        %v1860 = vpack.c.b16 %v1847, %v1846
        %v1861 = vpack.c.b16 %v1849, %v1848
        %v1862 = vpack.c.b16 %v1851, %v1850
        %v1863 = vpack.c.b16 %v1853, %v1852
        %v1864 = vpack.c.b16 %v1855, %v1854
        %v1865 = vpack.c.b16 %v1857, %v1856
        %1874 = vmatpush.bf16.msra.mxu0 %v1865
        %1875 = vmatpush.bf16.msra.mxu0 %v1864
        %1876 = vmatpush.bf16.msra.mxu0 %v1863
        %1877 = vmatpush.bf16.msra.mxu0 %v1862
        %1878 = vmatpush.bf16.msra.mxu0 %v1861
        %1879 = vmatpush.bf16.msra.mxu0 %v1860
        %1880 = vmatpush.bf16.msra.mxu0 %v1859
        %1881 = vmatpush.bf16.msra.mxu0 %v1858
        %1882 = vmatmul.bf16.gmra.mxu0 %v1468
        %v1883 = vpop.f32.mrf.mxu0
        %v1884 = vadd.f32 0.0, %v1883
        %v1885 = vpop.f32.mrf.mxu0
        %1886 = vdwg.mxu0
        %1887 = vset.pattern.permute.xlu0 4
        %1888 = vperm.xlu0 %1887, %v1471
        %v1889 = vpop.permute.xlu0 %1888
        %v1891 = vmul.f32 %v1889, %v1884
        %v1892 = vadd.f32 %v1808, %v1891
        %s1893 = scalar_lea.vmem %s609, 320 [#allocation22]
        %v1894 = vld [vmem:[%s1893] sm:$0xf]
        %v1895 = vld [vmem:[%s1893 + $0x4] sm:$0xf]
        %v1896 = vld [vmem:[%s1893 + $0x8] sm:$0xf]
        %v1897 = vld [vmem:[%s1893 + $0xc] sm:$0xf]
        %v1898 = vld [vmem:[%s1893 + $0x10] sm:$0xf]
        %v1899 = vld [vmem:[%s1893 + $0x14] sm:$0xf]
        %v1900 = vld [vmem:[%s1893 + $0x18] sm:$0xf]
        %v1901 = vld [vmem:[%s1893 + $0x1c] sm:$0xf]
        %v1902 = vld [vmem:[%s1893 + $0x20] sm:$0xf]
        %v1903 = vld [vmem:[%s1893 + $0x24] sm:$0xf]
        %v1904 = vld [vmem:[%s1893 + $0x28] sm:$0xf]
        %v1905 = vld [vmem:[%s1893 + $0x2c] sm:$0xf]
        %v1906 = vld [vmem:[%s1893 + $0x30] sm:$0xf]
        %v1907 = vld [vmem:[%s1893 + $0x34] sm:$0xf]
        %v1908 = vld [vmem:[%s1893 + $0x38] sm:$0xf]
        %v1909 = vld [vmem:[%s1893 + $0x3c] sm:$0xf]
        %v1926 = vunpack.c.l.b16 %v1894
        %v1927 = vunpack.c.l.b16 %v1895
        %v1928 = vunpack.c.l.b16 %v1896
        %v1929 = vunpack.c.l.b16 %v1897
        %v1930 = vunpack.c.l.b16 %v1898
        %v1931 = vunpack.c.l.b16 %v1899
        %v1932 = vunpack.c.l.b16 %v1900
        %v1933 = vunpack.c.l.b16 %v1901
        %v1934 = vunpack.c.l.b16 %v1902
        %v1935 = vunpack.c.l.b16 %v1903
        %v1936 = vunpack.c.l.b16 %v1904
        %v1937 = vunpack.c.l.b16 %v1905
        %v1938 = vunpack.c.l.b16 %v1906
        %v1939 = vunpack.c.l.b16 %v1907
        %v1940 = vunpack.c.l.b16 %v1908
        %v1941 = vunpack.c.l.b16 %v1909
        %v1942 = vpack.c.b16 %v1927, %v1926
        %v1943 = vpack.c.b16 %v1929, %v1928
        %v1944 = vpack.c.b16 %v1931, %v1930
        %v1945 = vpack.c.b16 %v1933, %v1932
        %v1946 = vpack.c.b16 %v1935, %v1934
        %v1947 = vpack.c.b16 %v1937, %v1936
        %v1948 = vpack.c.b16 %v1939, %v1938
        %v1949 = vpack.c.b16 %v1941, %v1940
        %1958 = vmatpush.bf16.msra.mxu0 %v1949
        %1959 = vmatpush.bf16.msra.mxu0 %v1948
        %1960 = vmatpush.bf16.msra.mxu0 %v1947
        %1961 = vmatpush.bf16.msra.mxu0 %v1946
        %1962 = vmatpush.bf16.msra.mxu0 %v1945
        %1963 = vmatpush.bf16.msra.mxu0 %v1944
        %1964 = vmatpush.bf16.msra.mxu0 %v1943
        %1965 = vmatpush.bf16.msra.mxu0 %v1942
        %1966 = vmatmul.bf16.gmra.mxu0 %v1468
        %v1967 = vpop.f32.mrf.mxu0
        %v1968 = vadd.f32 0.0, %v1967
        %v1969 = vpop.f32.mrf.mxu0
        %1970 = vdwg.mxu0
        %1971 = vset.pattern.permute.xlu0 5
        %1972 = vperm.xlu0 %1971, %v1471
        %v1973 = vpop.permute.xlu0 %1972
        %v1975 = vmul.f32 %v1973, %v1968
        %v1976 = vadd.f32 %v1892, %v1975
        %s1977 = scalar_lea.vmem %s609, 384 [#allocation22]
        %v1978 = vld [vmem:[%s1977] sm:$0xf]
        %v1979 = vld [vmem:[%s1977 + $0x4] sm:$0xf]
        %v1980 = vld [vmem:[%s1977 + $0x8] sm:$0xf]
        %v1981 = vld [vmem:[%s1977 + $0xc] sm:$0xf]
        %v1982 = vld [vmem:[%s1977 + $0x10] sm:$0xf]
        %v1983 = vld [vmem:[%s1977 + $0x14] sm:$0xf]
        %v1984 = vld [vmem:[%s1977 + $0x18] sm:$0xf]
        %v1985 = vld [vmem:[%s1977 + $0x1c] sm:$0xf]
        %v1986 = vld [vmem:[%s1977 + $0x20] sm:$0xf]
        %v1987 = vld [vmem:[%s1977 + $0x24] sm:$0xf]
        %v1988 = vld [vmem:[%s1977 + $0x28] sm:$0xf]
        %v1989 = vld [vmem:[%s1977 + $0x2c] sm:$0xf]
        %v1990 = vld [vmem:[%s1977 + $0x30] sm:$0xf]
        %v1991 = vld [vmem:[%s1977 + $0x34] sm:$0xf]
        %v1992 = vld [vmem:[%s1977 + $0x38] sm:$0xf]
        %v1993 = vld [vmem:[%s1977 + $0x3c] sm:$0xf]
        %v2010 = vunpack.c.l.b16 %v1978
        %v2011 = vunpack.c.l.b16 %v1979
        %v2012 = vunpack.c.l.b16 %v1980
        %v2013 = vunpack.c.l.b16 %v1981
        %v2014 = vunpack.c.l.b16 %v1982
        %v2015 = vunpack.c.l.b16 %v1983
        %v2016 = vunpack.c.l.b16 %v1984
        %v2017 = vunpack.c.l.b16 %v1985
        %v2018 = vunpack.c.l.b16 %v1986
        %v2019 = vunpack.c.l.b16 %v1987
        %v2020 = vunpack.c.l.b16 %v1988
        %v2021 = vunpack.c.l.b16 %v1989
        %v2022 = vunpack.c.l.b16 %v1990
        %v2023 = vunpack.c.l.b16 %v1991
        %v2024 = vunpack.c.l.b16 %v1992
        %v2025 = vunpack.c.l.b16 %v1993
        %v2026 = vpack.c.b16 %v2011, %v2010
        %v2027 = vpack.c.b16 %v2013, %v2012
        %v2028 = vpack.c.b16 %v2015, %v2014
        %v2029 = vpack.c.b16 %v2017, %v2016
        %v2030 = vpack.c.b16 %v2019, %v2018
        %v2031 = vpack.c.b16 %v2021, %v2020
        %v2032 = vpack.c.b16 %v2023, %v2022
        %v2033 = vpack.c.b16 %v2025, %v2024
        %2042 = vmatpush.bf16.msra.mxu0 %v2033
        %2043 = vmatpush.bf16.msra.mxu0 %v2032
        %2044 = vmatpush.bf16.msra.mxu0 %v2031
        %2045 = vmatpush.bf16.msra.mxu0 %v2030
        %2046 = vmatpush.bf16.msra.mxu0 %v2029
        %2047 = vmatpush.bf16.msra.mxu0 %v2028
        %2048 = vmatpush.bf16.msra.mxu0 %v2027
        %2049 = vmatpush.bf16.msra.mxu0 %v2026
        %2050 = vmatmul.bf16.gmra.mxu0 %v1468
        %v2051 = vpop.f32.mrf.mxu0
        %v2052 = vadd.f32 0.0, %v2051
        %v2053 = vpop.f32.mrf.mxu0
        %2054 = vdwg.mxu0
        %2055 = vset.pattern.permute.xlu0 6
        %2056 = vperm.xlu0 %2055, %v1471
        %v2057 = vpop.permute.xlu0 %2056
        %v2059 = vmul.f32 %v2057, %v2052
        %v2060 = vadd.f32 %v1976, %v2059
        %s2061 = scalar_lea.vmem %s609, 448 [#allocation22]
        %v2062 = vld [vmem:[%s2061] sm:$0xf]
        %v2063 = vld [vmem:[%s2061 + $0x4] sm:$0xf]
        %v2064 = vld [vmem:[%s2061 + $0x8] sm:$0xf]
        %v2065 = vld [vmem:[%s2061 + $0xc] sm:$0xf]
        %v2066 = vld [vmem:[%s2061 + $0x10] sm:$0xf]
        %v2067 = vld [vmem:[%s2061 + $0x14] sm:$0xf]
        %v2068 = vld [vmem:[%s2061 + $0x18] sm:$0xf]
        %v2069 = vld [vmem:[%s2061 + $0x1c] sm:$0xf]
        %v2070 = vld [vmem:[%s2061 + $0x20] sm:$0xf]
        %v2071 = vld [vmem:[%s2061 + $0x24] sm:$0xf]
        %v2072 = vld [vmem:[%s2061 + $0x28] sm:$0xf]
        %v2073 = vld [vmem:[%s2061 + $0x2c] sm:$0xf]
        %v2074 = vld [vmem:[%s2061 + $0x30] sm:$0xf]
        %v2075 = vld [vmem:[%s2061 + $0x34] sm:$0xf]
        %v2076 = vld [vmem:[%s2061 + $0x38] sm:$0xf]
        %v2077 = vld [vmem:[%s2061 + $0x3c] sm:$0xf]
        %v2094 = vunpack.c.l.b16 %v2062
        %v2095 = vunpack.c.l.b16 %v2063
        %v2096 = vunpack.c.l.b16 %v2064
        %v2097 = vunpack.c.l.b16 %v2065
        %v2098 = vunpack.c.l.b16 %v2066
        %v2099 = vunpack.c.l.b16 %v2067
        %v2100 = vunpack.c.l.b16 %v2068
        %v2101 = vunpack.c.l.b16 %v2069
        %v2102 = vunpack.c.l.b16 %v2070
        %v2103 = vunpack.c.l.b16 %v2071
        %v2104 = vunpack.c.l.b16 %v2072
        %v2105 = vunpack.c.l.b16 %v2073
        %v2106 = vunpack.c.l.b16 %v2074
        %v2107 = vunpack.c.l.b16 %v2075
        %v2108 = vunpack.c.l.b16 %v2076
        %v2109 = vunpack.c.l.b16 %v2077
        %v2110 = vpack.c.b16 %v2095, %v2094
        %v2111 = vpack.c.b16 %v2097, %v2096
        %v2112 = vpack.c.b16 %v2099, %v2098
        %v2113 = vpack.c.b16 %v2101, %v2100
        %v2114 = vpack.c.b16 %v2103, %v2102
        %v2115 = vpack.c.b16 %v2105, %v2104
        %v2116 = vpack.c.b16 %v2107, %v2106
        %v2117 = vpack.c.b16 %v2109, %v2108
        %2126 = vmatpush.bf16.msra.mxu0 %v2117
        %2127 = vmatpush.bf16.msra.mxu0 %v2116
        %2128 = vmatpush.bf16.msra.mxu0 %v2115
        %2129 = vmatpush.bf16.msra.mxu0 %v2114
        %2130 = vmatpush.bf16.msra.mxu0 %v2113
        %2131 = vmatpush.bf16.msra.mxu0 %v2112
        %2132 = vmatpush.bf16.msra.mxu0 %v2111
        %2133 = vmatpush.bf16.msra.mxu0 %v2110
        %2134 = vmatmul.bf16.gmra.mxu0 %v1468
        %v2135 = vpop.f32.mrf.mxu0
        %v2136 = vadd.f32 0.0, %v2135
        %v2137 = vpop.f32.mrf.mxu0
        %2138 = vdwg.mxu0
        %2139 = vset.pattern.permute.xlu0 7
        %2140 = vperm.xlu0 %2139, %v1471
        %v2141 = vpop.permute.xlu0 %2140
        %v2143 = vmul.f32 %v2141, %v2136
        %v2144 = vadd.f32 %v2060, %v2143
        %s2145 = scalar_lea.vmem %s609, 512 [#allocation22]
        %v2146 = vld [vmem:[%s2145] sm:$0xf]
        %v2147 = vld [vmem:[%s2145 + $0x4] sm:$0xf]
        %v2148 = vld [vmem:[%s2145 + $0x8] sm:$0xf]
        %v2149 = vld [vmem:[%s2145 + $0xc] sm:$0xf]
        %v2150 = vld [vmem:[%s2145 + $0x10] sm:$0xf]
        %v2151 = vld [vmem:[%s2145 + $0x14] sm:$0xf]
        %v2152 = vld [vmem:[%s2145 + $0x18] sm:$0xf]
        %v2153 = vld [vmem:[%s2145 + $0x1c] sm:$0xf]
        %v2154 = vld [vmem:[%s2145 + $0x20] sm:$0xf]
        %v2155 = vld [vmem:[%s2145 + $0x24] sm:$0xf]
        %v2156 = vld [vmem:[%s2145 + $0x28] sm:$0xf]
        %v2157 = vld [vmem:[%s2145 + $0x2c] sm:$0xf]
        %v2158 = vld [vmem:[%s2145 + $0x30] sm:$0xf]
        %v2159 = vld [vmem:[%s2145 + $0x34] sm:$0xf]
        %v2160 = vld [vmem:[%s2145 + $0x38] sm:$0xf]
        %v2161 = vld [vmem:[%s2145 + $0x3c] sm:$0xf]
        %v2178 = vunpack.c.l.b16 %v2146
        %v2179 = vunpack.c.l.b16 %v2147
        %v2180 = vunpack.c.l.b16 %v2148
        %v2181 = vunpack.c.l.b16 %v2149
        %v2182 = vunpack.c.l.b16 %v2150
        %v2183 = vunpack.c.l.b16 %v2151
        %v2184 = vunpack.c.l.b16 %v2152
        %v2185 = vunpack.c.l.b16 %v2153
        %v2186 = vunpack.c.l.b16 %v2154
        %v2187 = vunpack.c.l.b16 %v2155
        %v2188 = vunpack.c.l.b16 %v2156
        %v2189 = vunpack.c.l.b16 %v2157
        %v2190 = vunpack.c.l.b16 %v2158
        %v2191 = vunpack.c.l.b16 %v2159
        %v2192 = vunpack.c.l.b16 %v2160
        %v2193 = vunpack.c.l.b16 %v2161
        %v2194 = vpack.c.b16 %v2179, %v2178
        %v2195 = vpack.c.b16 %v2181, %v2180
        %v2196 = vpack.c.b16 %v2183, %v2182
        %v2197 = vpack.c.b16 %v2185, %v2184
        %v2198 = vpack.c.b16 %v2187, %v2186
        %v2199 = vpack.c.b16 %v2189, %v2188
        %v2200 = vpack.c.b16 %v2191, %v2190
        %v2201 = vpack.c.b16 %v2193, %v2192
        %2210 = vmatpush.bf16.msra.mxu0 %v2201
        %2211 = vmatpush.bf16.msra.mxu0 %v2200
        %2212 = vmatpush.bf16.msra.mxu0 %v2199
        %2213 = vmatpush.bf16.msra.mxu0 %v2198
        %2214 = vmatpush.bf16.msra.mxu0 %v2197
        %2215 = vmatpush.bf16.msra.mxu0 %v2196
        %2216 = vmatpush.bf16.msra.mxu0 %v2195
        %2217 = vmatpush.bf16.msra.mxu0 %v2194
        %2218 = vmatmul.bf16.gmra.mxu0 %v1468
        %v2219 = vpop.f32.mrf.mxu0
        %v2220 = vadd.f32 0.0, %v2219
        %v2221 = vpop.f32.mrf.mxu0
        %2222 = vdwg.mxu0
        %2223 = vset.pattern.permute.xlu0 8
        %2224 = vperm.xlu0 %2223, %v1471
        %v2225 = vpop.permute.xlu0 %2224
        %v2227 = vmul.f32 %v2225, %v2220
        %v2228 = vadd.f32 %v2144, %v2227
        %s2229 = scalar_lea.vmem %s609, 576 [#allocation22]
        %v2230 = vld [vmem:[%s2229] sm:$0xf]
        %v2231 = vld [vmem:[%s2229 + $0x4] sm:$0xf]
        %v2232 = vld [vmem:[%s2229 + $0x8] sm:$0xf]
        %v2233 = vld [vmem:[%s2229 + $0xc] sm:$0xf]
        %v2234 = vld [vmem:[%s2229 + $0x10] sm:$0xf]
        %v2235 = vld [vmem:[%s2229 + $0x14] sm:$0xf]
        %v2236 = vld [vmem:[%s2229 + $0x18] sm:$0xf]
        %v2237 = vld [vmem:[%s2229 + $0x1c] sm:$0xf]
        %v2238 = vld [vmem:[%s2229 + $0x20] sm:$0xf]
        %v2239 = vld [vmem:[%s2229 + $0x24] sm:$0xf]
        %v2240 = vld [vmem:[%s2229 + $0x28] sm:$0xf]
        %v2241 = vld [vmem:[%s2229 + $0x2c] sm:$0xf]
        %v2242 = vld [vmem:[%s2229 + $0x30] sm:$0xf]
        %v2243 = vld [vmem:[%s2229 + $0x34] sm:$0xf]
        %v2244 = vld [vmem:[%s2229 + $0x38] sm:$0xf]
        %v2245 = vld [vmem:[%s2229 + $0x3c] sm:$0xf]
        %v2262 = vunpack.c.l.b16 %v2230
        %v2263 = vunpack.c.l.b16 %v2231
        %v2264 = vunpack.c.l.b16 %v2232
        %v2265 = vunpack.c.l.b16 %v2233
        %v2266 = vunpack.c.l.b16 %v2234
        %v2267 = vunpack.c.l.b16 %v2235
        %v2268 = vunpack.c.l.b16 %v2236
        %v2269 = vunpack.c.l.b16 %v2237
        %v2270 = vunpack.c.l.b16 %v2238
        %v2271 = vunpack.c.l.b16 %v2239
        %v2272 = vunpack.c.l.b16 %v2240
        %v2273 = vunpack.c.l.b16 %v2241
        %v2274 = vunpack.c.l.b16 %v2242
        %v2275 = vunpack.c.l.b16 %v2243
        %v2276 = vunpack.c.l.b16 %v2244
        %v2277 = vunpack.c.l.b16 %v2245
        %v2278 = vpack.c.b16 %v2263, %v2262
        %v2279 = vpack.c.b16 %v2265, %v2264
        %v2280 = vpack.c.b16 %v2267, %v2266
        %v2281 = vpack.c.b16 %v2269, %v2268
        %v2282 = vpack.c.b16 %v2271, %v2270
        %v2283 = vpack.c.b16 %v2273, %v2272
        %v2284 = vpack.c.b16 %v2275, %v2274
        %v2285 = vpack.c.b16 %v2277, %v2276
        %2294 = vmatpush.bf16.msra.mxu0 %v2285
        %2295 = vmatpush.bf16.msra.mxu0 %v2284
        %2296 = vmatpush.bf16.msra.mxu0 %v2283
        %2297 = vmatpush.bf16.msra.mxu0 %v2282
        %2298 = vmatpush.bf16.msra.mxu0 %v2281
        %2299 = vmatpush.bf16.msra.mxu0 %v2280
        %2300 = vmatpush.bf16.msra.mxu0 %v2279
        %2301 = vmatpush.bf16.msra.mxu0 %v2278
        %2302 = vmatmul.bf16.gmra.mxu0 %v1468
        %v2303 = vpop.f32.mrf.mxu0
        %v2304 = vadd.f32 0.0, %v2303
        %v2305 = vpop.f32.mrf.mxu0
        %2306 = vdwg.mxu0
        %2307 = vset.pattern.permute.xlu0 9
        %2308 = vperm.xlu0 %2307, %v1471
        %v2309 = vpop.permute.xlu0 %2308
        %v2311 = vmul.f32 %v2309, %v2304
        %v2312 = vadd.f32 %v2228, %v2311
        %s2313 = scalar_lea.vmem %s609, 640 [#allocation22]
        %v2314 = vld [vmem:[%s2313] sm:$0xf]
        %v2315 = vld [vmem:[%s2313 + $0x4] sm:$0xf]
        %v2316 = vld [vmem:[%s2313 + $0x8] sm:$0xf]
        %v2317 = vld [vmem:[%s2313 + $0xc] sm:$0xf]
        %v2318 = vld [vmem:[%s2313 + $0x10] sm:$0xf]
        %v2319 = vld [vmem:[%s2313 + $0x14] sm:$0xf]
        %v2320 = vld [vmem:[%s2313 + $0x18] sm:$0xf]
        %v2321 = vld [vmem:[%s2313 + $0x1c] sm:$0xf]
        %v2322 = vld [vmem:[%s2313 + $0x20] sm:$0xf]
        %v2323 = vld [vmem:[%s2313 + $0x24] sm:$0xf]
        %v2324 = vld [vmem:[%s2313 + $0x28] sm:$0xf]
        %v2325 = vld [vmem:[%s2313 + $0x2c] sm:$0xf]
        %v2326 = vld [vmem:[%s2313 + $0x30] sm:$0xf]
        %v2327 = vld [vmem:[%s2313 + $0x34] sm:$0xf]
        %v2328 = vld [vmem:[%s2313 + $0x38] sm:$0xf]
        %v2329 = vld [vmem:[%s2313 + $0x3c] sm:$0xf]
        %v2346 = vunpack.c.l.b16 %v2314
        %v2347 = vunpack.c.l.b16 %v2315
        %v2348 = vunpack.c.l.b16 %v2316
        %v2349 = vunpack.c.l.b16 %v2317
        %v2350 = vunpack.c.l.b16 %v2318
        %v2351 = vunpack.c.l.b16 %v2319
        %v2352 = vunpack.c.l.b16 %v2320
        %v2353 = vunpack.c.l.b16 %v2321
        %v2354 = vunpack.c.l.b16 %v2322
        %v2355 = vunpack.c.l.b16 %v2323
        %v2356 = vunpack.c.l.b16 %v2324
        %v2357 = vunpack.c.l.b16 %v2325
        %v2358 = vunpack.c.l.b16 %v2326
        %v2359 = vunpack.c.l.b16 %v2327
        %v2360 = vunpack.c.l.b16 %v2328
        %v2361 = vunpack.c.l.b16 %v2329
        %v2362 = vpack.c.b16 %v2347, %v2346
        %v2363 = vpack.c.b16 %v2349, %v2348
        %v2364 = vpack.c.b16 %v2351, %v2350
        %v2365 = vpack.c.b16 %v2353, %v2352
        %v2366 = vpack.c.b16 %v2355, %v2354
        %v2367 = vpack.c.b16 %v2357, %v2356
        %v2368 = vpack.c.b16 %v2359, %v2358
        %v2369 = vpack.c.b16 %v2361, %v2360
        %2378 = vmatpush.bf16.msra.mxu0 %v2369
        %2379 = vmatpush.bf16.msra.mxu0 %v2368
        %2380 = vmatpush.bf16.msra.mxu0 %v2367
        %2381 = vmatpush.bf16.msra.mxu0 %v2366
        %2382 = vmatpush.bf16.msra.mxu0 %v2365
        %2383 = vmatpush.bf16.msra.mxu0 %v2364
        %2384 = vmatpush.bf16.msra.mxu0 %v2363
        %2385 = vmatpush.bf16.msra.mxu0 %v2362
        %2386 = vmatmul.bf16.gmra.mxu0 %v1468
        %v2387 = vpop.f32.mrf.mxu0
        %v2388 = vadd.f32 0.0, %v2387
        %v2389 = vpop.f32.mrf.mxu0
        %2390 = vdwg.mxu0
        %2391 = vset.pattern.permute.xlu0 10
        %2392 = vperm.xlu0 %2391, %v1471
        %v2393 = vpop.permute.xlu0 %2392
        %v2395 = vmul.f32 %v2393, %v2388
        %v2396 = vadd.f32 %v2312, %v2395
        %s2397 = scalar_lea.vmem %s609, 704 [#allocation22]
        %v2398 = vld [vmem:[%s2397] sm:$0xf]
        %v2399 = vld [vmem:[%s2397 + $0x4] sm:$0xf]
        %v2400 = vld [vmem:[%s2397 + $0x8] sm:$0xf]
        %v2401 = vld [vmem:[%s2397 + $0xc] sm:$0xf]
        %v2402 = vld [vmem:[%s2397 + $0x10] sm:$0xf]
        %v2403 = vld [vmem:[%s2397 + $0x14] sm:$0xf]
        %v2404 = vld [vmem:[%s2397 + $0x18] sm:$0xf]
        %v2405 = vld [vmem:[%s2397 + $0x1c] sm:$0xf]
        %v2406 = vld [vmem:[%s2397 + $0x20] sm:$0xf]
        %v2407 = vld [vmem:[%s2397 + $0x24] sm:$0xf]
        %v2408 = vld [vmem:[%s2397 + $0x28] sm:$0xf]
        %v2409 = vld [vmem:[%s2397 + $0x2c] sm:$0xf]
        %v2410 = vld [vmem:[%s2397 + $0x30] sm:$0xf]
        %v2411 = vld [vmem:[%s2397 + $0x34] sm:$0xf]
        %v2412 = vld [vmem:[%s2397 + $0x38] sm:$0xf]
        %v2413 = vld [vmem:[%s2397 + $0x3c] sm:$0xf]
        %v2430 = vunpack.c.l.b16 %v2398
        %v2431 = vunpack.c.l.b16 %v2399
        %v2432 = vunpack.c.l.b16 %v2400
        %v2433 = vunpack.c.l.b16 %v2401
        %v2434 = vunpack.c.l.b16 %v2402
        %v2435 = vunpack.c.l.b16 %v2403
        %v2436 = vunpack.c.l.b16 %v2404
        %v2437 = vunpack.c.l.b16 %v2405
        %v2438 = vunpack.c.l.b16 %v2406
        %v2439 = vunpack.c.l.b16 %v2407
        %v2440 = vunpack.c.l.b16 %v2408
        %v2441 = vunpack.c.l.b16 %v2409
        %v2442 = vunpack.c.l.b16 %v2410
        %v2443 = vunpack.c.l.b16 %v2411
        %v2444 = vunpack.c.l.b16 %v2412
        %v2445 = vunpack.c.l.b16 %v2413
        %v2446 = vpack.c.b16 %v2431, %v2430
        %v2447 = vpack.c.b16 %v2433, %v2432
        %v2448 = vpack.c.b16 %v2435, %v2434
        %v2449 = vpack.c.b16 %v2437, %v2436
        %v2450 = vpack.c.b16 %v2439, %v2438
        %v2451 = vpack.c.b16 %v2441, %v2440
        %v2452 = vpack.c.b16 %v2443, %v2442
        %v2453 = vpack.c.b16 %v2445, %v2444
        %2462 = vmatpush.bf16.msra.mxu0 %v2453
        %2463 = vmatpush.bf16.msra.mxu0 %v2452
        %2464 = vmatpush.bf16.msra.mxu0 %v2451
        %2465 = vmatpush.bf16.msra.mxu0 %v2450
        %2466 = vmatpush.bf16.msra.mxu0 %v2449
        %2467 = vmatpush.bf16.msra.mxu0 %v2448
        %2468 = vmatpush.bf16.msra.mxu0 %v2447
        %2469 = vmatpush.bf16.msra.mxu0 %v2446
        %2470 = vmatmul.bf16.gmra.mxu0 %v1468
        %v2471 = vpop.f32.mrf.mxu0
        %v2472 = vadd.f32 0.0, %v2471
        %v2473 = vpop.f32.mrf.mxu0
        %2474 = vdwg.mxu0
        %2475 = vset.pattern.permute.xlu0 11
        %2476 = vperm.xlu0 %2475, %v1471
        %v2477 = vpop.permute.xlu0 %2476
        %v2479 = vmul.f32 %v2477, %v2472
        %v2480 = vadd.f32 %v2396, %v2479
        %s2481 = scalar_lea.vmem %s609, 768 [#allocation22]
        %v2482 = vld [vmem:[%s2481] sm:$0xf]
        %v2483 = vld [vmem:[%s2481 + $0x4] sm:$0xf]
        %v2484 = vld [vmem:[%s2481 + $0x8] sm:$0xf]
        %v2485 = vld [vmem:[%s2481 + $0xc] sm:$0xf]
        %v2486 = vld [vmem:[%s2481 + $0x10] sm:$0xf]
        %v2487 = vld [vmem:[%s2481 + $0x14] sm:$0xf]
        %v2488 = vld [vmem:[%s2481 + $0x18] sm:$0xf]
        %v2489 = vld [vmem:[%s2481 + $0x1c] sm:$0xf]
        %v2490 = vld [vmem:[%s2481 + $0x20] sm:$0xf]
        %v2491 = vld [vmem:[%s2481 + $0x24] sm:$0xf]
        %v2492 = vld [vmem:[%s2481 + $0x28] sm:$0xf]
        %v2493 = vld [vmem:[%s2481 + $0x2c] sm:$0xf]
        %v2494 = vld [vmem:[%s2481 + $0x30] sm:$0xf]
        %v2495 = vld [vmem:[%s2481 + $0x34] sm:$0xf]
        %v2496 = vld [vmem:[%s2481 + $0x38] sm:$0xf]
        %v2497 = vld [vmem:[%s2481 + $0x3c] sm:$0xf]
        %v2514 = vunpack.c.l.b16 %v2482
        %v2515 = vunpack.c.l.b16 %v2483
        %v2516 = vunpack.c.l.b16 %v2484
        %v2517 = vunpack.c.l.b16 %v2485
        %v2518 = vunpack.c.l.b16 %v2486
        %v2519 = vunpack.c.l.b16 %v2487
        %v2520 = vunpack.c.l.b16 %v2488
        %v2521 = vunpack.c.l.b16 %v2489
        %v2522 = vunpack.c.l.b16 %v2490
        %v2523 = vunpack.c.l.b16 %v2491
        %v2524 = vunpack.c.l.b16 %v2492
        %v2525 = vunpack.c.l.b16 %v2493
        %v2526 = vunpack.c.l.b16 %v2494
        %v2527 = vunpack.c.l.b16 %v2495
        %v2528 = vunpack.c.l.b16 %v2496
        %v2529 = vunpack.c.l.b16 %v2497
        %v2530 = vpack.c.b16 %v2515, %v2514
        %v2531 = vpack.c.b16 %v2517, %v2516
        %v2532 = vpack.c.b16 %v2519, %v2518
        %v2533 = vpack.c.b16 %v2521, %v2520
        %v2534 = vpack.c.b16 %v2523, %v2522
        %v2535 = vpack.c.b16 %v2525, %v2524
        %v2536 = vpack.c.b16 %v2527, %v2526
        %v2537 = vpack.c.b16 %v2529, %v2528
        %2546 = vmatpush.bf16.msra.mxu0 %v2537
        %2547 = vmatpush.bf16.msra.mxu0 %v2536
        %2548 = vmatpush.bf16.msra.mxu0 %v2535
        %2549 = vmatpush.bf16.msra.mxu0 %v2534
        %2550 = vmatpush.bf16.msra.mxu0 %v2533
        %2551 = vmatpush.bf16.msra.mxu0 %v2532
        %2552 = vmatpush.bf16.msra.mxu0 %v2531
        %2553 = vmatpush.bf16.msra.mxu0 %v2530
        %2554 = vmatmul.bf16.gmra.mxu0 %v1468
        %v2555 = vpop.f32.mrf.mxu0
        %v2556 = vadd.f32 0.0, %v2555
        %v2557 = vpop.f32.mrf.mxu0
        %2558 = vdwg.mxu0
        %2559 = vset.pattern.permute.xlu0 12
        %2560 = vperm.xlu0 %2559, %v1471
        %v2561 = vpop.permute.xlu0 %2560
        %v2563 = vmul.f32 %v2561, %v2556
        %v2564 = vadd.f32 %v2480, %v2563
        %s2565 = scalar_lea.vmem %s609, 832 [#allocation22]
        %v2566 = vld [vmem:[%s2565] sm:$0xf]
        %v2567 = vld [vmem:[%s2565 + $0x4] sm:$0xf]
        %v2568 = vld [vmem:[%s2565 + $0x8] sm:$0xf]
        %v2569 = vld [vmem:[%s2565 + $0xc] sm:$0xf]
        %v2570 = vld [vmem:[%s2565 + $0x10] sm:$0xf]
        %v2571 = vld [vmem:[%s2565 + $0x14] sm:$0xf]
        %v2572 = vld [vmem:[%s2565 + $0x18] sm:$0xf]
        %v2573 = vld [vmem:[%s2565 + $0x1c] sm:$0xf]
        %v2574 = vld [vmem:[%s2565 + $0x20] sm:$0xf]
        %v2575 = vld [vmem:[%s2565 + $0x24] sm:$0xf]
        %v2576 = vld [vmem:[%s2565 + $0x28] sm:$0xf]
        %v2577 = vld [vmem:[%s2565 + $0x2c] sm:$0xf]
        %v2578 = vld [vmem:[%s2565 + $0x30] sm:$0xf]
        %v2579 = vld [vmem:[%s2565 + $0x34] sm:$0xf]
        %v2580 = vld [vmem:[%s2565 + $0x38] sm:$0xf]
        %v2581 = vld [vmem:[%s2565 + $0x3c] sm:$0xf]
        %v2598 = vunpack.c.l.b16 %v2566
        %v2599 = vunpack.c.l.b16 %v2567
        %v2600 = vunpack.c.l.b16 %v2568
        %v2601 = vunpack.c.l.b16 %v2569
        %v2602 = vunpack.c.l.b16 %v2570
        %v2603 = vunpack.c.l.b16 %v2571
        %v2604 = vunpack.c.l.b16 %v2572
        %v2605 = vunpack.c.l.b16 %v2573
        %v2606 = vunpack.c.l.b16 %v2574
        %v2607 = vunpack.c.l.b16 %v2575
        %v2608 = vunpack.c.l.b16 %v2576
        %v2609 = vunpack.c.l.b16 %v2577
        %v2610 = vunpack.c.l.b16 %v2578
        %v2611 = vunpack.c.l.b16 %v2579
        %v2612 = vunpack.c.l.b16 %v2580
        %v2613 = vunpack.c.l.b16 %v2581
        %v2614 = vpack.c.b16 %v2599, %v2598
        %v2615 = vpack.c.b16 %v2601, %v2600
        %v2616 = vpack.c.b16 %v2603, %v2602
        %v2617 = vpack.c.b16 %v2605, %v2604
        %v2618 = vpack.c.b16 %v2607, %v2606
        %v2619 = vpack.c.b16 %v2609, %v2608
        %v2620 = vpack.c.b16 %v2611, %v2610
        %v2621 = vpack.c.b16 %v2613, %v2612
        %2630 = vmatpush.bf16.msra.mxu0 %v2621
        %2631 = vmatpush.bf16.msra.mxu0 %v2620
        %2632 = vmatpush.bf16.msra.mxu0 %v2619
        %2633 = vmatpush.bf16.msra.mxu0 %v2618
        %2634 = vmatpush.bf16.msra.mxu0 %v2617
        %2635 = vmatpush.bf16.msra.mxu0 %v2616
        %2636 = vmatpush.bf16.msra.mxu0 %v2615
        %2637 = vmatpush.bf16.msra.mxu0 %v2614
        %2638 = vmatmul.bf16.gmra.mxu0 %v1468
        %v2639 = vpop.f32.mrf.mxu0
        %v2640 = vadd.f32 0.0, %v2639
        %v2641 = vpop.f32.mrf.mxu0
        %2642 = vdwg.mxu0
        %2643 = vset.pattern.permute.xlu0 13
        %2644 = vperm.xlu0 %2643, %v1471
        %v2645 = vpop.permute.xlu0 %2644
        %v2647 = vmul.f32 %v2645, %v2640
        %v2648 = vadd.f32 %v2564, %v2647
        %s2649 = scalar_lea.vmem %s609, 896 [#allocation22]
        %v2650 = vld [vmem:[%s2649] sm:$0xf]
        %v2651 = vld [vmem:[%s2649 + $0x4] sm:$0xf]
        %v2652 = vld [vmem:[%s2649 + $0x8] sm:$0xf]
        %v2653 = vld [vmem:[%s2649 + $0xc] sm:$0xf]
        %v2654 = vld [vmem:[%s2649 + $0x10] sm:$0xf]
        %v2655 = vld [vmem:[%s2649 + $0x14] sm:$0xf]
        %v2656 = vld [vmem:[%s2649 + $0x18] sm:$0xf]
        %v2657 = vld [vmem:[%s2649 + $0x1c] sm:$0xf]
        %v2658 = vld [vmem:[%s2649 + $0x20] sm:$0xf]
        %v2659 = vld [vmem:[%s2649 + $0x24] sm:$0xf]
        %v2660 = vld [vmem:[%s2649 + $0x28] sm:$0xf]
        %v2661 = vld [vmem:[%s2649 + $0x2c] sm:$0xf]
        %v2662 = vld [vmem:[%s2649 + $0x30] sm:$0xf]
        %v2663 = vld [vmem:[%s2649 + $0x34] sm:$0xf]
        %v2664 = vld [vmem:[%s2649 + $0x38] sm:$0xf]
        %v2665 = vld [vmem:[%s2649 + $0x3c] sm:$0xf]
        %v2682 = vunpack.c.l.b16 %v2650
        %v2683 = vunpack.c.l.b16 %v2651
        %v2684 = vunpack.c.l.b16 %v2652
        %v2685 = vunpack.c.l.b16 %v2653
        %v2686 = vunpack.c.l.b16 %v2654
        %v2687 = vunpack.c.l.b16 %v2655
        %v2688 = vunpack.c.l.b16 %v2656
        %v2689 = vunpack.c.l.b16 %v2657
        %v2690 = vunpack.c.l.b16 %v2658
        %v2691 = vunpack.c.l.b16 %v2659
        %v2692 = vunpack.c.l.b16 %v2660
        %v2693 = vunpack.c.l.b16 %v2661
        %v2694 = vunpack.c.l.b16 %v2662
        %v2695 = vunpack.c.l.b16 %v2663
        %v2696 = vunpack.c.l.b16 %v2664
        %v2697 = vunpack.c.l.b16 %v2665
        %v2698 = vpack.c.b16 %v2683, %v2682
        %v2699 = vpack.c.b16 %v2685, %v2684
        %v2700 = vpack.c.b16 %v2687, %v2686
        %v2701 = vpack.c.b16 %v2689, %v2688
        %v2702 = vpack.c.b16 %v2691, %v2690
        %v2703 = vpack.c.b16 %v2693, %v2692
        %v2704 = vpack.c.b16 %v2695, %v2694
        %v2705 = vpack.c.b16 %v2697, %v2696
        %2714 = vmatpush.bf16.msra.mxu0 %v2705
        %2715 = vmatpush.bf16.msra.mxu0 %v2704
        %2716 = vmatpush.bf16.msra.mxu0 %v2703
        %2717 = vmatpush.bf16.msra.mxu0 %v2702
        %2718 = vmatpush.bf16.msra.mxu0 %v2701
        %2719 = vmatpush.bf16.msra.mxu0 %v2700
        %2720 = vmatpush.bf16.msra.mxu0 %v2699
        %2721 = vmatpush.bf16.msra.mxu0 %v2698
        %2722 = vmatmul.bf16.gmra.mxu0 %v1468
        %v2723 = vpop.f32.mrf.mxu0
        %v2724 = vadd.f32 0.0, %v2723
        %v2725 = vpop.f32.mrf.mxu0
        %2726 = vdwg.mxu0
        %2727 = vset.pattern.permute.xlu0 14
        %2728 = vperm.xlu0 %2727, %v1471
        %v2729 = vpop.permute.xlu0 %2728
        %v2731 = vmul.f32 %v2729, %v2724
        %v2732 = vadd.f32 %v2648, %v2731
        %s2733 = scalar_lea.vmem %s609, 960 [#allocation22]
        %v2734 = vld [vmem:[%s2733] sm:$0xf]
        %v2735 = vld [vmem:[%s2733 + $0x4] sm:$0xf]
        %v2736 = vld [vmem:[%s2733 + $0x8] sm:$0xf]
        %v2737 = vld [vmem:[%s2733 + $0xc] sm:$0xf]
        %v2738 = vld [vmem:[%s2733 + $0x10] sm:$0xf]
        %v2739 = vld [vmem:[%s2733 + $0x14] sm:$0xf]
        %v2740 = vld [vmem:[%s2733 + $0x18] sm:$0xf]
        %v2741 = vld [vmem:[%s2733 + $0x1c] sm:$0xf]
        %v2742 = vld [vmem:[%s2733 + $0x20] sm:$0xf]
        %v2743 = vld [vmem:[%s2733 + $0x24] sm:$0xf]
        %v2744 = vld [vmem:[%s2733 + $0x28] sm:$0xf]
        %v2745 = vld [vmem:[%s2733 + $0x2c] sm:$0xf]
        %v2746 = vld [vmem:[%s2733 + $0x30] sm:$0xf]
        %v2747 = vld [vmem:[%s2733 + $0x34] sm:$0xf]
        %v2748 = vld [vmem:[%s2733 + $0x38] sm:$0xf]
        %v2749 = vld [vmem:[%s2733 + $0x3c] sm:$0xf]
        %v2766 = vunpack.c.l.b16 %v2734
        %v2767 = vunpack.c.l.b16 %v2735
        %v2768 = vunpack.c.l.b16 %v2736
        %v2769 = vunpack.c.l.b16 %v2737
        %v2770 = vunpack.c.l.b16 %v2738
        %v2771 = vunpack.c.l.b16 %v2739
        %v2772 = vunpack.c.l.b16 %v2740
        %v2773 = vunpack.c.l.b16 %v2741
        %v2774 = vunpack.c.l.b16 %v2742
        %v2775 = vunpack.c.l.b16 %v2743
        %v2776 = vunpack.c.l.b16 %v2744
        %v2777 = vunpack.c.l.b16 %v2745
        %v2778 = vunpack.c.l.b16 %v2746
        %v2779 = vunpack.c.l.b16 %v2747
        %v2780 = vunpack.c.l.b16 %v2748
        %v2781 = vunpack.c.l.b16 %v2749
        %v2782 = vpack.c.b16 %v2767, %v2766
        %v2783 = vpack.c.b16 %v2769, %v2768
        %v2784 = vpack.c.b16 %v2771, %v2770
        %v2785 = vpack.c.b16 %v2773, %v2772
        %v2786 = vpack.c.b16 %v2775, %v2774
        %v2787 = vpack.c.b16 %v2777, %v2776
        %v2788 = vpack.c.b16 %v2779, %v2778
        %v2789 = vpack.c.b16 %v2781, %v2780
        %2798 = vmatpush.bf16.msra.mxu0 %v2789
        %2799 = vmatpush.bf16.msra.mxu0 %v2788
        %2800 = vmatpush.bf16.msra.mxu0 %v2787
        %2801 = vmatpush.bf16.msra.mxu0 %v2786
        %2802 = vmatpush.bf16.msra.mxu0 %v2785
        %2803 = vmatpush.bf16.msra.mxu0 %v2784
        %2804 = vmatpush.bf16.msra.mxu0 %v2783
        %2805 = vmatpush.bf16.msra.mxu0 %v2782
        %2806 = vmatmul.bf16.gmra.mxu0 %v1468
        %v2807 = vpop.f32.mrf.mxu0
        %v2808 = vadd.f32 0.0, %v2807
        %v2809 = vpop.f32.mrf.mxu0
        %2810 = vdwg.mxu0
        %2811 = vset.pattern.permute.xlu0 15
        %2812 = vperm.xlu0 %2811, %v1471
        %v2813 = vpop.permute.xlu0 %2812
        %v2815 = vmul.f32 %v2813, %v2808
        %v2816 = vadd.f32 %v2732, %v2815
        %s2817 = scalar_lea.vmem %s609, 1024 [#allocation22]
        %v2818 = vld [vmem:[%s2817] sm:$0xf]
        %v2819 = vld [vmem:[%s2817 + $0x4] sm:$0xf]
        %v2820 = vld [vmem:[%s2817 + $0x8] sm:$0xf]
        %v2821 = vld [vmem:[%s2817 + $0xc] sm:$0xf]
        %v2822 = vld [vmem:[%s2817 + $0x10] sm:$0xf]
        %v2823 = vld [vmem:[%s2817 + $0x14] sm:$0xf]
        %v2824 = vld [vmem:[%s2817 + $0x18] sm:$0xf]
        %v2825 = vld [vmem:[%s2817 + $0x1c] sm:$0xf]
        %v2826 = vld [vmem:[%s2817 + $0x20] sm:$0xf]
        %v2827 = vld [vmem:[%s2817 + $0x24] sm:$0xf]
        %v2828 = vld [vmem:[%s2817 + $0x28] sm:$0xf]
        %v2829 = vld [vmem:[%s2817 + $0x2c] sm:$0xf]
        %v2830 = vld [vmem:[%s2817 + $0x30] sm:$0xf]
        %v2831 = vld [vmem:[%s2817 + $0x34] sm:$0xf]
        %v2832 = vld [vmem:[%s2817 + $0x38] sm:$0xf]
        %v2833 = vld [vmem:[%s2817 + $0x3c] sm:$0xf]
        %v2850 = vunpack.c.l.b16 %v2818
        %v2851 = vunpack.c.l.b16 %v2819
        %v2852 = vunpack.c.l.b16 %v2820
        %v2853 = vunpack.c.l.b16 %v2821
        %v2854 = vunpack.c.l.b16 %v2822
        %v2855 = vunpack.c.l.b16 %v2823
        %v2856 = vunpack.c.l.b16 %v2824
        %v2857 = vunpack.c.l.b16 %v2825
        %v2858 = vunpack.c.l.b16 %v2826
        %v2859 = vunpack.c.l.b16 %v2827
        %v2860 = vunpack.c.l.b16 %v2828
        %v2861 = vunpack.c.l.b16 %v2829
        %v2862 = vunpack.c.l.b16 %v2830
        %v2863 = vunpack.c.l.b16 %v2831
        %v2864 = vunpack.c.l.b16 %v2832
        %v2865 = vunpack.c.l.b16 %v2833
        %v2866 = vpack.c.b16 %v2851, %v2850
        %v2867 = vpack.c.b16 %v2853, %v2852
        %v2868 = vpack.c.b16 %v2855, %v2854
        %v2869 = vpack.c.b16 %v2857, %v2856
        %v2870 = vpack.c.b16 %v2859, %v2858
        %v2871 = vpack.c.b16 %v2861, %v2860
        %v2872 = vpack.c.b16 %v2863, %v2862
        %v2873 = vpack.c.b16 %v2865, %v2864
        %2882 = vmatpush.bf16.msra.mxu0 %v2873
        %2883 = vmatpush.bf16.msra.mxu0 %v2872
        %2884 = vmatpush.bf16.msra.mxu0 %v2871
        %2885 = vmatpush.bf16.msra.mxu0 %v2870
        %2886 = vmatpush.bf16.msra.mxu0 %v2869
        %2887 = vmatpush.bf16.msra.mxu0 %v2868
        %2888 = vmatpush.bf16.msra.mxu0 %v2867
        %2889 = vmatpush.bf16.msra.mxu0 %v2866
        %2890 = vmatmul.bf16.gmra.mxu0 %v1468
        %v2891 = vpop.f32.mrf.mxu0
        %v2892 = vadd.f32 0.0, %v2891
        %v2893 = vpop.f32.mrf.mxu0
        %2894 = vdwg.mxu0
        %2895 = vset.pattern.permute.xlu0 16
        %2896 = vperm.xlu0 %2895, %v1471
        %v2897 = vpop.permute.xlu0 %2896
        %v2899 = vmul.f32 %v2897, %v2892
        %v2900 = vadd.f32 %v2816, %v2899
        %s2901 = scalar_lea.vmem %s609, 1088 [#allocation22]
        %v2902 = vld [vmem:[%s2901] sm:$0xf]
        %v2903 = vld [vmem:[%s2901 + $0x4] sm:$0xf]
        %v2904 = vld [vmem:[%s2901 + $0x8] sm:$0xf]
        %v2905 = vld [vmem:[%s2901 + $0xc] sm:$0xf]
        %v2906 = vld [vmem:[%s2901 + $0x10] sm:$0xf]
        %v2907 = vld [vmem:[%s2901 + $0x14] sm:$0xf]
        %v2908 = vld [vmem:[%s2901 + $0x18] sm:$0xf]
        %v2909 = vld [vmem:[%s2901 + $0x1c] sm:$0xf]
        %v2910 = vld [vmem:[%s2901 + $0x20] sm:$0xf]
        %v2911 = vld [vmem:[%s2901 + $0x24] sm:$0xf]
        %v2912 = vld [vmem:[%s2901 + $0x28] sm:$0xf]
        %v2913 = vld [vmem:[%s2901 + $0x2c] sm:$0xf]
        %v2914 = vld [vmem:[%s2901 + $0x30] sm:$0xf]
        %v2915 = vld [vmem:[%s2901 + $0x34] sm:$0xf]
        %v2916 = vld [vmem:[%s2901 + $0x38] sm:$0xf]
        %v2917 = vld [vmem:[%s2901 + $0x3c] sm:$0xf]
        %v2934 = vunpack.c.l.b16 %v2902
        %v2935 = vunpack.c.l.b16 %v2903
        %v2936 = vunpack.c.l.b16 %v2904
        %v2937 = vunpack.c.l.b16 %v2905
        %v2938 = vunpack.c.l.b16 %v2906
        %v2939 = vunpack.c.l.b16 %v2907
        %v2940 = vunpack.c.l.b16 %v2908
        %v2941 = vunpack.c.l.b16 %v2909
        %v2942 = vunpack.c.l.b16 %v2910
        %v2943 = vunpack.c.l.b16 %v2911
        %v2944 = vunpack.c.l.b16 %v2912
        %v2945 = vunpack.c.l.b16 %v2913
        %v2946 = vunpack.c.l.b16 %v2914
        %v2947 = vunpack.c.l.b16 %v2915
        %v2948 = vunpack.c.l.b16 %v2916
        %v2949 = vunpack.c.l.b16 %v2917
        %v2950 = vpack.c.b16 %v2935, %v2934
        %v2951 = vpack.c.b16 %v2937, %v2936
        %v2952 = vpack.c.b16 %v2939, %v2938
        %v2953 = vpack.c.b16 %v2941, %v2940
        %v2954 = vpack.c.b16 %v2943, %v2942
        %v2955 = vpack.c.b16 %v2945, %v2944
        %v2956 = vpack.c.b16 %v2947, %v2946
        %v2957 = vpack.c.b16 %v2949, %v2948
        %2966 = vmatpush.bf16.msra.mxu0 %v2957
        %2967 = vmatpush.bf16.msra.mxu0 %v2956
        %2968 = vmatpush.bf16.msra.mxu0 %v2955
        %2969 = vmatpush.bf16.msra.mxu0 %v2954
        %2970 = vmatpush.bf16.msra.mxu0 %v2953
        %2971 = vmatpush.bf16.msra.mxu0 %v2952
        %2972 = vmatpush.bf16.msra.mxu0 %v2951
        %2973 = vmatpush.bf16.msra.mxu0 %v2950
        %2974 = vmatmul.bf16.gmra.mxu0 %v1468
        %v2975 = vpop.f32.mrf.mxu0
        %v2976 = vadd.f32 0.0, %v2975
        %v2977 = vpop.f32.mrf.mxu0
        %2978 = vdwg.mxu0
        %2979 = vset.pattern.permute.xlu0 17
        %2980 = vperm.xlu0 %2979, %v1471
        %v2981 = vpop.permute.xlu0 %2980
        %v2983 = vmul.f32 %v2981, %v2976
        %v2984 = vadd.f32 %v2900, %v2983
        %s2985 = scalar_lea.vmem %s609, 1152 [#allocation22]
        %v2986 = vld [vmem:[%s2985] sm:$0xf]
        %v2987 = vld [vmem:[%s2985 + $0x4] sm:$0xf]
        %v2988 = vld [vmem:[%s2985 + $0x8] sm:$0xf]
        %v2989 = vld [vmem:[%s2985 + $0xc] sm:$0xf]
        %v2990 = vld [vmem:[%s2985 + $0x10] sm:$0xf]
        %v2991 = vld [vmem:[%s2985 + $0x14] sm:$0xf]
        %v2992 = vld [vmem:[%s2985 + $0x18] sm:$0xf]
        %v2993 = vld [vmem:[%s2985 + $0x1c] sm:$0xf]
        %v2994 = vld [vmem:[%s2985 + $0x20] sm:$0xf]
        %v2995 = vld [vmem:[%s2985 + $0x24] sm:$0xf]
        %v2996 = vld [vmem:[%s2985 + $0x28] sm:$0xf]
        %v2997 = vld [vmem:[%s2985 + $0x2c] sm:$0xf]
        %v2998 = vld [vmem:[%s2985 + $0x30] sm:$0xf]
        %v2999 = vld [vmem:[%s2985 + $0x34] sm:$0xf]
        %v3000 = vld [vmem:[%s2985 + $0x38] sm:$0xf]
        %v3001 = vld [vmem:[%s2985 + $0x3c] sm:$0xf]
        %v3018 = vunpack.c.l.b16 %v2986
        %v3019 = vunpack.c.l.b16 %v2987
        %v3020 = vunpack.c.l.b16 %v2988
        %v3021 = vunpack.c.l.b16 %v2989
        %v3022 = vunpack.c.l.b16 %v2990
        %v3023 = vunpack.c.l.b16 %v2991
        %v3024 = vunpack.c.l.b16 %v2992
        %v3025 = vunpack.c.l.b16 %v2993
        %v3026 = vunpack.c.l.b16 %v2994
        %v3027 = vunpack.c.l.b16 %v2995
        %v3028 = vunpack.c.l.b16 %v2996
        %v3029 = vunpack.c.l.b16 %v2997
        %v3030 = vunpack.c.l.b16 %v2998
        %v3031 = vunpack.c.l.b16 %v2999
        %v3032 = vunpack.c.l.b16 %v3000
        %v3033 = vunpack.c.l.b16 %v3001
        %v3034 = vpack.c.b16 %v3019, %v3018
        %v3035 = vpack.c.b16 %v3021, %v3020
        %v3036 = vpack.c.b16 %v3023, %v3022
        %v3037 = vpack.c.b16 %v3025, %v3024
        %v3038 = vpack.c.b16 %v3027, %v3026
        %v3039 = vpack.c.b16 %v3029, %v3028
        %v3040 = vpack.c.b16 %v3031, %v3030
        %v3041 = vpack.c.b16 %v3033, %v3032
        %3050 = vmatpush.bf16.msra.mxu0 %v3041
        %3051 = vmatpush.bf16.msra.mxu0 %v3040
        %3052 = vmatpush.bf16.msra.mxu0 %v3039
        %3053 = vmatpush.bf16.msra.mxu0 %v3038
        %3054 = vmatpush.bf16.msra.mxu0 %v3037
        %3055 = vmatpush.bf16.msra.mxu0 %v3036
        %3056 = vmatpush.bf16.msra.mxu0 %v3035
        %3057 = vmatpush.bf16.msra.mxu0 %v3034
        %3058 = vmatmul.bf16.gmra.mxu0 %v1468
        %v3059 = vpop.f32.mrf.mxu0
        %v3060 = vadd.f32 0.0, %v3059
        %v3061 = vpop.f32.mrf.mxu0
        %3062 = vdwg.mxu0
        %3063 = vset.pattern.permute.xlu0 18
        %3064 = vperm.xlu0 %3063, %v1471
        %v3065 = vpop.permute.xlu0 %3064
        %v3067 = vmul.f32 %v3065, %v3060
        %v3068 = vadd.f32 %v2984, %v3067
        %s3069 = scalar_lea.vmem %s609, 1216 [#allocation22]
        %v3070 = vld [vmem:[%s3069] sm:$0xf]
        %v3071 = vld [vmem:[%s3069 + $0x4] sm:$0xf]
        %v3072 = vld [vmem:[%s3069 + $0x8] sm:$0xf]
        %v3073 = vld [vmem:[%s3069 + $0xc] sm:$0xf]
        %v3074 = vld [vmem:[%s3069 + $0x10] sm:$0xf]
        %v3075 = vld [vmem:[%s3069 + $0x14] sm:$0xf]
        %v3076 = vld [vmem:[%s3069 + $0x18] sm:$0xf]
        %v3077 = vld [vmem:[%s3069 + $0x1c] sm:$0xf]
        %v3078 = vld [vmem:[%s3069 + $0x20] sm:$0xf]
        %v3079 = vld [vmem:[%s3069 + $0x24] sm:$0xf]
        %v3080 = vld [vmem:[%s3069 + $0x28] sm:$0xf]
        %v3081 = vld [vmem:[%s3069 + $0x2c] sm:$0xf]
        %v3082 = vld [vmem:[%s3069 + $0x30] sm:$0xf]
        %v3083 = vld [vmem:[%s3069 + $0x34] sm:$0xf]
        %v3084 = vld [vmem:[%s3069 + $0x38] sm:$0xf]
        %v3085 = vld [vmem:[%s3069 + $0x3c] sm:$0xf]
        %v3102 = vunpack.c.l.b16 %v3070
        %v3103 = vunpack.c.l.b16 %v3071
        %v3104 = vunpack.c.l.b16 %v3072
        %v3105 = vunpack.c.l.b16 %v3073
        %v3106 = vunpack.c.l.b16 %v3074
        %v3107 = vunpack.c.l.b16 %v3075
        %v3108 = vunpack.c.l.b16 %v3076
        %v3109 = vunpack.c.l.b16 %v3077
        %v3110 = vunpack.c.l.b16 %v3078
        %v3111 = vunpack.c.l.b16 %v3079
        %v3112 = vunpack.c.l.b16 %v3080
        %v3113 = vunpack.c.l.b16 %v3081
        %v3114 = vunpack.c.l.b16 %v3082
        %v3115 = vunpack.c.l.b16 %v3083
        %v3116 = vunpack.c.l.b16 %v3084
        %v3117 = vunpack.c.l.b16 %v3085
        %v3118 = vpack.c.b16 %v3103, %v3102
        %v3119 = vpack.c.b16 %v3105, %v3104
        %v3120 = vpack.c.b16 %v3107, %v3106
        %v3121 = vpack.c.b16 %v3109, %v3108
        %v3122 = vpack.c.b16 %v3111, %v3110
        %v3123 = vpack.c.b16 %v3113, %v3112
        %v3124 = vpack.c.b16 %v3115, %v3114
        %v3125 = vpack.c.b16 %v3117, %v3116
        %3134 = vmatpush.bf16.msra.mxu0 %v3125
        %3135 = vmatpush.bf16.msra.mxu0 %v3124
        %3136 = vmatpush.bf16.msra.mxu0 %v3123
        %3137 = vmatpush.bf16.msra.mxu0 %v3122
        %3138 = vmatpush.bf16.msra.mxu0 %v3121
        %3139 = vmatpush.bf16.msra.mxu0 %v3120
        %3140 = vmatpush.bf16.msra.mxu0 %v3119
        %3141 = vmatpush.bf16.msra.mxu0 %v3118
        %3142 = vmatmul.bf16.gmra.mxu0 %v1468
        %v3143 = vpop.f32.mrf.mxu0
        %v3144 = vadd.f32 0.0, %v3143
        %v3145 = vpop.f32.mrf.mxu0
        %3146 = vdwg.mxu0
        %3147 = vset.pattern.permute.xlu0 19
        %3148 = vperm.xlu0 %3147, %v1471
        %v3149 = vpop.permute.xlu0 %3148
        %v3151 = vmul.f32 %v3149, %v3144
        %v3152 = vadd.f32 %v3068, %v3151
        %s3153 = scalar_lea.vmem %s609, 1280 [#allocation22]
        %v3154 = vld [vmem:[%s3153] sm:$0xf]
        %v3155 = vld [vmem:[%s3153 + $0x4] sm:$0xf]
        %v3156 = vld [vmem:[%s3153 + $0x8] sm:$0xf]
        %v3157 = vld [vmem:[%s3153 + $0xc] sm:$0xf]
        %v3158 = vld [vmem:[%s3153 + $0x10] sm:$0xf]
        %v3159 = vld [vmem:[%s3153 + $0x14] sm:$0xf]
        %v3160 = vld [vmem:[%s3153 + $0x18] sm:$0xf]
        %v3161 = vld [vmem:[%s3153 + $0x1c] sm:$0xf]
        %v3162 = vld [vmem:[%s3153 + $0x20] sm:$0xf]
        %v3163 = vld [vmem:[%s3153 + $0x24] sm:$0xf]
        %v3164 = vld [vmem:[%s3153 + $0x28] sm:$0xf]
        %v3165 = vld [vmem:[%s3153 + $0x2c] sm:$0xf]
        %v3166 = vld [vmem:[%s3153 + $0x30] sm:$0xf]
        %v3167 = vld [vmem:[%s3153 + $0x34] sm:$0xf]
        %v3168 = vld [vmem:[%s3153 + $0x38] sm:$0xf]
        %v3169 = vld [vmem:[%s3153 + $0x3c] sm:$0xf]
        %v3186 = vunpack.c.l.b16 %v3154
        %v3187 = vunpack.c.l.b16 %v3155
        %v3188 = vunpack.c.l.b16 %v3156
        %v3189 = vunpack.c.l.b16 %v3157
        %v3190 = vunpack.c.l.b16 %v3158
        %v3191 = vunpack.c.l.b16 %v3159
        %v3192 = vunpack.c.l.b16 %v3160
        %v3193 = vunpack.c.l.b16 %v3161
        %v3194 = vunpack.c.l.b16 %v3162
        %v3195 = vunpack.c.l.b16 %v3163
        %v3196 = vunpack.c.l.b16 %v3164
        %v3197 = vunpack.c.l.b16 %v3165
        %v3198 = vunpack.c.l.b16 %v3166
        %v3199 = vunpack.c.l.b16 %v3167
        %v3200 = vunpack.c.l.b16 %v3168
        %v3201 = vunpack.c.l.b16 %v3169
        %v3202 = vpack.c.b16 %v3187, %v3186
        %v3203 = vpack.c.b16 %v3189, %v3188
        %v3204 = vpack.c.b16 %v3191, %v3190
        %v3205 = vpack.c.b16 %v3193, %v3192
        %v3206 = vpack.c.b16 %v3195, %v3194
        %v3207 = vpack.c.b16 %v3197, %v3196
        %v3208 = vpack.c.b16 %v3199, %v3198
        %v3209 = vpack.c.b16 %v3201, %v3200
        %3218 = vmatpush.bf16.msra.mxu0 %v3209
        %3219 = vmatpush.bf16.msra.mxu0 %v3208
        %3220 = vmatpush.bf16.msra.mxu0 %v3207
        %3221 = vmatpush.bf16.msra.mxu0 %v3206
        %3222 = vmatpush.bf16.msra.mxu0 %v3205
        %3223 = vmatpush.bf16.msra.mxu0 %v3204
        %3224 = vmatpush.bf16.msra.mxu0 %v3203
        %3225 = vmatpush.bf16.msra.mxu0 %v3202
        %3226 = vmatmul.bf16.gmra.mxu0 %v1468
        %v3227 = vpop.f32.mrf.mxu0
        %v3228 = vadd.f32 0.0, %v3227
        %v3229 = vpop.f32.mrf.mxu0
        %3230 = vdwg.mxu0
        %3231 = vset.pattern.permute.xlu0 20
        %3232 = vperm.xlu0 %3231, %v1471
        %v3233 = vpop.permute.xlu0 %3232
        %v3235 = vmul.f32 %v3233, %v3228
        %v3236 = vadd.f32 %v3152, %v3235
        %s3237 = scalar_lea.vmem %s609, 1344 [#allocation22]
        %v3238 = vld [vmem:[%s3237] sm:$0xf]
        %v3239 = vld [vmem:[%s3237 + $0x4] sm:$0xf]
        %v3240 = vld [vmem:[%s3237 + $0x8] sm:$0xf]
        %v3241 = vld [vmem:[%s3237 + $0xc] sm:$0xf]
        %v3242 = vld [vmem:[%s3237 + $0x10] sm:$0xf]
        %v3243 = vld [vmem:[%s3237 + $0x14] sm:$0xf]
        %v3244 = vld [vmem:[%s3237 + $0x18] sm:$0xf]
        %v3245 = vld [vmem:[%s3237 + $0x1c] sm:$0xf]
        %v3246 = vld [vmem:[%s3237 + $0x20] sm:$0xf]
        %v3247 = vld [vmem:[%s3237 + $0x24] sm:$0xf]
        %v3248 = vld [vmem:[%s3237 + $0x28] sm:$0xf]
        %v3249 = vld [vmem:[%s3237 + $0x2c] sm:$0xf]
        %v3250 = vld [vmem:[%s3237 + $0x30] sm:$0xf]
        %v3251 = vld [vmem:[%s3237 + $0x34] sm:$0xf]
        %v3252 = vld [vmem:[%s3237 + $0x38] sm:$0xf]
        %v3253 = vld [vmem:[%s3237 + $0x3c] sm:$0xf]
        %v3270 = vunpack.c.l.b16 %v3238
        %v3271 = vunpack.c.l.b16 %v3239
        %v3272 = vunpack.c.l.b16 %v3240
        %v3273 = vunpack.c.l.b16 %v3241
        %v3274 = vunpack.c.l.b16 %v3242
        %v3275 = vunpack.c.l.b16 %v3243
        %v3276 = vunpack.c.l.b16 %v3244
        %v3277 = vunpack.c.l.b16 %v3245
        %v3278 = vunpack.c.l.b16 %v3246
        %v3279 = vunpack.c.l.b16 %v3247
        %v3280 = vunpack.c.l.b16 %v3248
        %v3281 = vunpack.c.l.b16 %v3249
        %v3282 = vunpack.c.l.b16 %v3250
        %v3283 = vunpack.c.l.b16 %v3251
        %v3284 = vunpack.c.l.b16 %v3252
        %v3285 = vunpack.c.l.b16 %v3253
        %v3286 = vpack.c.b16 %v3271, %v3270
        %v3287 = vpack.c.b16 %v3273, %v3272
        %v3288 = vpack.c.b16 %v3275, %v3274
        %v3289 = vpack.c.b16 %v3277, %v3276
        %v3290 = vpack.c.b16 %v3279, %v3278
        %v3291 = vpack.c.b16 %v3281, %v3280
        %v3292 = vpack.c.b16 %v3283, %v3282
        %v3293 = vpack.c.b16 %v3285, %v3284
        %3302 = vmatpush.bf16.msra.mxu0 %v3293
        %3303 = vmatpush.bf16.msra.mxu0 %v3292
        %3304 = vmatpush.bf16.msra.mxu0 %v3291
        %3305 = vmatpush.bf16.msra.mxu0 %v3290
        %3306 = vmatpush.bf16.msra.mxu0 %v3289
        %3307 = vmatpush.bf16.msra.mxu0 %v3288
        %3308 = vmatpush.bf16.msra.mxu0 %v3287
        %3309 = vmatpush.bf16.msra.mxu0 %v3286
        %3310 = vmatmul.bf16.gmra.mxu0 %v1468
        %v3311 = vpop.f32.mrf.mxu0
        %v3312 = vadd.f32 0.0, %v3311
        %v3313 = vpop.f32.mrf.mxu0
        %3314 = vdwg.mxu0
        %3315 = vset.pattern.permute.xlu0 21
        %3316 = vperm.xlu0 %3315, %v1471
        %v3317 = vpop.permute.xlu0 %3316
        %v3319 = vmul.f32 %v3317, %v3312
        %v3320 = vadd.f32 %v3236, %v3319
        %s3321 = scalar_lea.vmem %s609, 1408 [#allocation22]
        %v3322 = vld [vmem:[%s3321] sm:$0xf]
        %v3323 = vld [vmem:[%s3321 + $0x4] sm:$0xf]
        %v3324 = vld [vmem:[%s3321 + $0x8] sm:$0xf]
        %v3325 = vld [vmem:[%s3321 + $0xc] sm:$0xf]
        %v3326 = vld [vmem:[%s3321 + $0x10] sm:$0xf]
        %v3327 = vld [vmem:[%s3321 + $0x14] sm:$0xf]
        %v3328 = vld [vmem:[%s3321 + $0x18] sm:$0xf]
        %v3329 = vld [vmem:[%s3321 + $0x1c] sm:$0xf]
        %v3330 = vld [vmem:[%s3321 + $0x20] sm:$0xf]
        %v3331 = vld [vmem:[%s3321 + $0x24] sm:$0xf]
        %v3332 = vld [vmem:[%s3321 + $0x28] sm:$0xf]
        %v3333 = vld [vmem:[%s3321 + $0x2c] sm:$0xf]
        %v3334 = vld [vmem:[%s3321 + $0x30] sm:$0xf]
        %v3335 = vld [vmem:[%s3321 + $0x34] sm:$0xf]
        %v3336 = vld [vmem:[%s3321 + $0x38] sm:$0xf]
        %v3337 = vld [vmem:[%s3321 + $0x3c] sm:$0xf]
        %v3354 = vunpack.c.l.b16 %v3322
        %v3355 = vunpack.c.l.b16 %v3323
        %v3356 = vunpack.c.l.b16 %v3324
        %v3357 = vunpack.c.l.b16 %v3325
        %v3358 = vunpack.c.l.b16 %v3326
        %v3359 = vunpack.c.l.b16 %v3327
        %v3360 = vunpack.c.l.b16 %v3328
        %v3361 = vunpack.c.l.b16 %v3329
        %v3362 = vunpack.c.l.b16 %v3330
        %v3363 = vunpack.c.l.b16 %v3331
        %v3364 = vunpack.c.l.b16 %v3332
        %v3365 = vunpack.c.l.b16 %v3333
        %v3366 = vunpack.c.l.b16 %v3334
        %v3367 = vunpack.c.l.b16 %v3335
        %v3368 = vunpack.c.l.b16 %v3336
        %v3369 = vunpack.c.l.b16 %v3337
        %v3370 = vpack.c.b16 %v3355, %v3354
        %v3371 = vpack.c.b16 %v3357, %v3356
        %v3372 = vpack.c.b16 %v3359, %v3358
        %v3373 = vpack.c.b16 %v3361, %v3360
        %v3374 = vpack.c.b16 %v3363, %v3362
        %v3375 = vpack.c.b16 %v3365, %v3364
        %v3376 = vpack.c.b16 %v3367, %v3366
        %v3377 = vpack.c.b16 %v3369, %v3368
        %3386 = vmatpush.bf16.msra.mxu0 %v3377
        %3387 = vmatpush.bf16.msra.mxu0 %v3376
        %3388 = vmatpush.bf16.msra.mxu0 %v3375
        %3389 = vmatpush.bf16.msra.mxu0 %v3374
        %3390 = vmatpush.bf16.msra.mxu0 %v3373
        %3391 = vmatpush.bf16.msra.mxu0 %v3372
        %3392 = vmatpush.bf16.msra.mxu0 %v3371
        %3393 = vmatpush.bf16.msra.mxu0 %v3370
        %3394 = vmatmul.bf16.gmra.mxu0 %v1468
        %v3395 = vpop.f32.mrf.mxu0
        %v3396 = vadd.f32 0.0, %v3395
        %v3397 = vpop.f32.mrf.mxu0
        %3398 = vdwg.mxu0
        %3399 = vset.pattern.permute.xlu0 22
        %3400 = vperm.xlu0 %3399, %v1471
        %v3401 = vpop.permute.xlu0 %3400
        %v3403 = vmul.f32 %v3401, %v3396
        %v3404 = vadd.f32 %v3320, %v3403
        %s3405 = scalar_lea.vmem %s609, 1472 [#allocation22]
        %v3406 = vld [vmem:[%s3405] sm:$0xf]
        %v3407 = vld [vmem:[%s3405 + $0x4] sm:$0xf]
        %v3408 = vld [vmem:[%s3405 + $0x8] sm:$0xf]
        %v3409 = vld [vmem:[%s3405 + $0xc] sm:$0xf]
        %v3410 = vld [vmem:[%s3405 + $0x10] sm:$0xf]
        %v3411 = vld [vmem:[%s3405 + $0x14] sm:$0xf]
        %v3412 = vld [vmem:[%s3405 + $0x18] sm:$0xf]
        %v3413 = vld [vmem:[%s3405 + $0x1c] sm:$0xf]
        %v3414 = vld [vmem:[%s3405 + $0x20] sm:$0xf]
        %v3415 = vld [vmem:[%s3405 + $0x24] sm:$0xf]
        %v3416 = vld [vmem:[%s3405 + $0x28] sm:$0xf]
        %v3417 = vld [vmem:[%s3405 + $0x2c] sm:$0xf]
        %v3418 = vld [vmem:[%s3405 + $0x30] sm:$0xf]
        %v3419 = vld [vmem:[%s3405 + $0x34] sm:$0xf]
        %v3420 = vld [vmem:[%s3405 + $0x38] sm:$0xf]
        %v3421 = vld [vmem:[%s3405 + $0x3c] sm:$0xf]
        %v3438 = vunpack.c.l.b16 %v3406
        %v3439 = vunpack.c.l.b16 %v3407
        %v3440 = vunpack.c.l.b16 %v3408
        %v3441 = vunpack.c.l.b16 %v3409
        %v3442 = vunpack.c.l.b16 %v3410
        %v3443 = vunpack.c.l.b16 %v3411
        %v3444 = vunpack.c.l.b16 %v3412
        %v3445 = vunpack.c.l.b16 %v3413
        %v3446 = vunpack.c.l.b16 %v3414
        %v3447 = vunpack.c.l.b16 %v3415
        %v3448 = vunpack.c.l.b16 %v3416
        %v3449 = vunpack.c.l.b16 %v3417
        %v3450 = vunpack.c.l.b16 %v3418
        %v3451 = vunpack.c.l.b16 %v3419
        %v3452 = vunpack.c.l.b16 %v3420
        %v3453 = vunpack.c.l.b16 %v3421
        %v3454 = vpack.c.b16 %v3439, %v3438
        %v3455 = vpack.c.b16 %v3441, %v3440
        %v3456 = vpack.c.b16 %v3443, %v3442
        %v3457 = vpack.c.b16 %v3445, %v3444
        %v3458 = vpack.c.b16 %v3447, %v3446
        %v3459 = vpack.c.b16 %v3449, %v3448
        %v3460 = vpack.c.b16 %v3451, %v3450
        %v3461 = vpack.c.b16 %v3453, %v3452
        %3470 = vmatpush.bf16.msra.mxu0 %v3461
        %3471 = vmatpush.bf16.msra.mxu0 %v3460
        %3472 = vmatpush.bf16.msra.mxu0 %v3459
        %3473 = vmatpush.bf16.msra.mxu0 %v3458
        %3474 = vmatpush.bf16.msra.mxu0 %v3457
        %3475 = vmatpush.bf16.msra.mxu0 %v3456
        %3476 = vmatpush.bf16.msra.mxu0 %v3455
        %3477 = vmatpush.bf16.msra.mxu0 %v3454
        %3478 = vmatmul.bf16.gmra.mxu0 %v1468
        %v3479 = vpop.f32.mrf.mxu0
        %v3480 = vadd.f32 0.0, %v3479
        %v3481 = vpop.f32.mrf.mxu0
        %3482 = vdwg.mxu0
        %3483 = vset.pattern.permute.xlu0 23
        %3484 = vperm.xlu0 %3483, %v1471
        %v3485 = vpop.permute.xlu0 %3484
        %v3487 = vmul.f32 %v3485, %v3480
        %v3488 = vadd.f32 %v3404, %v3487
        %s3489 = scalar_lea.vmem %s609, 1536 [#allocation22]
        %v3490 = vld [vmem:[%s3489] sm:$0xf]
        %v3491 = vld [vmem:[%s3489 + $0x4] sm:$0xf]
        %v3492 = vld [vmem:[%s3489 + $0x8] sm:$0xf]
        %v3493 = vld [vmem:[%s3489 + $0xc] sm:$0xf]
        %v3494 = vld [vmem:[%s3489 + $0x10] sm:$0xf]
        %v3495 = vld [vmem:[%s3489 + $0x14] sm:$0xf]
        %v3496 = vld [vmem:[%s3489 + $0x18] sm:$0xf]
        %v3497 = vld [vmem:[%s3489 + $0x1c] sm:$0xf]
        %v3498 = vld [vmem:[%s3489 + $0x20] sm:$0xf]
        %v3499 = vld [vmem:[%s3489 + $0x24] sm:$0xf]
        %v3500 = vld [vmem:[%s3489 + $0x28] sm:$0xf]
        %v3501 = vld [vmem:[%s3489 + $0x2c] sm:$0xf]
        %v3502 = vld [vmem:[%s3489 + $0x30] sm:$0xf]
        %v3503 = vld [vmem:[%s3489 + $0x34] sm:$0xf]
        %v3504 = vld [vmem:[%s3489 + $0x38] sm:$0xf]
        %v3505 = vld [vmem:[%s3489 + $0x3c] sm:$0xf]
        %v3522 = vunpack.c.l.b16 %v3490
        %v3523 = vunpack.c.l.b16 %v3491
        %v3524 = vunpack.c.l.b16 %v3492
        %v3525 = vunpack.c.l.b16 %v3493
        %v3526 = vunpack.c.l.b16 %v3494
        %v3527 = vunpack.c.l.b16 %v3495
        %v3528 = vunpack.c.l.b16 %v3496
        %v3529 = vunpack.c.l.b16 %v3497
        %v3530 = vunpack.c.l.b16 %v3498
        %v3531 = vunpack.c.l.b16 %v3499
        %v3532 = vunpack.c.l.b16 %v3500
        %v3533 = vunpack.c.l.b16 %v3501
        %v3534 = vunpack.c.l.b16 %v3502
        %v3535 = vunpack.c.l.b16 %v3503
        %v3536 = vunpack.c.l.b16 %v3504
        %v3537 = vunpack.c.l.b16 %v3505
        %v3538 = vpack.c.b16 %v3523, %v3522
        %v3539 = vpack.c.b16 %v3525, %v3524
        %v3540 = vpack.c.b16 %v3527, %v3526
        %v3541 = vpack.c.b16 %v3529, %v3528
        %v3542 = vpack.c.b16 %v3531, %v3530
        %v3543 = vpack.c.b16 %v3533, %v3532
        %v3544 = vpack.c.b16 %v3535, %v3534
        %v3545 = vpack.c.b16 %v3537, %v3536
        %3554 = vmatpush.bf16.msra.mxu0 %v3545
        %3555 = vmatpush.bf16.msra.mxu0 %v3544
        %3556 = vmatpush.bf16.msra.mxu0 %v3543
        %3557 = vmatpush.bf16.msra.mxu0 %v3542
        %3558 = vmatpush.bf16.msra.mxu0 %v3541
        %3559 = vmatpush.bf16.msra.mxu0 %v3540
        %3560 = vmatpush.bf16.msra.mxu0 %v3539
        %3561 = vmatpush.bf16.msra.mxu0 %v3538
        %3562 = vmatmul.bf16.gmra.mxu0 %v1468
        %v3563 = vpop.f32.mrf.mxu0
        %v3564 = vadd.f32 0.0, %v3563
        %v3565 = vpop.f32.mrf.mxu0
        %3566 = vdwg.mxu0
        %3567 = vset.pattern.permute.xlu0 24
        %3568 = vperm.xlu0 %3567, %v1471
        %v3569 = vpop.permute.xlu0 %3568
        %v3571 = vmul.f32 %v3569, %v3564
        %v3572 = vadd.f32 %v3488, %v3571
        %s3573 = scalar_lea.vmem %s609, 1600 [#allocation22]
        %v3574 = vld [vmem:[%s3573] sm:$0xf]
        %v3575 = vld [vmem:[%s3573 + $0x4] sm:$0xf]
        %v3576 = vld [vmem:[%s3573 + $0x8] sm:$0xf]
        %v3577 = vld [vmem:[%s3573 + $0xc] sm:$0xf]
        %v3578 = vld [vmem:[%s3573 + $0x10] sm:$0xf]
        %v3579 = vld [vmem:[%s3573 + $0x14] sm:$0xf]
        %v3580 = vld [vmem:[%s3573 + $0x18] sm:$0xf]
        %v3581 = vld [vmem:[%s3573 + $0x1c] sm:$0xf]
        %v3582 = vld [vmem:[%s3573 + $0x20] sm:$0xf]
        %v3583 = vld [vmem:[%s3573 + $0x24] sm:$0xf]
        %v3584 = vld [vmem:[%s3573 + $0x28] sm:$0xf]
        %v3585 = vld [vmem:[%s3573 + $0x2c] sm:$0xf]
        %v3586 = vld [vmem:[%s3573 + $0x30] sm:$0xf]
        %v3587 = vld [vmem:[%s3573 + $0x34] sm:$0xf]
        %v3588 = vld [vmem:[%s3573 + $0x38] sm:$0xf]
        %v3589 = vld [vmem:[%s3573 + $0x3c] sm:$0xf]
        %v3606 = vunpack.c.l.b16 %v3574
        %v3607 = vunpack.c.l.b16 %v3575
        %v3608 = vunpack.c.l.b16 %v3576
        %v3609 = vunpack.c.l.b16 %v3577
        %v3610 = vunpack.c.l.b16 %v3578
        %v3611 = vunpack.c.l.b16 %v3579
        %v3612 = vunpack.c.l.b16 %v3580
        %v3613 = vunpack.c.l.b16 %v3581
        %v3614 = vunpack.c.l.b16 %v3582
        %v3615 = vunpack.c.l.b16 %v3583
        %v3616 = vunpack.c.l.b16 %v3584
        %v3617 = vunpack.c.l.b16 %v3585
        %v3618 = vunpack.c.l.b16 %v3586
        %v3619 = vunpack.c.l.b16 %v3587
        %v3620 = vunpack.c.l.b16 %v3588
        %v3621 = vunpack.c.l.b16 %v3589
        %v3622 = vpack.c.b16 %v3607, %v3606
        %v3623 = vpack.c.b16 %v3609, %v3608
        %v3624 = vpack.c.b16 %v3611, %v3610
        %v3625 = vpack.c.b16 %v3613, %v3612
        %v3626 = vpack.c.b16 %v3615, %v3614
        %v3627 = vpack.c.b16 %v3617, %v3616
        %v3628 = vpack.c.b16 %v3619, %v3618
        %v3629 = vpack.c.b16 %v3621, %v3620
        %3638 = vmatpush.bf16.msra.mxu0 %v3629
        %3639 = vmatpush.bf16.msra.mxu0 %v3628
        %3640 = vmatpush.bf16.msra.mxu0 %v3627
        %3641 = vmatpush.bf16.msra.mxu0 %v3626
        %3642 = vmatpush.bf16.msra.mxu0 %v3625
        %3643 = vmatpush.bf16.msra.mxu0 %v3624
        %3644 = vmatpush.bf16.msra.mxu0 %v3623
        %3645 = vmatpush.bf16.msra.mxu0 %v3622
        %3646 = vmatmul.bf16.gmra.mxu0 %v1468
        %v3647 = vpop.f32.mrf.mxu0
        %v3648 = vadd.f32 0.0, %v3647
        %v3649 = vpop.f32.mrf.mxu0
        %3650 = vdwg.mxu0
        %3651 = vset.pattern.permute.xlu0 25
        %3652 = vperm.xlu0 %3651, %v1471
        %v3653 = vpop.permute.xlu0 %3652
        %v3655 = vmul.f32 %v3653, %v3648
        %v3656 = vadd.f32 %v3572, %v3655
        %s3657 = scalar_lea.vmem %s609, 1664 [#allocation22]
        %v3658 = vld [vmem:[%s3657] sm:$0xf]
        %v3659 = vld [vmem:[%s3657 + $0x4] sm:$0xf]
        %v3660 = vld [vmem:[%s3657 + $0x8] sm:$0xf]
        %v3661 = vld [vmem:[%s3657 + $0xc] sm:$0xf]
        %v3662 = vld [vmem:[%s3657 + $0x10] sm:$0xf]
        %v3663 = vld [vmem:[%s3657 + $0x14] sm:$0xf]
        %v3664 = vld [vmem:[%s3657 + $0x18] sm:$0xf]
        %v3665 = vld [vmem:[%s3657 + $0x1c] sm:$0xf]
        %v3666 = vld [vmem:[%s3657 + $0x20] sm:$0xf]
        %v3667 = vld [vmem:[%s3657 + $0x24] sm:$0xf]
        %v3668 = vld [vmem:[%s3657 + $0x28] sm:$0xf]
        %v3669 = vld [vmem:[%s3657 + $0x2c] sm:$0xf]
        %v3670 = vld [vmem:[%s3657 + $0x30] sm:$0xf]
        %v3671 = vld [vmem:[%s3657 + $0x34] sm:$0xf]
        %v3672 = vld [vmem:[%s3657 + $0x38] sm:$0xf]
        %v3673 = vld [vmem:[%s3657 + $0x3c] sm:$0xf]
        %v3690 = vunpack.c.l.b16 %v3658
        %v3691 = vunpack.c.l.b16 %v3659
        %v3692 = vunpack.c.l.b16 %v3660
        %v3693 = vunpack.c.l.b16 %v3661
        %v3694 = vunpack.c.l.b16 %v3662
        %v3695 = vunpack.c.l.b16 %v3663
        %v3696 = vunpack.c.l.b16 %v3664
        %v3697 = vunpack.c.l.b16 %v3665
        %v3698 = vunpack.c.l.b16 %v3666
        %v3699 = vunpack.c.l.b16 %v3667
        %v3700 = vunpack.c.l.b16 %v3668
        %v3701 = vunpack.c.l.b16 %v3669
        %v3702 = vunpack.c.l.b16 %v3670
        %v3703 = vunpack.c.l.b16 %v3671
        %v3704 = vunpack.c.l.b16 %v3672
        %v3705 = vunpack.c.l.b16 %v3673
        %v3706 = vpack.c.b16 %v3691, %v3690
        %v3707 = vpack.c.b16 %v3693, %v3692
        %v3708 = vpack.c.b16 %v3695, %v3694
        %v3709 = vpack.c.b16 %v3697, %v3696
        %v3710 = vpack.c.b16 %v3699, %v3698
        %v3711 = vpack.c.b16 %v3701, %v3700
        %v3712 = vpack.c.b16 %v3703, %v3702
        %v3713 = vpack.c.b16 %v3705, %v3704
        %3722 = vmatpush.bf16.msra.mxu0 %v3713
        %3723 = vmatpush.bf16.msra.mxu0 %v3712
        %3724 = vmatpush.bf16.msra.mxu0 %v3711
        %3725 = vmatpush.bf16.msra.mxu0 %v3710
        %3726 = vmatpush.bf16.msra.mxu0 %v3709
        %3727 = vmatpush.bf16.msra.mxu0 %v3708
        %3728 = vmatpush.bf16.msra.mxu0 %v3707
        %3729 = vmatpush.bf16.msra.mxu0 %v3706
        %3730 = vmatmul.bf16.gmra.mxu0 %v1468
        %v3731 = vpop.f32.mrf.mxu0
        %v3732 = vadd.f32 0.0, %v3731
        %v3733 = vpop.f32.mrf.mxu0
        %3734 = vdwg.mxu0
        %3735 = vset.pattern.permute.xlu0 26
        %3736 = vperm.xlu0 %3735, %v1471
        %v3737 = vpop.permute.xlu0 %3736
        %v3739 = vmul.f32 %v3737, %v3732
        %v3740 = vadd.f32 %v3656, %v3739
        %s3741 = scalar_lea.vmem %s609, 1728 [#allocation22]
        %v3742 = vld [vmem:[%s3741] sm:$0xf]
        %v3743 = vld [vmem:[%s3741 + $0x4] sm:$0xf]
        %v3744 = vld [vmem:[%s3741 + $0x8] sm:$0xf]
        %v3745 = vld [vmem:[%s3741 + $0xc] sm:$0xf]
        %v3746 = vld [vmem:[%s3741 + $0x10] sm:$0xf]
        %v3747 = vld [vmem:[%s3741 + $0x14] sm:$0xf]
        %v3748 = vld [vmem:[%s3741 + $0x18] sm:$0xf]
        %v3749 = vld [vmem:[%s3741 + $0x1c] sm:$0xf]
        %v3750 = vld [vmem:[%s3741 + $0x20] sm:$0xf]
        %v3751 = vld [vmem:[%s3741 + $0x24] sm:$0xf]
        %v3752 = vld [vmem:[%s3741 + $0x28] sm:$0xf]
        %v3753 = vld [vmem:[%s3741 + $0x2c] sm:$0xf]
        %v3754 = vld [vmem:[%s3741 + $0x30] sm:$0xf]
        %v3755 = vld [vmem:[%s3741 + $0x34] sm:$0xf]
        %v3756 = vld [vmem:[%s3741 + $0x38] sm:$0xf]
        %v3757 = vld [vmem:[%s3741 + $0x3c] sm:$0xf]
        %v3774 = vunpack.c.l.b16 %v3742
        %v3775 = vunpack.c.l.b16 %v3743
        %v3776 = vunpack.c.l.b16 %v3744
        %v3777 = vunpack.c.l.b16 %v3745
        %v3778 = vunpack.c.l.b16 %v3746
        %v3779 = vunpack.c.l.b16 %v3747
        %v3780 = vunpack.c.l.b16 %v3748
        %v3781 = vunpack.c.l.b16 %v3749
        %v3782 = vunpack.c.l.b16 %v3750
        %v3783 = vunpack.c.l.b16 %v3751
        %v3784 = vunpack.c.l.b16 %v3752
        %v3785 = vunpack.c.l.b16 %v3753
        %v3786 = vunpack.c.l.b16 %v3754
        %v3787 = vunpack.c.l.b16 %v3755
        %v3788 = vunpack.c.l.b16 %v3756
        %v3789 = vunpack.c.l.b16 %v3757
        %v3790 = vpack.c.b16 %v3775, %v3774
        %v3791 = vpack.c.b16 %v3777, %v3776
        %v3792 = vpack.c.b16 %v3779, %v3778
        %v3793 = vpack.c.b16 %v3781, %v3780
        %v3794 = vpack.c.b16 %v3783, %v3782
        %v3795 = vpack.c.b16 %v3785, %v3784
        %v3796 = vpack.c.b16 %v3787, %v3786
        %v3797 = vpack.c.b16 %v3789, %v3788
        %3806 = vmatpush.bf16.msra.mxu0 %v3797
        %3807 = vmatpush.bf16.msra.mxu0 %v3796
        %3808 = vmatpush.bf16.msra.mxu0 %v3795
        %3809 = vmatpush.bf16.msra.mxu0 %v3794
        %3810 = vmatpush.bf16.msra.mxu0 %v3793
        %3811 = vmatpush.bf16.msra.mxu0 %v3792
        %3812 = vmatpush.bf16.msra.mxu0 %v3791
        %3813 = vmatpush.bf16.msra.mxu0 %v3790
        %3814 = vmatmul.bf16.gmra.mxu0 %v1468
        %v3815 = vpop.f32.mrf.mxu0
        %v3816 = vadd.f32 0.0, %v3815
        %v3817 = vpop.f32.mrf.mxu0
        %3818 = vdwg.mxu0
        %3819 = vset.pattern.permute.xlu0 27
        %3820 = vperm.xlu0 %3819, %v1471
        %v3821 = vpop.permute.xlu0 %3820
        %v3823 = vmul.f32 %v3821, %v3816
        %v3824 = vadd.f32 %v3740, %v3823
        %s3825 = scalar_lea.vmem %s609, 1792 [#allocation22]
        %v3826 = vld [vmem:[%s3825] sm:$0xf]
        %v3827 = vld [vmem:[%s3825 + $0x4] sm:$0xf]
        %v3828 = vld [vmem:[%s3825 + $0x8] sm:$0xf]
        %v3829 = vld [vmem:[%s3825 + $0xc] sm:$0xf]
        %v3830 = vld [vmem:[%s3825 + $0x10] sm:$0xf]
        %v3831 = vld [vmem:[%s3825 + $0x14] sm:$0xf]
        %v3832 = vld [vmem:[%s3825 + $0x18] sm:$0xf]
        %v3833 = vld [vmem:[%s3825 + $0x1c] sm:$0xf]
        %v3834 = vld [vmem:[%s3825 + $0x20] sm:$0xf]
        %v3835 = vld [vmem:[%s3825 + $0x24] sm:$0xf]
        %v3836 = vld [vmem:[%s3825 + $0x28] sm:$0xf]
        %v3837 = vld [vmem:[%s3825 + $0x2c] sm:$0xf]
        %v3838 = vld [vmem:[%s3825 + $0x30] sm:$0xf]
        %v3839 = vld [vmem:[%s3825 + $0x34] sm:$0xf]
        %v3840 = vld [vmem:[%s3825 + $0x38] sm:$0xf]
        %v3841 = vld [vmem:[%s3825 + $0x3c] sm:$0xf]
        %v3858 = vunpack.c.l.b16 %v3826
        %v3859 = vunpack.c.l.b16 %v3827
        %v3860 = vunpack.c.l.b16 %v3828
        %v3861 = vunpack.c.l.b16 %v3829
        %v3862 = vunpack.c.l.b16 %v3830
        %v3863 = vunpack.c.l.b16 %v3831
        %v3864 = vunpack.c.l.b16 %v3832
        %v3865 = vunpack.c.l.b16 %v3833
        %v3866 = vunpack.c.l.b16 %v3834
        %v3867 = vunpack.c.l.b16 %v3835
        %v3868 = vunpack.c.l.b16 %v3836
        %v3869 = vunpack.c.l.b16 %v3837
        %v3870 = vunpack.c.l.b16 %v3838
        %v3871 = vunpack.c.l.b16 %v3839
        %v3872 = vunpack.c.l.b16 %v3840
        %v3873 = vunpack.c.l.b16 %v3841
        %v3874 = vpack.c.b16 %v3859, %v3858
        %v3875 = vpack.c.b16 %v3861, %v3860
        %v3876 = vpack.c.b16 %v3863, %v3862
        %v3877 = vpack.c.b16 %v3865, %v3864
        %v3878 = vpack.c.b16 %v3867, %v3866
        %v3879 = vpack.c.b16 %v3869, %v3868
        %v3880 = vpack.c.b16 %v3871, %v3870
        %v3881 = vpack.c.b16 %v3873, %v3872
        %3890 = vmatpush.bf16.msra.mxu0 %v3881
        %3891 = vmatpush.bf16.msra.mxu0 %v3880
        %3892 = vmatpush.bf16.msra.mxu0 %v3879
        %3893 = vmatpush.bf16.msra.mxu0 %v3878
        %3894 = vmatpush.bf16.msra.mxu0 %v3877
        %3895 = vmatpush.bf16.msra.mxu0 %v3876
        %3896 = vmatpush.bf16.msra.mxu0 %v3875
        %3897 = vmatpush.bf16.msra.mxu0 %v3874
        %3898 = vmatmul.bf16.gmra.mxu0 %v1468
        %v3899 = vpop.f32.mrf.mxu0
        %v3900 = vadd.f32 0.0, %v3899
        %v3901 = vpop.f32.mrf.mxu0
        %3902 = vdwg.mxu0
        %3903 = vset.pattern.permute.xlu0 28
        %3904 = vperm.xlu0 %3903, %v1471
        %v3905 = vpop.permute.xlu0 %3904
        %v3907 = vmul.f32 %v3905, %v3900
        %v3908 = vadd.f32 %v3824, %v3907
        %s3909 = scalar_lea.vmem %s609, 1856 [#allocation22]
        %v3910 = vld [vmem:[%s3909] sm:$0xf]
        %v3911 = vld [vmem:[%s3909 + $0x4] sm:$0xf]
        %v3912 = vld [vmem:[%s3909 + $0x8] sm:$0xf]
        %v3913 = vld [vmem:[%s3909 + $0xc] sm:$0xf]
        %v3914 = vld [vmem:[%s3909 + $0x10] sm:$0xf]
        %v3915 = vld [vmem:[%s3909 + $0x14] sm:$0xf]
        %v3916 = vld [vmem:[%s3909 + $0x18] sm:$0xf]
        %v3917 = vld [vmem:[%s3909 + $0x1c] sm:$0xf]
        %v3918 = vld [vmem:[%s3909 + $0x20] sm:$0xf]
        %v3919 = vld [vmem:[%s3909 + $0x24] sm:$0xf]
        %v3920 = vld [vmem:[%s3909 + $0x28] sm:$0xf]
        %v3921 = vld [vmem:[%s3909 + $0x2c] sm:$0xf]
        %v3922 = vld [vmem:[%s3909 + $0x30] sm:$0xf]
        %v3923 = vld [vmem:[%s3909 + $0x34] sm:$0xf]
        %v3924 = vld [vmem:[%s3909 + $0x38] sm:$0xf]
        %v3925 = vld [vmem:[%s3909 + $0x3c] sm:$0xf]
        %v3942 = vunpack.c.l.b16 %v3910
        %v3943 = vunpack.c.l.b16 %v3911
        %v3944 = vunpack.c.l.b16 %v3912
        %v3945 = vunpack.c.l.b16 %v3913
        %v3946 = vunpack.c.l.b16 %v3914
        %v3947 = vunpack.c.l.b16 %v3915
        %v3948 = vunpack.c.l.b16 %v3916
        %v3949 = vunpack.c.l.b16 %v3917
        %v3950 = vunpack.c.l.b16 %v3918
        %v3951 = vunpack.c.l.b16 %v3919
        %v3952 = vunpack.c.l.b16 %v3920
        %v3953 = vunpack.c.l.b16 %v3921
        %v3954 = vunpack.c.l.b16 %v3922
        %v3955 = vunpack.c.l.b16 %v3923
        %v3956 = vunpack.c.l.b16 %v3924
        %v3957 = vunpack.c.l.b16 %v3925
        %v3958 = vpack.c.b16 %v3943, %v3942
        %v3959 = vpack.c.b16 %v3945, %v3944
        %v3960 = vpack.c.b16 %v3947, %v3946
        %v3961 = vpack.c.b16 %v3949, %v3948
        %v3962 = vpack.c.b16 %v3951, %v3950
        %v3963 = vpack.c.b16 %v3953, %v3952
        %v3964 = vpack.c.b16 %v3955, %v3954
        %v3965 = vpack.c.b16 %v3957, %v3956
        %3974 = vmatpush.bf16.msra.mxu0 %v3965
        %3975 = vmatpush.bf16.msra.mxu0 %v3964
        %3976 = vmatpush.bf16.msra.mxu0 %v3963
        %3977 = vmatpush.bf16.msra.mxu0 %v3962
        %3978 = vmatpush.bf16.msra.mxu0 %v3961
        %3979 = vmatpush.bf16.msra.mxu0 %v3960
        %3980 = vmatpush.bf16.msra.mxu0 %v3959
        %3981 = vmatpush.bf16.msra.mxu0 %v3958
        %3982 = vmatmul.bf16.gmra.mxu0 %v1468
        %v3983 = vpop.f32.mrf.mxu0
        %v3984 = vadd.f32 0.0, %v3983
        %v3985 = vpop.f32.mrf.mxu0
        %3986 = vdwg.mxu0
        %3987 = vset.pattern.permute.xlu0 29
        %3988 = vperm.xlu0 %3987, %v1471
        %v3989 = vpop.permute.xlu0 %3988
        %v3991 = vmul.f32 %v3989, %v3984
        %v3992 = vadd.f32 %v3908, %v3991
        %s3993 = scalar_lea.vmem %s609, 1920 [#allocation22]
        %v3994 = vld [vmem:[%s3993] sm:$0xf]
        %v3995 = vld [vmem:[%s3993 + $0x4] sm:$0xf]
        %v3996 = vld [vmem:[%s3993 + $0x8] sm:$0xf]
        %v3997 = vld [vmem:[%s3993 + $0xc] sm:$0xf]
        %v3998 = vld [vmem:[%s3993 + $0x10] sm:$0xf]
        %v3999 = vld [vmem:[%s3993 + $0x14] sm:$0xf]
        %v4000 = vld [vmem:[%s3993 + $0x18] sm:$0xf]
        %v4001 = vld [vmem:[%s3993 + $0x1c] sm:$0xf]
        %v4002 = vld [vmem:[%s3993 + $0x20] sm:$0xf]
        %v4003 = vld [vmem:[%s3993 + $0x24] sm:$0xf]
        %v4004 = vld [vmem:[%s3993 + $0x28] sm:$0xf]
        %v4005 = vld [vmem:[%s3993 + $0x2c] sm:$0xf]
        %v4006 = vld [vmem:[%s3993 + $0x30] sm:$0xf]
        %v4007 = vld [vmem:[%s3993 + $0x34] sm:$0xf]
        %v4008 = vld [vmem:[%s3993 + $0x38] sm:$0xf]
        %v4009 = vld [vmem:[%s3993 + $0x3c] sm:$0xf]
        %v4026 = vunpack.c.l.b16 %v3994
        %v4027 = vunpack.c.l.b16 %v3995
        %v4028 = vunpack.c.l.b16 %v3996
        %v4029 = vunpack.c.l.b16 %v3997
        %v4030 = vunpack.c.l.b16 %v3998
        %v4031 = vunpack.c.l.b16 %v3999
        %v4032 = vunpack.c.l.b16 %v4000
        %v4033 = vunpack.c.l.b16 %v4001
        %v4034 = vunpack.c.l.b16 %v4002
        %v4035 = vunpack.c.l.b16 %v4003
        %v4036 = vunpack.c.l.b16 %v4004
        %v4037 = vunpack.c.l.b16 %v4005
        %v4038 = vunpack.c.l.b16 %v4006
        %v4039 = vunpack.c.l.b16 %v4007
        %v4040 = vunpack.c.l.b16 %v4008
        %v4041 = vunpack.c.l.b16 %v4009
        %v4042 = vpack.c.b16 %v4027, %v4026
        %v4043 = vpack.c.b16 %v4029, %v4028
        %v4044 = vpack.c.b16 %v4031, %v4030
        %v4045 = vpack.c.b16 %v4033, %v4032
        %v4046 = vpack.c.b16 %v4035, %v4034
        %v4047 = vpack.c.b16 %v4037, %v4036
        %v4048 = vpack.c.b16 %v4039, %v4038
        %v4049 = vpack.c.b16 %v4041, %v4040
        %4058 = vmatpush.bf16.msra.mxu0 %v4049
        %4059 = vmatpush.bf16.msra.mxu0 %v4048
        %4060 = vmatpush.bf16.msra.mxu0 %v4047
        %4061 = vmatpush.bf16.msra.mxu0 %v4046
        %4062 = vmatpush.bf16.msra.mxu0 %v4045
        %4063 = vmatpush.bf16.msra.mxu0 %v4044
        %4064 = vmatpush.bf16.msra.mxu0 %v4043
        %4065 = vmatpush.bf16.msra.mxu0 %v4042
        %4066 = vmatmul.bf16.gmra.mxu0 %v1468
        %v4067 = vpop.f32.mrf.mxu0
        %v4068 = vadd.f32 0.0, %v4067
        %v4069 = vpop.f32.mrf.mxu0
        %4070 = vdwg.mxu0
        %4071 = vset.pattern.permute.xlu0 30
        %4072 = vperm.xlu0 %4071, %v1471
        %v4073 = vpop.permute.xlu0 %4072
        %v4075 = vmul.f32 %v4073, %v4068
        %v4076 = vadd.f32 %v3992, %v4075
        %s4077 = scalar_lea.vmem %s609, 1984 [#allocation22]
        %v4078 = vld [vmem:[%s4077] sm:$0xf]
        %v4079 = vld [vmem:[%s4077 + $0x4] sm:$0xf]
        %v4080 = vld [vmem:[%s4077 + $0x8] sm:$0xf]
        %v4081 = vld [vmem:[%s4077 + $0xc] sm:$0xf]
        %v4082 = vld [vmem:[%s4077 + $0x10] sm:$0xf]
        %v4083 = vld [vmem:[%s4077 + $0x14] sm:$0xf]
        %v4084 = vld [vmem:[%s4077 + $0x18] sm:$0xf]
        %v4085 = vld [vmem:[%s4077 + $0x1c] sm:$0xf]
        %v4086 = vld [vmem:[%s4077 + $0x20] sm:$0xf]
        %v4087 = vld [vmem:[%s4077 + $0x24] sm:$0xf]
        %v4088 = vld [vmem:[%s4077 + $0x28] sm:$0xf]
        %v4089 = vld [vmem:[%s4077 + $0x2c] sm:$0xf]
        %v4090 = vld [vmem:[%s4077 + $0x30] sm:$0xf]
        %v4091 = vld [vmem:[%s4077 + $0x34] sm:$0xf]
        %v4092 = vld [vmem:[%s4077 + $0x38] sm:$0xf]
        %v4093 = vld [vmem:[%s4077 + $0x3c] sm:$0xf]
        %v4110 = vunpack.c.l.b16 %v4078
        %v4111 = vunpack.c.l.b16 %v4079
        %v4112 = vunpack.c.l.b16 %v4080
        %v4113 = vunpack.c.l.b16 %v4081
        %v4114 = vunpack.c.l.b16 %v4082
        %v4115 = vunpack.c.l.b16 %v4083
        %v4116 = vunpack.c.l.b16 %v4084
        %v4117 = vunpack.c.l.b16 %v4085
        %v4118 = vunpack.c.l.b16 %v4086
        %v4119 = vunpack.c.l.b16 %v4087
        %v4120 = vunpack.c.l.b16 %v4088
        %v4121 = vunpack.c.l.b16 %v4089
        %v4122 = vunpack.c.l.b16 %v4090
        %v4123 = vunpack.c.l.b16 %v4091
        %v4124 = vunpack.c.l.b16 %v4092
        %v4125 = vunpack.c.l.b16 %v4093
        %v4126 = vpack.c.b16 %v4111, %v4110
        %v4127 = vpack.c.b16 %v4113, %v4112
        %v4128 = vpack.c.b16 %v4115, %v4114
        %v4129 = vpack.c.b16 %v4117, %v4116
        %v4130 = vpack.c.b16 %v4119, %v4118
        %v4131 = vpack.c.b16 %v4121, %v4120
        %v4132 = vpack.c.b16 %v4123, %v4122
        %v4133 = vpack.c.b16 %v4125, %v4124
        %4142 = vmatpush.bf16.msra.mxu0 %v4133
        %4143 = vmatpush.bf16.msra.mxu0 %v4132
        %4144 = vmatpush.bf16.msra.mxu0 %v4131
        %4145 = vmatpush.bf16.msra.mxu0 %v4130
        %4146 = vmatpush.bf16.msra.mxu0 %v4129
        %4147 = vmatpush.bf16.msra.mxu0 %v4128
        %4148 = vmatpush.bf16.msra.mxu0 %v4127
        %4149 = vmatpush.bf16.msra.mxu0 %v4126
        %4150 = vmatmul.bf16.gmra.mxu0 %v1468
        %v4151 = vpop.f32.mrf.mxu0
        %v4152 = vadd.f32 0.0, %v4151
        %v4153 = vpop.f32.mrf.mxu0
        %4154 = vdwg.mxu0
        %4155 = vset.pattern.permute.xlu0 31
        %4156 = vperm.xlu0 %4155, %v1471
        %v4157 = vpop.permute.xlu0 %4156
        %v4159 = vmul.f32 %v4157, %v4152
        %v4160 = vadd.f32 %v4076, %v4159
        %4161 = vst [vmem:[#allocation4] sm:$0xff] %v4160
        %p4162 = scmp.eq.s32.totalorder %s33, 3
        // Predicated region
        $region133: #{clip_classifier_forward.1} parent=75 // pred_check
          %p4163 = pneg %p4162
        $region134: #{clip_classifier_forward.1} parent=75 // pred_check_branch
          %4165 = sbr.rel (%p4163) target = $region136
        $region135: #{clip_classifier_forward.1} parent=75 // pred_region
          %v4166 = vld [vmem:[#allocation4] sm:$0xff]
          %v4167 = vld [vmem:[#allocation23] sm:$0x1]
          %v4169 = vperm.slane %v4167, 0
          %v4171 = vadd.f32 %v4166, %v4169
          %v4172 = vmax.f32 %v4171, 0.0
          %v4173 = vld [vmem:[#allocation24] sm:$0x1]
          %v4175 = vperm.slane %v4173, 0
          %v4177 = vmul.f32 %v4172, %v4175
          %4178 = vadd.xlane.f32.xlu0 %v4177
          %v4179 = vpop.xlane.xlu0 %4178
          %v4180 = vld [vmem:[#allocation5] sm:$0x1]
          %v4182 = vperm.slane %v4180, 0
          %v4184 = vadd.f32 %v4179, %v4182
          %v4185 = vxor.u32 %v4184, 2147483648
          %v4186 = vmul.f32 %v4185, 1.442695
          %v4187 = vpow.pop %v4186
          %v4188 = vadd.f32 %v4187, 1.0
          %v4189 = vrcp.pop %v4188
          %v4190 = vmul.f32 %v4188, %v4189
          %v4191 = vsub.f32 1.0, %v4190
          %v4192 = vmul.f32 %v4189, %v4191
          %v4193 = vadd.f32 %v4189, %v4192
          %vm4194 = vweird.f32 %v4188
          %vm4195 = vweird.f32 %v4189
          %vm4196 = vmor %vm4194, %vm4195
          %v4197 = vsel %vm4196, %v4189, %v4193
          %v4198 = vand.u32 2147483647, %v4188
          %vm4199 = vcmp.eq.f32.partialorder %v4198, 8.507059e+37
          %v4200 = vand.u32 %v4188, 2147483648
          %v4201 = vor.u32 1.1754944e-38, %v4200
          %v4202 = vsel %vm4199, %v4201, %v4197
          %v4203 = vmul.f32 1.0, %v4202
          %vm4204 = vcmask 7168
          %4205 = vst.msk [vmem:[%s14] sm:$0xff] %vm4204, %v4203
        $region136: #{clip_classifier_forward.1} parent=75 // pred_fallthru
          _
        // Predicated region
        $region137: #{clip_classifier_forward.1} parent=75 // pred_check
          %p4206 = pneg %p345
        $region138: #{clip_classifier_forward.1} parent=75 // pred_check_branch
          %4208 = sbr.rel (%p4206) target = $region140
        $region139: #{clip_classifier_forward.1} parent=75 // pred_region
          _
        $region140: #{clip_classifier_forward.1} parent=75 // pred_fallthru
          _
        // Predicated region
        $region141: #{clip_classifier_forward.1} parent=75 // pred_check
          %p4209 = pneg %p345
        $region142: #{clip_classifier_forward.1} parent=75 // pred_check_branch
          %4211 = sbr.rel (%p4209) target = $region144
        $region143: #{clip_classifier_forward.1} parent=75 // pred_region
          _
        $region144: #{clip_classifier_forward.1} parent=75 // pred_fallthru
          _
      $region76: #{clip_classifier_forward.1} parent=5 // pred_fallthru
        _
      %p4212 = scmp.le.s32.totalorder 2, %s28
      // Predicated region
      $region145: #{clip_classifier_forward.1} parent=5 // pred_check
        %p4213 = pneg %p4212
      $region146: #{clip_classifier_forward.1} parent=5 // pred_check_branch
        %4215 = sbr.rel (%p4213) target = $region148
      $region147: #{clip_classifier_forward.1} parent=5 // pred_region
        %s4216 = ssub.s32 %s28, 2
      $region148: #{clip_classifier_forward.1} parent=5 // pred_fallthru
        _
    $region6: #{clip_classifier_forward.1} parent=1 // loop_footer
      %s32 = sadd.s32 1, %s28
    $region7: #{clip_classifier_forward.1} parent=1 // loop_footer_branch
      %27 = sbr.rel target = $region3
    $region8: #{clip_classifier_forward.1} parent=1 // loop_exit
      _
    %4217 = vsyncpa [#allocation7], 1
    %s4218 = scalar_lea.sflag [#allocation7], 1
    %4219 = vsyncpa %s4218, 1
    %4220 = vsyncpa [#allocation9], 1
    %4221 = vsyncpa [#allocation12], 1
    %4222 = vsyncpa [#allocation15], 1
    %4223 = vsyncpa [#allocation18], 1
    %4224 = vsyncpa [#allocation21], 1

</llo_original>
